<compile_context>
chip_gen: v6e
topology: v6e:2x2x1
jax: 0.10.0
libtpu: 0.0.40
codegen_flags: <defaults>
</compile_context>

<pallas_src>
import functools
import math

import jax
import jax.numpy as jnp
from jax.experimental import pallas as pl
from jax.experimental.pallas import tpu as pltpu

LN_EPS = 1e-5  # nn.LayerNorm default


def _layer_norm(x, gamma, beta, eps=LN_EPS):
    mu = jnp.mean(x, axis=-1, keepdims=True)
    var = jnp.mean((x - mu) ** 2, axis=-1, keepdims=True)
    return (x - mu) * jax.lax.rsqrt(var + eps) * gamma + beta


def bin_graph_kernel(x_ref, in_w_ref, w_qkv_ref, b_qkv_ref, w_o_ref,
                     w_ff1_ref, b_ff1_ref, w_ff2_ref, vec_d_ref,
                     m1w_ref, m1b_ref, m2w_ref, m3w_ref, m3b_ref,
                     o_ref, *, num_layers, num_heads):
    """in_proj -> num_layers x encoder layer (post-norm, ReLU) -> 3-layer MLP head.

    Single grid step; every weight / activation stays VMEM-resident.  All matmuls are
    lane-dense (fused QKV, merged-head out-projection, padded head output).
    """
    d_model = in_w_ref.shape[1]
    head_dim = d_model // num_heads
    n = x_ref.shape[0]
    scale = 1.0 / math.sqrt(head_dim)

    # ---- BinGraphModel.initial_projection on node features ----
    x = jnp.dot(x_ref[...], in_w_ref[...],
                preferred_element_type=jnp.float32) + vec_d_ref[0]            # (N, D)

    for layer in range(num_layers):
        v0 = 1 + 6 * layer
        bo, g1, be1, b2, g2, be2 = (vec_d_ref[v0 + i] for i in range(6))

        # ---- multi-head self-attention: ONE fused (N,D)@(D,3D) projection ----
        qkv = jnp.dot(x, w_qkv_ref[layer],
                      preferred_element_type=jnp.float32) + b_qkv_ref[layer]  # (N, 3D)
        q = qkv[:, 0 * d_model:1 * d_model] * scale    # 1/sqrt(hd) hoisted onto q once
        k = qkv[:, 1 * d_model:2 * d_model]
        v = qkv[:, 2 * d_model:3 * d_model]

        split = lambda t: t.reshape(n, num_heads, head_dim).transpose(1, 0, 2)  # (H,N,hd)
        qh, kh, vh = split(q), split(k), split(v)

        s = jnp.einsum("hqd,hkd->hqk", qh, kh,
                       preferred_element_type=jnp.float32)                    # (H, N, N)
        s = s - jnp.max(s, axis=-1, keepdims=True)
        p = jnp.exp(s)
        p = p / jnp.sum(p, axis=-1, keepdims=True)     # exact softmax (EUP not a bottleneck)

        a = jnp.einsum("hqk,hkd->hqd", p, vh,
                       preferred_element_type=jnp.float32)                    # (H, N, hd)
        attn = a.transpose(1, 0, 2).reshape(n, d_model)                       # merge heads
        attn = jnp.dot(attn, w_o_ref[layer],
                       preferred_element_type=jnp.float32) + bo               # (N, D)

        x = _layer_norm(x + attn, g1, be1)

        # ---- feed-forward ----
        h1 = jnp.maximum(jnp.dot(x, w_ff1_ref[layer],
                                 preferred_element_type=jnp.float32)
                         + b_ff1_ref[layer], 0.0)
        ff = jnp.dot(h1, w_ff2_ref[layer], preferred_element_type=jnp.float32) + b2
        x = _layer_norm(x + ff, g2, be2)

    # ---- MLP head: Linear/ReLU/Linear/ReLU/Linear (dropout = identity in eval) ----
    m2b = vec_d_ref[1 + 6 * num_layers]
    h = jnp.maximum(jnp.dot(x, m1w_ref[...],
                            preferred_element_type=jnp.float32) + m1b_ref[...], 0.0)
    h = jnp.maximum(jnp.dot(h, m2w_ref[...],
                            preferred_element_type=jnp.float32) + m2b, 0.0)
    # m3w/m3b are zero-padded to 128 lanes host-side -> unmasked, lane-dense store.
    o_ref[...] = jnp.dot(h, m3w_ref[...],
                         preferred_element_type=jnp.float32) + m3b_ref[...]


def bin_graph_forward_pallas(x_nodes, kernel_inputs, *, num_layers, num_heads, out_pad):
    """x_nodes: (N, indim) f32. Returns (N, out_pad) padded MLP output for every node."""
    n_nodes = x_nodes.shape[0]
    n_in = 1 + len(kernel_inputs)
    kernel = functools.partial(bin_graph_kernel,
                               num_layers=num_layers, num_heads=num_heads)
    return pl.pallas_call(
        kernel,
        out_shape=jax.ShapeDtypeStruct((n_nodes, out_pad), jnp.float32),
        in_specs=[pl.BlockSpec(memory_space=pltpu.MemorySpace.VMEM)] * n_in,
        out_specs=pl.BlockSpec(memory_space=pltpu.MemorySpace.VMEM),
    )(x_nodes, *kernel_inputs)


def init_params(key, *, indim, d_model, num_heads, dim_ff, num_layers, task_dim,
                out_pad, std=0.2):
    """Deterministic synthetic weights.

    Returns (packed kernel input list, unpacked reference pytree)."""
    cnt = [0]

    def nxt(shape):
        cnt[0] += 1
        return jax.random.normal(jax.random.fold_in(key, cnt[0]), shape, jnp.float32) * std

    in_w = nxt((indim, d_model))          # pre-transposed: y = x @ W + b
    in_b = nxt((d_model,))

    layers = []
    for _ in range(num_layers):
        layers.append(dict(
            wq=nxt((d_model, d_model)), wk=nxt((d_model, d_model)),
            wv=nxt((d_model, d_model)), wo=nxt((d_model, d_model)),
            bq=nxt((d_model,)), bk=nxt((d_model,)),
            bv=nxt((d_model,)), bo=nxt((d_model,)),
            w1=nxt((d_model, dim_ff)), b1=nxt((dim_ff,)),
            w2=nxt((dim_ff, d_model)), b2=nxt((d_model,)),
            g1=jnp.ones((d_model,), jnp.float32), be1=jnp.zeros((d_model,), jnp.float32),
            g2=jnp.ones((d_model,), jnp.float32), be2=jnp.zeros((d_model,), jnp.float32)))

    m1w = nxt((d_model, 2 * d_model)); m1b = nxt((2 * d_model,))
    m2w = nxt((2 * d_model, d_model)); m2b = nxt((d_model,))
    m3w = nxt((d_model, task_dim));    m3b = nxt((task_dim,))

    ref = dict(in_w=in_w, in_b=in_b, layers=layers,
               m1w=m1w, m1b=m1b, m2w=m2w, m2b=m2b, m3w=m3w, m3b=m3b)

    # ---- host-side packing into a handful of lane-dense kernel inputs ----
    w_qkv = jnp.stack([jnp.concatenate([l["wq"], l["wk"], l["wv"]], axis=1)
                       for l in layers])                                  # (L, D, 3D)
    b_qkv = jnp.stack([jnp.concatenate([l["bq"], l["bk"], l["bv"]])
                       for l in layers])                                  # (L, 3D)
    w_o   = jnp.stack([l["wo"] for l in layers])                          # (L, D, D)
    w_ff1 = jnp.stack([l["w1"] for l in layers])                          # (L, D, F)
    b_ff1 = jnp.stack([l["b1"] for l in layers])                          # (L, F)
    w_ff2 = jnp.stack([l["w2"] for l in layers])                          # (L, F, D)
    # All width-D vectors (in_b, per-layer bo/g1/be1/b2/g2/be2, m2b) in one (2+6L, D) slab.
    vec_d = jnp.stack(
        [in_b]
        + sum([[l["bo"], l["g1"], l["be1"], l["b2"], l["g2"], l["be2"]] for l in layers], [])
        + [m2b])
    # Zero-pad the head's last layer to 128 output lanes for an unmasked store.
    m3w_pad = jnp.zeros((d_model, out_pad), jnp.float32).at[:, :task_dim].set(m3w)
    m3b_pad = jnp.zeros((1, out_pad), jnp.float32).at[:, :task_dim].set(m3b)

    kernel_inputs = [in_w, w_qkv, b_qkv, w_o, w_ff1, b_ff1, w_ff2, vec_d,
                     m1w, m1b.reshape(1, -1), m2w, m3w_pad, m3b_pad]
    return kernel_inputs, ref


# ------------------------- pure-JAX reference (for checking) -------------------------
def _ref_encoder_layer(x, p, num_heads):
    n, d = x.shape
    hd = d // num_heads
    q = x @ p["wq"] + p["bq"]
    k = x @ p["wk"] + p["bk"]
    v = x @ p["wv"] + p["bv"]
    split = lambda t: t.reshape(n, num_heads, hd).transpose(1, 0, 2)
    qh, kh, vh = split(q), split(k), split(v)
    s = jnp.einsum("hqd,hkd->hqk", qh, kh) / math.sqrt(hd)
    pa = jax.nn.softmax(s, axis=-1)
    a = jnp.einsum("hqk,hkd->hqd", pa, vh).transpose(1, 0, 2).reshape(n, d)
    a = a @ p["wo"] + p["bo"]
    x = _layer_norm(x + a, p["g1"], p["be1"])
    ff = jnp.maximum(x @ p["w1"] + p["b1"], 0.0) @ p["w2"] + p["b2"]
    return _layer_norm(x + ff, p["g2"], p["be2"])


def _ref_forward(x_nodes, ref, num_heads):
    x = x_nodes @ ref["in_w"] + ref["in_b"]
    for lp in ref["layers"]:
        x = _ref_encoder_layer(x, lp, num_heads)
    h = jnp.maximum(x @ ref["m1w"] + ref["m1b"], 0.0)
    h = jnp.maximum(h @ ref["m2w"] + ref["m2b"], 0.0)
    return h @ ref["m3w"] + ref["m3b"]


if __name__ == "__main__":
    # BinGraphModel(indim=16, outdim=32, task_dim=8) with a 2-layer, 4-head
    # TransformerEncoder (dim_ff=64) standing in for the unspecified `model` backbone.
    N_NODES, IN_DIM = 16, 16
    D_MODEL, NUM_HEADS, NUM_LAYERS, DIM_FF, TASK_DIM = 32, 4, 2, 64, 8
    OUT_PAD = 128   # lane-dense output slab; sliced back to TASK_DIM wrapper-side

    key = jax.random.PRNGKey(0)
    kx, kp = jax.random.split(key)
    x_nodes = jax.random.normal(kx, (N_NODES, IN_DIM), jnp.float32)   # g.x
    true_nodes_mask = (jnp.arange(N_NODES) % 3) != 0                  # g.true_nodes_mask

    kernel_inputs, ref_params = init_params(
        kp, indim=IN_DIM, d_model=D_MODEL, num_heads=NUM_HEADS,
        dim_ff=DIM_FF, num_layers=NUM_LAYERS, task_dim=TASK_DIM, out_pad=OUT_PAD)

    out_pad = bin_graph_forward_pallas(x_nodes, kernel_inputs,
                                       num_layers=NUM_LAYERS, num_heads=NUM_HEADS,
                                       out_pad=OUT_PAD)
    out_pad = jax.block_until_ready(out_pad)

    # emb[g.true_nodes_mask] select applied wrapper-side: the MLP is row-wise so it
    # commutes with row selection, and ragged gathers need dynamic output shapes.
    res = out_pad[:, :TASK_DIM][true_nodes_mask]

    ref = _ref_forward(x_nodes, ref_params, NUM_HEADS)[true_nodes_mask]
    assert res.shape == ref.shape == (int(true_nodes_mask.sum()), TASK_DIM)
    # Tolerance covers default-precision MXU f32 matmuls vs the XLA reference path.
    assert jnp.allclose(res, ref, atol=2e-2, rtol=2e-2), float(jnp.max(jnp.abs(res - ref)))

    print("KERNEL_OK")
</pallas_src>

<mosaic_0001>
module attributes {stable_mosaic.version = 11 : i64} {
  func.func @bin_graph_kernel(%arg0: memref<16x16xf32, #tpu.memory_space<vmem>>, %arg1: memref<16x32xf32, #tpu.memory_space<vmem>>, %arg2: memref<2x32x96xf32, #tpu.memory_space<vmem>>, %arg3: memref<2x96xf32, #tpu.memory_space<vmem>>, %arg4: memref<2x32x32xf32, #tpu.memory_space<vmem>>, %arg5: memref<2x32x64xf32, #tpu.memory_space<vmem>>, %arg6: memref<2x64xf32, #tpu.memory_space<vmem>>, %arg7: memref<2x64x32xf32, #tpu.memory_space<vmem>>, %arg8: memref<14x32xf32, #tpu.memory_space<vmem>>, %arg9: memref<32x64xf32, #tpu.memory_space<vmem>>, %arg10: memref<1x64xf32, #tpu.memory_space<vmem>>, %arg11: memref<64x32xf32, #tpu.memory_space<vmem>>, %arg12: memref<32x128xf32, #tpu.memory_space<vmem>>, %arg13: memref<1x128xf32, #tpu.memory_space<vmem>>, %arg14: memref<16x128xf32, #tpu.memory_space<vmem>>) attributes {dimension_semantics = [], scalar_prefetch = 0 : i64, scratch_operands = 0 : i64, tpu.core_type = #tpu.core_type<tc>} {
    %c0 = arith.constant 0 : index
    %c0_0 = arith.constant 0 : index
    %0 = vector.load %arg0[%c0, %c0_0] : memref<16x16xf32, #tpu.memory_space<vmem>>, vector<16x16xf32>
    %c0_1 = arith.constant 0 : index
    %c0_2 = arith.constant 0 : index
    %1 = vector.load %arg1[%c0_1, %c0_2] : memref<16x32xf32, #tpu.memory_space<vmem>>, vector<16x32xf32>
    %cst = arith.constant dense<0.000000e+00> : vector<16x32xf32>
    %2 = tpu.matmul %0, %1, %cst {dimension_numbers = #tpu.dot_dimension_numbers<[1], [0], [0], [1], [0, 0, 1, 1], [], []>} : vector<16x16xf32>, vector<16x32xf32>, vector<16x32xf32> -> vector<16x32xf32>
    %c0_3 = arith.constant 0 : index
    %c0_4 = arith.constant 0 : index
    %3 = vector.load %arg8[%c0_3, %c0_4] : memref<14x32xf32, #tpu.memory_space<vmem>>, vector<1x32xf32>
    %4 = vector.shape_cast %3 : vector<1x32xf32> to vector<32xf32>
    %5 = vector.shape_cast %4 : vector<32xf32> to vector<1x32xf32>
    %6 = vector.broadcast %5 : vector<1x32xf32> to vector<16x32xf32>
    %7 = arith.addf %2, %6 : vector<16x32xf32>
    %c1 = arith.constant 1 : index
    %c0_5 = arith.constant 0 : index
    %8 = vector.load %arg8[%c1, %c0_5] : memref<14x32xf32, #tpu.memory_space<vmem>>, vector<1x32xf32>
    %9 = vector.shape_cast %8 : vector<1x32xf32> to vector<32xf32>
    %c2 = arith.constant 2 : index
    %c0_6 = arith.constant 0 : index
    %10 = vector.load %arg8[%c2, %c0_6] : memref<14x32xf32, #tpu.memory_space<vmem>>, vector<1x32xf32>
    %11 = vector.shape_cast %10 : vector<1x32xf32> to vector<32xf32>
    %c3 = arith.constant 3 : index
    %c0_7 = arith.constant 0 : index
    %12 = vector.load %arg8[%c3, %c0_7] : memref<14x32xf32, #tpu.memory_space<vmem>>, vector<1x32xf32>
    %13 = vector.shape_cast %12 : vector<1x32xf32> to vector<32xf32>
    %c4 = arith.constant 4 : index
    %c0_8 = arith.constant 0 : index
    %14 = vector.load %arg8[%c4, %c0_8] : memref<14x32xf32, #tpu.memory_space<vmem>>, vector<1x32xf32>
    %15 = vector.shape_cast %14 : vector<1x32xf32> to vector<32xf32>
    %c5 = arith.constant 5 : index
    %c0_9 = arith.constant 0 : index
    %16 = vector.load %arg8[%c5, %c0_9] : memref<14x32xf32, #tpu.memory_space<vmem>>, vector<1x32xf32>
    %17 = vector.shape_cast %16 : vector<1x32xf32> to vector<32xf32>
    %c6 = arith.constant 6 : index
    %c0_10 = arith.constant 0 : index
    %18 = vector.load %arg8[%c6, %c0_10] : memref<14x32xf32, #tpu.memory_space<vmem>>, vector<1x32xf32>
    %19 = vector.shape_cast %18 : vector<1x32xf32> to vector<32xf32>
    %c0_11 = arith.constant 0 : index
    %c0_12 = arith.constant 0 : index
    %c0_13 = arith.constant 0 : index
    %20 = vector.load %arg2[%c0_11, %c0_12, %c0_13] : memref<2x32x96xf32, #tpu.memory_space<vmem>>, vector<1x32x96xf32>
    %21 = vector.shape_cast %20 : vector<1x32x96xf32> to vector<32x96xf32>
    %cst_14 = arith.constant dense<0.000000e+00> : vector<16x96xf32>
    %22 = tpu.matmul %7, %21, %cst_14 {dimension_numbers = #tpu.dot_dimension_numbers<[1], [0], [0], [1], [0, 0, 1, 1], [], []>} : vector<16x32xf32>, vector<32x96xf32>, vector<16x96xf32> -> vector<16x96xf32>
    %c0_15 = arith.constant 0 : index
    %c0_16 = arith.constant 0 : index
    %23 = vector.load %arg3[%c0_15, %c0_16] : memref<2x96xf32, #tpu.memory_space<vmem>>, vector<1x96xf32>
    %24 = vector.shape_cast %23 : vector<1x96xf32> to vector<96xf32>
    %25 = vector.shape_cast %24 : vector<96xf32> to vector<1x96xf32>
    %26 = vector.broadcast %25 : vector<1x96xf32> to vector<16x96xf32>
    %27 = arith.addf %22, %26 : vector<16x96xf32>
    %28 = vector.extract_strided_slice %27 {offsets = [0, 0], sizes = [16, 32], strides = [1, 1]} : vector<16x96xf32> to vector<16x32xf32>
    %cst_17 = arith.constant 0.353553385 : f32
    %29 = vector.broadcast %cst_17 : f32 to vector<16x32xf32>
    %30 = arith.mulf %28, %29 : vector<16x32xf32>
    %31 = vector.extract_strided_slice %27 {offsets = [0, 32], sizes = [16, 32], strides = [1, 1]} : vector<16x96xf32> to vector<16x32xf32>
    %32 = vector.extract_strided_slice %27 {offsets = [0, 64], sizes = [16, 32], strides = [1, 1]} : vector<16x96xf32> to vector<16x32xf32>
    %33 = vector.shape_cast %30 : vector<16x32xf32> to vector<16x4x8xf32>
    %34 = tpu.transpose %33, [1, 0, 2] : vector<16x4x8xf32> -> vector<4x16x8xf32>
    %35 = vector.shape_cast %31 : vector<16x32xf32> to vector<16x4x8xf32>
    %36 = tpu.transpose %35, [1, 0, 2] : vector<16x4x8xf32> -> vector<4x16x8xf32>
    %37 = vector.shape_cast %32 : vector<16x32xf32> to vector<16x4x8xf32>
    %38 = tpu.transpose %37, [1, 0, 2] : vector<16x4x8xf32> -> vector<4x16x8xf32>
    "tpu.trace_start"() <{level = 10 : i32, message = "hqd,hkd->hqk"}> : () -> ()
    %cst_18 = arith.constant dense<0.000000e+00> : vector<4x16x16xf32>
    %39 = tpu.matmul %34, %36, %cst_18 {dimension_numbers = #tpu.dot_dimension_numbers<[2], [2], [1], [1], [0, 0, 0, 1, 1, 1], [0], [0]>} : vector<4x16x8xf32>, vector<4x16x8xf32>, vector<4x16x16xf32> -> vector<4x16x16xf32>
    "tpu.trace_stop"() : () -> ()
    %cst_19 = arith.constant dense<0xFF800000> : vector<4x16xf32>
    %40 = vector.multi_reduction <maximumf>, %39, %cst_19 [2] : vector<4x16x16xf32> to vector<4x16xf32>
    %41 = vector.shape_cast %40 : vector<4x16xf32> to vector<4x16x1xf32>
    %42 = vector.broadcast %41 : vector<4x16x1xf32> to vector<4x16x16xf32>
    %43 = arith.subf %39, %42 : vector<4x16x16xf32>
    %44 = math.exp %43 : vector<4x16x16xf32>
    %cst_20 = arith.constant dense<0.000000e+00> : vector<4x16xf32>
    %45 = vector.multi_reduction <add>, %44, %cst_20 [2] : vector<4x16x16xf32> to vector<4x16xf32>
    %46 = vector.shape_cast %45 : vector<4x16xf32> to vector<4x16x1xf32>
    %47 = vector.broadcast %46 : vector<4x16x1xf32> to vector<4x16x16xf32>
    %48 = arith.divf %44, %47 : vector<4x16x16xf32>
    "tpu.trace_start"() <{level = 10 : i32, message = "hqk,hkd->hqd"}> : () -> ()
    %cst_21 = arith.constant dense<0.000000e+00> : vector<4x16x8xf32>
    %49 = tpu.matmul %48, %38, %cst_21 {dimension_numbers = #tpu.dot_dimension_numbers<[2], [1], [1], [2], [0, 0, 0, 1, 1, 2], [0], [0]>} : vector<4x16x16xf32>, vector<4x16x8xf32>, vector<4x16x8xf32> -> vector<4x16x8xf32>
    "tpu.trace_stop"() : () -> ()
    %50 = tpu.transpose %49, [1, 0, 2] : vector<4x16x8xf32> -> vector<16x4x8xf32>
    %51 = vector.shape_cast %50 : vector<16x4x8xf32> to vector<16x32xf32>
    %c0_22 = arith.constant 0 : index
    %c0_23 = arith.constant 0 : index
    %c0_24 = arith.constant 0 : index
    %52 = vector.load %arg4[%c0_22, %c0_23, %c0_24] : memref<2x32x32xf32, #tpu.memory_space<vmem>>, vector<1x32x32xf32>
    %53 = vector.shape_cast %52 : vector<1x32x32xf32> to vector<32x32xf32>
    %cst_25 = arith.constant dense<0.000000e+00> : vector<16x32xf32>
    %54 = tpu.matmul %51, %53, %cst_25 {dimension_numbers = #tpu.dot_dimension_numbers<[1], [0], [0], [1], [0, 0, 1, 1], [], []>} : vector<16x32xf32>, vector<32x32xf32>, vector<16x32xf32> -> vector<16x32xf32>
    %55 = vector.shape_cast %9 : vector<32xf32> to vector<1x32xf32>
    %56 = vector.broadcast %55 : vector<1x32xf32> to vector<16x32xf32>
    %57 = arith.addf %54, %56 : vector<16x32xf32>
    %58 = arith.addf %7, %57 : vector<16x32xf32>
    %cst_26 = arith.constant dense<0.000000e+00> : vector<16xf32>
    %59 = vector.multi_reduction <add>, %58, %cst_26 [1] : vector<16x32xf32> to vector<16xf32>
    %60 = vector.shape_cast %59 : vector<16xf32> to vector<16x1xf32>
    %cst_27 = arith.constant 3.200000e+01 : f32
    %61 = vector.broadcast %cst_27 : f32 to vector<16x1xf32>
    %62 = arith.divf %60, %61 : vector<16x1xf32>
    %63 = vector.broadcast %62 : vector<16x1xf32> to vector<16x32xf32>
    %64 = arith.subf %58, %63 : vector<16x32xf32>
    %65 = arith.mulf %64, %64 : vector<16x32xf32>
    %cst_28 = arith.constant dense<0.000000e+00> : vector<16xf32>
    %66 = vector.multi_reduction <add>, %65, %cst_28 [1] : vector<16x32xf32> to vector<16xf32>
    %67 = vector.shape_cast %66 : vector<16xf32> to vector<16x1xf32>
    %cst_29 = arith.constant 3.200000e+01 : f32
    %68 = vector.broadcast %cst_29 : f32 to vector<16x1xf32>
    %69 = arith.divf %67, %68 : vector<16x1xf32>
    %70 = vector.broadcast %62 : vector<16x1xf32> to vector<16x32xf32>
    %71 = arith.subf %58, %70 : vector<16x32xf32>
    %cst_30 = arith.constant 9.99999974E-6 : f32
    %72 = vector.broadcast %cst_30 : f32 to vector<16x1xf32>
    %73 = arith.addf %69, %72 : vector<16x1xf32>
    %74 = math.rsqrt %73 : vector<16x1xf32>
    %75 = vector.broadcast %74 : vector<16x1xf32> to vector<16x32xf32>
    %76 = arith.mulf %71, %75 : vector<16x32xf32>
    %77 = vector.shape_cast %11 : vector<32xf32> to vector<1x32xf32>
    %78 = vector.broadcast %77 : vector<1x32xf32> to vector<16x32xf32>
    %79 = arith.mulf %76, %78 : vector<16x32xf32>
    %80 = vector.shape_cast %13 : vector<32xf32> to vector<1x32xf32>
    %81 = vector.broadcast %80 : vector<1x32xf32> to vector<16x32xf32>
    %82 = arith.addf %79, %81 : vector<16x32xf32>
    %c0_31 = arith.constant 0 : index
    %c0_32 = arith.constant 0 : index
    %c0_33 = arith.constant 0 : index
    %83 = vector.load %arg5[%c0_31, %c0_32, %c0_33] : memref<2x32x64xf32, #tpu.memory_space<vmem>>, vector<1x32x64xf32>
    %84 = vector.shape_cast %83 : vector<1x32x64xf32> to vector<32x64xf32>
    %cst_34 = arith.constant dense<0.000000e+00> : vector<16x64xf32>
    %85 = tpu.matmul %82, %84, %cst_34 {dimension_numbers = #tpu.dot_dimension_numbers<[1], [0], [0], [1], [0, 0, 1, 1], [], []>} : vector<16x32xf32>, vector<32x64xf32>, vector<16x64xf32> -> vector<16x64xf32>
    %c0_35 = arith.constant 0 : index
    %c0_36 = arith.constant 0 : index
    %86 = vector.load %arg6[%c0_35, %c0_36] : memref<2x64xf32, #tpu.memory_space<vmem>>, vector<1x64xf32>
    %87 = vector.shape_cast %86 : vector<1x64xf32> to vector<64xf32>
    %88 = vector.shape_cast %87 : vector<64xf32> to vector<1x64xf32>
    %89 = vector.broadcast %88 : vector<1x64xf32> to vector<16x64xf32>
    %90 = arith.addf %85, %89 : vector<16x64xf32>
    %cst_37 = arith.constant 0.000000e+00 : f32
    %91 = vector.broadcast %cst_37 : f32 to vector<16x64xf32>
    %92 = arith.maximumf %90, %91 : vector<16x64xf32>
    %c0_38 = arith.constant 0 : index
    %c0_39 = arith.constant 0 : index
    %c0_40 = arith.constant 0 : index
    %93 = vector.load %arg7[%c0_38, %c0_39, %c0_40] : memref<2x64x32xf32, #tpu.memory_space<vmem>>, vector<1x64x32xf32>
    %94 = vector.shape_cast %93 : vector<1x64x32xf32> to vector<64x32xf32>
    %cst_41 = arith.constant dense<0.000000e+00> : vector<16x32xf32>
    %95 = tpu.matmul %92, %94, %cst_41 {dimension_numbers = #tpu.dot_dimension_numbers<[1], [0], [0], [1], [0, 0, 1, 1], [], []>} : vector<16x64xf32>, vector<64x32xf32>, vector<16x32xf32> -> vector<16x32xf32>
    %96 = vector.shape_cast %15 : vector<32xf32> to vector<1x32xf32>
    %97 = vector.broadcast %96 : vector<1x32xf32> to vector<16x32xf32>
    %98 = arith.addf %95, %97 : vector<16x32xf32>
    %99 = arith.addf %82, %98 : vector<16x32xf32>
    %cst_42 = arith.constant dense<0.000000e+00> : vector<16xf32>
    %100 = vector.multi_reduction <add>, %99, %cst_42 [1] : vector<16x32xf32> to vector<16xf32>
    %101 = vector.shape_cast %100 : vector<16xf32> to vector<16x1xf32>
    %cst_43 = arith.constant 3.200000e+01 : f32
    %102 = vector.broadcast %cst_43 : f32 to vector<16x1xf32>
    %103 = arith.divf %101, %102 : vector<16x1xf32>
    %104 = vector.broadcast %103 : vector<16x1xf32> to vector<16x32xf32>
    %105 = arith.subf %99, %104 : vector<16x32xf32>
    %106 = arith.mulf %105, %105 : vector<16x32xf32>
    %cst_44 = arith.constant dense<0.000000e+00> : vector<16xf32>
    %107 = vector.multi_reduction <add>, %106, %cst_44 [1] : vector<16x32xf32> to vector<16xf32>
    %108 = vector.shape_cast %107 : vector<16xf32> to vector<16x1xf32>
    %cst_45 = arith.constant 3.200000e+01 : f32
    %109 = vector.broadcast %cst_45 : f32 to vector<16x1xf32>
    %110 = arith.divf %108, %109 : vector<16x1xf32>
    %111 = vector.broadcast %103 : vector<16x1xf32> to vector<16x32xf32>
    %112 = arith.subf %99, %111 : vector<16x32xf32>
    %cst_46 = arith.constant 9.99999974E-6 : f32
    %113 = vector.broadcast %cst_46 : f32 to vector<16x1xf32>
    %114 = arith.addf %110, %113 : vector<16x1xf32>
    %115 = math.rsqrt %114 : vector<16x1xf32>
    %116 = vector.broadcast %115 : vector<16x1xf32> to vector<16x32xf32>
    %117 = arith.mulf %112, %116 : vector<16x32xf32>
    %118 = vector.shape_cast %17 : vector<32xf32> to vector<1x32xf32>
    %119 = vector.broadcast %118 : vector<1x32xf32> to vector<16x32xf32>
    %120 = arith.mulf %117, %119 : vector<16x32xf32>
    %121 = vector.shape_cast %19 : vector<32xf32> to vector<1x32xf32>
    %122 = vector.broadcast %121 : vector<1x32xf32> to vector<16x32xf32>
    %123 = arith.addf %120, %122 : vector<16x32xf32>
    %c7 = arith.constant 7 : index
    %c0_47 = arith.constant 0 : index
    %124 = vector.load %arg8[%c7, %c0_47] : memref<14x32xf32, #tpu.memory_space<vmem>>, vector<1x32xf32>
    %125 = vector.shape_cast %124 : vector<1x32xf32> to vector<32xf32>
    %c8 = arith.constant 8 : index
    %c0_48 = arith.constant 0 : index
    %126 = vector.load %arg8[%c8, %c0_48] : memref<14x32xf32, #tpu.memory_space<vmem>>, vector<1x32xf32>
    %127 = vector.shape_cast %126 : vector<1x32xf32> to vector<32xf32>
    %c9 = arith.constant 9 : index
    %c0_49 = arith.constant 0 : index
    %128 = vector.load %arg8[%c9, %c0_49] : memref<14x32xf32, #tpu.memory_space<vmem>>, vector<1x32xf32>
    %129 = vector.shape_cast %128 : vector<1x32xf32> to vector<32xf32>
    %c10 = arith.constant 10 : index
    %c0_50 = arith.constant 0 : index
    %130 = vector.load %arg8[%c10, %c0_50] : memref<14x32xf32, #tpu.memory_space<vmem>>, vector<1x32xf32>
    %131 = vector.shape_cast %130 : vector<1x32xf32> to vector<32xf32>
    %c11 = arith.constant 11 : index
    %c0_51 = arith.constant 0 : index
    %132 = vector.load %arg8[%c11, %c0_51] : memref<14x32xf32, #tpu.memory_space<vmem>>, vector<1x32xf32>
    %133 = vector.shape_cast %132 : vector<1x32xf32> to vector<32xf32>
    %c12 = arith.constant 12 : index
    %c0_52 = arith.constant 0 : index
    %134 = vector.load %arg8[%c12, %c0_52] : memref<14x32xf32, #tpu.memory_space<vmem>>, vector<1x32xf32>
    %135 = vector.shape_cast %134 : vector<1x32xf32> to vector<32xf32>
    %c1_53 = arith.constant 1 : index
    %c0_54 = arith.constant 0 : index
    %c0_55 = arith.constant 0 : index
    %136 = vector.load %arg2[%c1_53, %c0_54, %c0_55] : memref<2x32x96xf32, #tpu.memory_space<vmem>>, vector<1x32x96xf32>
    %137 = vector.shape_cast %136 : vector<1x32x96xf32> to vector<32x96xf32>
    %cst_56 = arith.constant dense<0.000000e+00> : vector<16x96xf32>
    %138 = tpu.matmul %123, %137, %cst_56 {dimension_numbers = #tpu.dot_dimension_numbers<[1], [0], [0], [1], [0, 0, 1, 1], [], []>} : vector<16x32xf32>, vector<32x96xf32>, vector<16x96xf32> -> vector<16x96xf32>
    %c1_57 = arith.constant 1 : index
    %c0_58 = arith.constant 0 : index
    %139 = vector.load %arg3[%c1_57, %c0_58] : memref<2x96xf32, #tpu.memory_space<vmem>>, vector<1x96xf32>
    %140 = vector.shape_cast %139 : vector<1x96xf32> to vector<96xf32>
    %141 = vector.shape_cast %140 : vector<96xf32> to vector<1x96xf32>
    %142 = vector.broadcast %141 : vector<1x96xf32> to vector<16x96xf32>
    %143 = arith.addf %138, %142 : vector<16x96xf32>
    %144 = vector.extract_strided_slice %143 {offsets = [0, 0], sizes = [16, 32], strides = [1, 1]} : vector<16x96xf32> to vector<16x32xf32>
    %cst_59 = arith.constant 0.353553385 : f32
    %145 = vector.broadcast %cst_59 : f32 to vector<16x32xf32>
    %146 = arith.mulf %144, %145 : vector<16x32xf32>
    %147 = vector.extract_strided_slice %143 {offsets = [0, 32], sizes = [16, 32], strides = [1, 1]} : vector<16x96xf32> to vector<16x32xf32>
    %148 = vector.extract_strided_slice %143 {offsets = [0, 64], sizes = [16, 32], strides = [1, 1]} : vector<16x96xf32> to vector<16x32xf32>
    %149 = vector.shape_cast %146 : vector<16x32xf32> to vector<16x4x8xf32>
    %150 = tpu.transpose %149, [1, 0, 2] : vector<16x4x8xf32> -> vector<4x16x8xf32>
    %151 = vector.shape_cast %147 : vector<16x32xf32> to vector<16x4x8xf32>
    %152 = tpu.transpose %151, [1, 0, 2] : vector<16x4x8xf32> -> vector<4x16x8xf32>
    %153 = vector.shape_cast %148 : vector<16x32xf32> to vector<16x4x8xf32>
    %154 = tpu.transpose %153, [1, 0, 2] : vector<16x4x8xf32> -> vector<4x16x8xf32>
    "tpu.trace_start"() <{level = 10 : i32, message = "hqd,hkd->hqk"}> : () -> ()
    %cst_60 = arith.constant dense<0.000000e+00> : vector<4x16x16xf32>
    %155 = tpu.matmul %150, %152, %cst_60 {dimension_numbers = #tpu.dot_dimension_numbers<[2], [2], [1], [1], [0, 0, 0, 1, 1, 1], [0], [0]>} : vector<4x16x8xf32>, vector<4x16x8xf32>, vector<4x16x16xf32> -> vector<4x16x16xf32>
    "tpu.trace_stop"() : () -> ()
    %cst_61 = arith.constant dense<0xFF800000> : vector<4x16xf32>
    %156 = vector.multi_reduction <maximumf>, %155, %cst_61 [2] : vector<4x16x16xf32> to vector<4x16xf32>
    %157 = vector.shape_cast %156 : vector<4x16xf32> to vector<4x16x1xf32>
    %158 = vector.broadcast %157 : vector<4x16x1xf32> to vector<4x16x16xf32>
    %159 = arith.subf %155, %158 : vector<4x16x16xf32>
    %160 = math.exp %159 : vector<4x16x16xf32>
    %cst_62 = arith.constant dense<0.000000e+00> : vector<4x16xf32>
    %161 = vector.multi_reduction <add>, %160, %cst_62 [2] : vector<4x16x16xf32> to vector<4x16xf32>
    %162 = vector.shape_cast %161 : vector<4x16xf32> to vector<4x16x1xf32>
    %163 = vector.broadcast %162 : vector<4x16x1xf32> to vector<4x16x16xf32>
    %164 = arith.divf %160, %163 : vector<4x16x16xf32>
    "tpu.trace_start"() <{level = 10 : i32, message = "hqk,hkd->hqd"}> : () -> ()
    %cst_63 = arith.constant dense<0.000000e+00> : vector<4x16x8xf32>
    %165 = tpu.matmul %164, %154, %cst_63 {dimension_numbers = #tpu.dot_dimension_numbers<[2], [1], [1], [2], [0, 0, 0, 1, 1, 2], [0], [0]>} : vector<4x16x16xf32>, vector<4x16x8xf32>, vector<4x16x8xf32> -> vector<4x16x8xf32>
    "tpu.trace_stop"() : () -> ()
    %166 = tpu.transpose %165, [1, 0, 2] : vector<4x16x8xf32> -> vector<16x4x8xf32>
    %167 = vector.shape_cast %166 : vector<16x4x8xf32> to vector<16x32xf32>
    %c1_64 = arith.constant 1 : index
    %c0_65 = arith.constant 0 : index
    %c0_66 = arith.constant 0 : index
    %168 = vector.load %arg4[%c1_64, %c0_65, %c0_66] : memref<2x32x32xf32, #tpu.memory_space<vmem>>, vector<1x32x32xf32>
    %169 = vector.shape_cast %168 : vector<1x32x32xf32> to vector<32x32xf32>
    %cst_67 = arith.constant dense<0.000000e+00> : vector<16x32xf32>
    %170 = tpu.matmul %167, %169, %cst_67 {dimension_numbers = #tpu.dot_dimension_numbers<[1], [0], [0], [1], [0, 0, 1, 1], [], []>} : vector<16x32xf32>, vector<32x32xf32>, vector<16x32xf32> -> vector<16x32xf32>
    %171 = vector.shape_cast %125 : vector<32xf32> to vector<1x32xf32>
    %172 = vector.broadcast %171 : vector<1x32xf32> to vector<16x32xf32>
    %173 = arith.addf %170, %172 : vector<16x32xf32>
    %174 = arith.addf %123, %173 : vector<16x32xf32>
    %cst_68 = arith.constant dense<0.000000e+00> : vector<16xf32>
    %175 = vector.multi_reduction <add>, %174, %cst_68 [1] : vector<16x32xf32> to vector<16xf32>
    %176 = vector.shape_cast %175 : vector<16xf32> to vector<16x1xf32>
    %cst_69 = arith.constant 3.200000e+01 : f32
    %177 = vector.broadcast %cst_69 : f32 to vector<16x1xf32>
    %178 = arith.divf %176, %177 : vector<16x1xf32>
    %179 = vector.broadcast %178 : vector<16x1xf32> to vector<16x32xf32>
    %180 = arith.subf %174, %179 : vector<16x32xf32>
    %181 = arith.mulf %180, %180 : vector<16x32xf32>
    %cst_70 = arith.constant dense<0.000000e+00> : vector<16xf32>
    %182 = vector.multi_reduction <add>, %181, %cst_70 [1] : vector<16x32xf32> to vector<16xf32>
    %183 = vector.shape_cast %182 : vector<16xf32> to vector<16x1xf32>
    %cst_71 = arith.constant 3.200000e+01 : f32
    %184 = vector.broadcast %cst_71 : f32 to vector<16x1xf32>
    %185 = arith.divf %183, %184 : vector<16x1xf32>
    %186 = vector.broadcast %178 : vector<16x1xf32> to vector<16x32xf32>
    %187 = arith.subf %174, %186 : vector<16x32xf32>
    %cst_72 = arith.constant 9.99999974E-6 : f32
    %188 = vector.broadcast %cst_72 : f32 to vector<16x1xf32>
    %189 = arith.addf %185, %188 : vector<16x1xf32>
    %190 = math.rsqrt %189 : vector<16x1xf32>
    %191 = vector.broadcast %190 : vector<16x1xf32> to vector<16x32xf32>
    %192 = arith.mulf %187, %191 : vector<16x32xf32>
    %193 = vector.shape_cast %127 : vector<32xf32> to vector<1x32xf32>
    %194 = vector.broadcast %193 : vector<1x32xf32> to vector<16x32xf32>
    %195 = arith.mulf %192, %194 : vector<16x32xf32>
    %196 = vector.shape_cast %129 : vector<32xf32> to vector<1x32xf32>
    %197 = vector.broadcast %196 : vector<1x32xf32> to vector<16x32xf32>
    %198 = arith.addf %195, %197 : vector<16x32xf32>
    %c1_73 = arith.constant 1 : index
    %c0_74 = arith.constant 0 : index
    %c0_75 = arith.constant 0 : index
    %199 = vector.load %arg5[%c1_73, %c0_74, %c0_75] : memref<2x32x64xf32, #tpu.memory_space<vmem>>, vector<1x32x64xf32>
    %200 = vector.shape_cast %199 : vector<1x32x64xf32> to vector<32x64xf32>
    %cst_76 = arith.constant dense<0.000000e+00> : vector<16x64xf32>
    %201 = tpu.matmul %198, %200, %cst_76 {dimension_numbers = #tpu.dot_dimension_numbers<[1], [0], [0], [1], [0, 0, 1, 1], [], []>} : vector<16x32xf32>, vector<32x64xf32>, vector<16x64xf32> -> vector<16x64xf32>
    %c1_77 = arith.constant 1 : index
    %c0_78 = arith.constant 0 : index
    %202 = vector.load %arg6[%c1_77, %c0_78] : memref<2x64xf32, #tpu.memory_space<vmem>>, vector<1x64xf32>
    %203 = vector.shape_cast %202 : vector<1x64xf32> to vector<64xf32>
    %204 = vector.shape_cast %203 : vector<64xf32> to vector<1x64xf32>
    %205 = vector.broadcast %204 : vector<1x64xf32> to vector<16x64xf32>
    %206 = arith.addf %201, %205 : vector<16x64xf32>
    %cst_79 = arith.constant 0.000000e+00 : f32
    %207 = vector.broadcast %cst_79 : f32 to vector<16x64xf32>
    %208 = arith.maximumf %206, %207 : vector<16x64xf32>
    %c1_80 = arith.constant 1 : index
    %c0_81 = arith.constant 0 : index
    %c0_82 = arith.constant 0 : index
    %209 = vector.load %arg7[%c1_80, %c0_81, %c0_82] : memref<2x64x32xf32, #tpu.memory_space<vmem>>, vector<1x64x32xf32>
    %210 = vector.shape_cast %209 : vector<1x64x32xf32> to vector<64x32xf32>
    %cst_83 = arith.constant dense<0.000000e+00> : vector<16x32xf32>
    %211 = tpu.matmul %208, %210, %cst_83 {dimension_numbers = #tpu.dot_dimension_numbers<[1], [0], [0], [1], [0, 0, 1, 1], [], []>} : vector<16x64xf32>, vector<64x32xf32>, vector<16x32xf32> -> vector<16x32xf32>
    %212 = vector.shape_cast %131 : vector<32xf32> to vector<1x32xf32>
    %213 = vector.broadcast %212 : vector<1x32xf32> to vector<16x32xf32>
    %214 = arith.addf %211, %213 : vector<16x32xf32>
    %215 = arith.addf %198, %214 : vector<16x32xf32>
    %cst_84 = arith.constant dense<0.000000e+00> : vector<16xf32>
    %216 = vector.multi_reduction <add>, %215, %cst_84 [1] : vector<16x32xf32> to vector<16xf32>
    %217 = vector.shape_cast %216 : vector<16xf32> to vector<16x1xf32>
    %cst_85 = arith.constant 3.200000e+01 : f32
    %218 = vector.broadcast %cst_85 : f32 to vector<16x1xf32>
    %219 = arith.divf %217, %218 : vector<16x1xf32>
    %220 = vector.broadcast %219 : vector<16x1xf32> to vector<16x32xf32>
    %221 = arith.subf %215, %220 : vector<16x32xf32>
    %222 = arith.mulf %221, %221 : vector<16x32xf32>
    %cst_86 = arith.constant dense<0.000000e+00> : vector<16xf32>
    %223 = vector.multi_reduction <add>, %222, %cst_86 [1] : vector<16x32xf32> to vector<16xf32>
    %224 = vector.shape_cast %223 : vector<16xf32> to vector<16x1xf32>
    %cst_87 = arith.constant 3.200000e+01 : f32
    %225 = vector.broadcast %cst_87 : f32 to vector<16x1xf32>
    %226 = arith.divf %224, %225 : vector<16x1xf32>
    %227 = vector.broadcast %219 : vector<16x1xf32> to vector<16x32xf32>
    %228 = arith.subf %215, %227 : vector<16x32xf32>
    %cst_88 = arith.constant 9.99999974E-6 : f32
    %229 = vector.broadcast %cst_88 : f32 to vector<16x1xf32>
    %230 = arith.addf %226, %229 : vector<16x1xf32>
    %231 = math.rsqrt %230 : vector<16x1xf32>
    %232 = vector.broadcast %231 : vector<16x1xf32> to vector<16x32xf32>
    %233 = arith.mulf %228, %232 : vector<16x32xf32>
    %234 = vector.shape_cast %133 : vector<32xf32> to vector<1x32xf32>
    %235 = vector.broadcast %234 : vector<1x32xf32> to vector<16x32xf32>
    %236 = arith.mulf %233, %235 : vector<16x32xf32>
    %237 = vector.shape_cast %135 : vector<32xf32> to vector<1x32xf32>
    %238 = vector.broadcast %237 : vector<1x32xf32> to vector<16x32xf32>
    %239 = arith.addf %236, %238 : vector<16x32xf32>
    %c13 = arith.constant 13 : index
    %c0_89 = arith.constant 0 : index
    %240 = vector.load %arg8[%c13, %c0_89] : memref<14x32xf32, #tpu.memory_space<vmem>>, vector<1x32xf32>
    %241 = vector.shape_cast %240 : vector<1x32xf32> to vector<32xf32>
    %c0_90 = arith.constant 0 : index
    %c0_91 = arith.constant 0 : index
    %242 = vector.load %arg9[%c0_90, %c0_91] : memref<32x64xf32, #tpu.memory_space<vmem>>, vector<32x64xf32>
    %cst_92 = arith.constant dense<0.000000e+00> : vector<16x64xf32>
    %243 = tpu.matmul %239, %242, %cst_92 {dimension_numbers = #tpu.dot_dimension_numbers<[1], [0], [0], [1], [0, 0, 1, 1], [], []>} : vector<16x32xf32>, vector<32x64xf32>, vector<16x64xf32> -> vector<16x64xf32>
    %c0_93 = arith.constant 0 : index
    %c0_94 = arith.constant 0 : index
    %244 = vector.load %arg10[%c0_93, %c0_94] : memref<1x64xf32, #tpu.memory_space<vmem>>, vector<1x64xf32>
    %245 = vector.broadcast %244 : vector<1x64xf32> to vector<16x64xf32>
    %246 = arith.addf %243, %245 : vector<16x64xf32>
    %cst_95 = arith.constant 0.000000e+00 : f32
    %247 = vector.broadcast %cst_95 : f32 to vector<16x64xf32>
    %248 = arith.maximumf %246, %247 : vector<16x64xf32>
    %c0_96 = arith.constant 0 : index
    %c0_97 = arith.constant 0 : index
    %249 = vector.load %arg11[%c0_96, %c0_97] : memref<64x32xf32, #tpu.memory_space<vmem>>, vector<64x32xf32>
    %cst_98 = arith.constant dense<0.000000e+00> : vector<16x32xf32>
    %250 = tpu.matmul %248, %249, %cst_98 {dimension_numbers = #tpu.dot_dimension_numbers<[1], [0], [0], [1], [0, 0, 1, 1], [], []>} : vector<16x64xf32>, vector<64x32xf32>, vector<16x32xf32> -> vector<16x32xf32>
    %251 = vector.shape_cast %241 : vector<32xf32> to vector<1x32xf32>
    %252 = vector.broadcast %251 : vector<1x32xf32> to vector<16x32xf32>
    %253 = arith.addf %250, %252 : vector<16x32xf32>
    %cst_99 = arith.constant 0.000000e+00 : f32
    %254 = vector.broadcast %cst_99 : f32 to vector<16x32xf32>
    %255 = arith.maximumf %253, %254 : vector<16x32xf32>
    %c0_100 = arith.constant 0 : index
    %c0_101 = arith.constant 0 : index
    %256 = vector.load %arg12[%c0_100, %c0_101] : memref<32x128xf32, #tpu.memory_space<vmem>>, vector<32x128xf32>
    %cst_102 = arith.constant dense<0.000000e+00> : vector<16x128xf32>
    %257 = tpu.matmul %255, %256, %cst_102 {dimension_numbers = #tpu.dot_dimension_numbers<[1], [0], [0], [1], [0, 0, 1, 1], [], []>} : vector<16x32xf32>, vector<32x128xf32>, vector<16x128xf32> -> vector<16x128xf32>
    %c0_103 = arith.constant 0 : index
    %c0_104 = arith.constant 0 : index
    %258 = vector.load %arg13[%c0_103, %c0_104] : memref<1x128xf32, #tpu.memory_space<vmem>>, vector<1x128xf32>
    %259 = vector.broadcast %258 : vector<1x128xf32> to vector<16x128xf32>
    %260 = arith.addf %257, %259 : vector<16x128xf32>
    %c0_105 = arith.constant 0 : index
    %c0_106 = arith.constant 0 : index
    %261 = vector.load %arg14[%c0_105, %c0_106] : memref<16x128xf32, #tpu.memory_space<vmem>>, vector<16x128xf32>
    tpu.vector_store %arg14[%c0_105, %c0_106], %260 {strides = array<i32>} : memref<16x128xf32, #tpu.memory_space<vmem>>, vector<16x128xf32>,
    return
  }
}

</mosaic_0001>

<llo_original>
// kernel: tpu_custom_call.1
$region0: #{tpu_custom_call.1}
  #allocation0 [shape = 'u32[]', space=smem, size = 0x4, offset = 0x4, fixed_abs, tag = 'smem constant byte address 0x4 - core index']
  #allocation1 [shape = 'u32[144,128]{1,0:T(1,128)}', space=vmem, size = 0x12000, scoped, tag = 'internal scratch']
  %s0 = inlined_call_operand.hbm [shape: f32[16,16], index: 0, kind: input, shape index: {}]
  %s1 = inlined_call_operand.hbm [shape: f32[16,32], index: 1, kind: input, shape index: {}]
  %s2 = inlined_call_operand.vmem [shape: f32[2,32,96], index: 2, kind: input, shape index: {}]
  %s3 = inlined_call_operand.vmem [shape: f32[2,96], index: 3, kind: input, shape index: {}]
  %s4 = inlined_call_operand.vmem [shape: f32[2,32,32], index: 4, kind: input, shape index: {}]
  %s5 = inlined_call_operand.vmem [shape: f32[2,32,64], index: 5, kind: input, shape index: {}]
  %s6 = inlined_call_operand.vmem [shape: f32[2,64], index: 6, kind: input, shape index: {}]
  %s7 = inlined_call_operand.vmem [shape: f32[2,64,32], index: 7, kind: input, shape index: {}]
  %s8 = inlined_call_operand.hbm [shape: f32[14,32], index: 8, kind: input, shape index: {}]
  %s9 = inlined_call_operand.vmem [shape: f32[32,64], index: 9, kind: input, shape index: {}]
  %s10 = inlined_call_operand.vmem [shape: f32[1,64], index: 10, kind: input, shape index: {}]
  %s11 = inlined_call_operand.vmem [shape: f32[64,32], index: 11, kind: input, shape index: {}]
  %s12 = inlined_call_operand.hbm [shape: f32[32,128], index: 12, kind: input, shape index: {}]
  %s13 = inlined_call_operand.vmem [shape: f32[1,128], index: 13, kind: input, shape index: {}]
  %s14 = inlined_call_operand.hbm [shape: f32[16,128], index: 14, kind: output, shape index: {}]
  %s15 = sld [smem:[#allocation0]]
  $region82: #{tpu_custom_call.1} parent=0
    _
  %s17 = ssub.s32 1, %s15
  %s18 = scalar_select 0, %s17, %s15
  $region1: #{tpu_custom_call.1} parent=0
    #allocation2 [shape = 'u8[8192]{0}', space=vmem, size = 0x2000, scoped, tag = 'input window, operand 0, single buffered']
    #allocation3 [shape = 's32[1]{0}', space=sflag, size = 0x4, scoped, tag = 'scoped memory for tpu_custom_call.1']
    #allocation4 [shape = 's32[1]{0}', space=sflag, size = 0x4, scoped, tag = 'scoped memory for tpu_custom_call.1']
    #allocation5 [shape = 'u8[8192]{0}', space=vmem, size = 0x2000, scoped, tag = 'input window, operand 1, single buffered']
    #allocation6 [shape = 's32[1]{0}', space=sflag, size = 0x4, scoped, tag = 'scoped memory for tpu_custom_call.1']
    #allocation7 [shape = 'u8[8192]{0}', space=vmem, size = 0x2000, scoped, tag = 'input window, operand 8, single buffered']
    #allocation8 [shape = 'u8[16384]{0}', space=vmem, size = 0x4000, scoped, tag = 'input window, operand 12, single buffered']
    #allocation9 [shape = 's32[1]{0}', space=sflag, size = 0x4, scoped, tag = 'scoped memory for tpu_custom_call.1']
    #allocation10 [shape = 'u8[8192]{0}', space=vmem, size = 0x2000, scoped, tag = 'output window, operand 0, single buffered']
    %19 = vsyncpa [#allocation3], 0
    %20 = vsyncpa [#allocation6], 0
    %21 = vsyncpa [#allocation9], 0
    %22 = vsyncpa [#allocation4], 0
    // Predicated region
    $region2: #{tpu_custom_call.1} parent=1 // pred_check
      _
    $region3: #{tpu_custom_call.1} parent=1 // pred_check_branch
      %24 = sbr.rel (0) target = $region5
    $region4: #{tpu_custom_call.1} parent=1 // pred_region
      %s26 = ssub.s32 256, 256
      %27 = vsyncadd [#allocation3], %s26
      %s28 = sshll.u32 [#allocation2], 4
      %s29 = int_to_ptr.vmem [resolvable:$true] %s28
      %34 = dma.hbm_to_vmem [thread:$0]  %s0, 256, %s29, [#allocation3], 128, 128, 8
    $region5: #{tpu_custom_call.1} parent=1 // pred_fallthru
      _
    // Predicated region
    $region6: #{tpu_custom_call.1} parent=1 // pred_check
      _
    $region7: #{tpu_custom_call.1} parent=1 // pred_check_branch
      %36 = sbr.rel (0) target = $region9
    $region8: #{tpu_custom_call.1} parent=1 // pred_region
      %s38 = ssub.s32 256, 256
      %39 = vsyncadd [#allocation6], %s38
      %s40 = sshll.u32 [#allocation5], 4
      %s41 = int_to_ptr.vmem [resolvable:$true] %s40
      %46 = dma.hbm_to_vmem [thread:$0]  %s1, 256, %s41, [#allocation6], 128, 128, 8
    $region9: #{tpu_custom_call.1} parent=1 // pred_fallthru
      _
    // Predicated region
    $region10: #{tpu_custom_call.1} parent=1 // pred_check
      _
    $region11: #{tpu_custom_call.1} parent=1 // pred_check_branch
      %48 = sbr.rel (0) target = $region13
    $region12: #{tpu_custom_call.1} parent=1 // pred_region
      _
    $region13: #{tpu_custom_call.1} parent=1 // pred_fallthru
      _
    // Predicated region
    $region14: #{tpu_custom_call.1} parent=1 // pred_check
      _
    $region15: #{tpu_custom_call.1} parent=1 // pred_check_branch
      %50 = sbr.rel (0) target = $region17
    $region16: #{tpu_custom_call.1} parent=1 // pred_region
      _
    $region17: #{tpu_custom_call.1} parent=1 // pred_fallthru
      _
    // Predicated region
    $region18: #{tpu_custom_call.1} parent=1 // pred_check
      _
    $region19: #{tpu_custom_call.1} parent=1 // pred_check_branch
      %52 = sbr.rel (0) target = $region21
    $region20: #{tpu_custom_call.1} parent=1 // pred_region
      _
    $region21: #{tpu_custom_call.1} parent=1 // pred_fallthru
      _
    // Predicated region
    $region22: #{tpu_custom_call.1} parent=1 // pred_check
      _
    $region23: #{tpu_custom_call.1} parent=1 // pred_check_branch
      %54 = sbr.rel (0) target = $region25
    $region24: #{tpu_custom_call.1} parent=1 // pred_region
      _
    $region25: #{tpu_custom_call.1} parent=1 // pred_fallthru
      _
    // Predicated region
    $region26: #{tpu_custom_call.1} parent=1 // pred_check
      _
    $region27: #{tpu_custom_call.1} parent=1 // pred_check_branch
      %56 = sbr.rel (0) target = $region29
    $region28: #{tpu_custom_call.1} parent=1 // pred_region
      _
    $region29: #{tpu_custom_call.1} parent=1 // pred_fallthru
      _
    // Predicated region
    $region30: #{tpu_custom_call.1} parent=1 // pred_check
      _
    $region31: #{tpu_custom_call.1} parent=1 // pred_check_branch
      %58 = sbr.rel (0) target = $region33
    $region32: #{tpu_custom_call.1} parent=1 // pred_region
      _
    $region33: #{tpu_custom_call.1} parent=1 // pred_fallthru
      _
    // Predicated region
    $region34: #{tpu_custom_call.1} parent=1 // pred_check
      _
    $region35: #{tpu_custom_call.1} parent=1 // pred_check_branch
      %60 = sbr.rel (0) target = $region37
    $region36: #{tpu_custom_call.1} parent=1 // pred_region
      %s62 = ssub.s32 256, 256
      %63 = vsyncadd [#allocation6], %s62
      %s64 = sshll.u32 [#allocation7], 4
      %s65 = int_to_ptr.vmem [resolvable:$true] %s64
      %70 = dma.hbm_to_vmem [thread:$0]  %s8, 256, %s65, [#allocation6], 128, 128, 8
    $region37: #{tpu_custom_call.1} parent=1 // pred_fallthru
      _
    // Predicated region
    $region38: #{tpu_custom_call.1} parent=1 // pred_check
      _
    $region39: #{tpu_custom_call.1} parent=1 // pred_check_branch
      %72 = sbr.rel (0) target = $region41
    $region40: #{tpu_custom_call.1} parent=1 // pred_region
      _
    $region41: #{tpu_custom_call.1} parent=1 // pred_fallthru
      _
    // Predicated region
    $region42: #{tpu_custom_call.1} parent=1 // pred_check
      _
    $region43: #{tpu_custom_call.1} parent=1 // pred_check_branch
      %74 = sbr.rel (0) target = $region45
    $region44: #{tpu_custom_call.1} parent=1 // pred_region
      _
    $region45: #{tpu_custom_call.1} parent=1 // pred_fallthru
      _
    // Predicated region
    $region46: #{tpu_custom_call.1} parent=1 // pred_check
      _
    $region47: #{tpu_custom_call.1} parent=1 // pred_check_branch
      %76 = sbr.rel (0) target = $region49
    $region48: #{tpu_custom_call.1} parent=1 // pred_region
      _
    $region49: #{tpu_custom_call.1} parent=1 // pred_fallthru
      _
    // Predicated region
    $region50: #{tpu_custom_call.1} parent=1 // pred_check
      _
    $region51: #{tpu_custom_call.1} parent=1 // pred_check_branch
      %78 = sbr.rel (0) target = $region53
    $region52: #{tpu_custom_call.1} parent=1 // pred_region
      %s80 = ssub.s32 512, 512
      %81 = vsyncadd [#allocation9], %s80
      %s82 = sshll.u32 [#allocation8], 4
      %s83 = int_to_ptr.vmem [resolvable:$true] %s82
      %88 = dma.hbm_to_vmem [thread:$0]  %s12, 512, %s83, [#allocation9], 128, 128, 8
    $region53: #{tpu_custom_call.1} parent=1 // pred_fallthru
      _
    // Predicated region
    $region54: #{tpu_custom_call.1} parent=1 // pred_check
      _
    $region55: #{tpu_custom_call.1} parent=1 // pred_check_branch
      %90 = sbr.rel (0) target = $region57
    $region56: #{tpu_custom_call.1} parent=1 // pred_region
      _
    $region57: #{tpu_custom_call.1} parent=1 // pred_fallthru
      _
    // Predicated region
    $region58: #{tpu_custom_call.1} parent=1 // pred_check
      _
    $region59: #{tpu_custom_call.1} parent=1 // pred_check_branch
      %92 = sbr.rel (0) target = $region61
    $region60: #{tpu_custom_call.1} parent=1 // pred_region
      %93 = dma.done [#allocation3], 256
    $region61: #{tpu_custom_call.1} parent=1 // pred_fallthru
      _
    // Predicated region
    $region62: #{tpu_custom_call.1} parent=1 // pred_check
      _
    $region63: #{tpu_custom_call.1} parent=1 // pred_check_branch
      %95 = sbr.rel (0) target = $region65
    $region64: #{tpu_custom_call.1} parent=1 // pred_region
      %96 = dma.done [#allocation6], 256
    $region65: #{tpu_custom_call.1} parent=1 // pred_fallthru
      _
    // Predicated region
    $region66: #{tpu_custom_call.1} parent=1 // pred_check
      _
    $region67: #{tpu_custom_call.1} parent=1 // pred_check_branch
      %98 = sbr.rel (0) target = $region69
    $region68: #{tpu_custom_call.1} parent=1 // pred_region
      %99 = dma.done [#allocation6], 256
    $region69: #{tpu_custom_call.1} parent=1 // pred_fallthru
      _
    // Predicated region
    $region70: #{tpu_custom_call.1} parent=1 // pred_check
      _
    $region71: #{tpu_custom_call.1} parent=1 // pred_check_branch
      %101 = sbr.rel (0) target = $region73
    $region72: #{tpu_custom_call.1} parent=1 // pred_region
      %102 = dma.done [#allocation9], 512
    $region73: #{tpu_custom_call.1} parent=1 // pred_fallthru
      _
    %v103 = vld [vmem:[#allocation2] sm:$0xff]
    %v104 = vld [vmem:[#allocation2 + $0x8] sm:$0xff]
    %v105 = vld [vmem:[#allocation5] sm:$0xff]
    %v106 = vld [vmem:[#allocation5 + $0x8] sm:$0xff]
    %v107 = vld [vmem:[#allocation7] sm:$0x1]
    %v108 = vlaneseq
    %v109 = vshrl.u32 %v108, 7
    %v110 = vsub.s32 0, %v109
    %v111 = vrot.slane %v107, %v110
    %vm112 = vcmask 130048
    %v114 = vsel %vm112, %v103, 0
    %v117 = vsel %vm112, %v104, 0
    %119 = vmatprep.subr.mxu0 0.0
    %120 = vmatpush1.msra.mxu0 0.0
    %121 = vmatprep.subr.mxu0 0.0
    %122 = vmatpush1.msra.mxu0 0.0
    %123 = vmatprep.subr.mxu0 0.0
    %124 = vmatpush1.msra.mxu0 0.0
    %125 = vmatprep.subr.mxu0 0.0
    %126 = vmatpush1.msra.mxu0 0.0
    %127 = vmatprep.subr.mxu0 0.0
    %128 = vmatpush1.msra.mxu0 0.0
    %129 = vmatprep.subr.mxu0 0.0
    %130 = vmatpush1.msra.mxu0 0.0
    %131 = vmatprep.subr.mxu0 0.0
    %132 = vmatpush1.msra.mxu0 0.0
    %133 = vmatprep.subr.mxu0 0.0
    %134 = vmatpush1.msra.mxu0 0.0
    %135 = vmatprep.subr.mxu0 0.0
    %136 = vmatpush1.msra.mxu0 0.0
    %137 = vmatprep.subr.mxu0 0.0
    %138 = vmatpush1.msra.mxu0 0.0
    %139 = vmatprep.subr.mxu0 0.0
    %140 = vmatpush1.msra.mxu0 0.0
    %141 = vmatprep.subr.mxu0 0.0
    %142 = vmatpush1.msra.mxu0 0.0
    %143 = vmatprep.subr.mxu0 0.0
    %144 = vmatpush1.msra.mxu0 0.0
    %145 = vmatprep.subr.mxu0 0.0
    %146 = vmatpush1.msra.mxu0 0.0
    %147 = vmatprep.subr.mxu0 0.0
    %148 = vmatpush1.msra.mxu0 %v106
    %149 = vmatprep.subr.mxu0 0.0
    %150 = vmatpush1.msra.mxu0 %v105
    %151 = vmatprep.subr.mxu0 0.0
    %152 = vmatpush2.msra.mxu0 0.0
    %153 = vmatprep.subr.mxu0 0.0
    %154 = vmatpush2.msra.mxu0 0.0
    %155 = vmatprep.subr.mxu0 0.0
    %156 = vmatpush2.msra.mxu0 0.0
    %157 = vmatprep.subr.mxu0 0.0
    %158 = vmatpush2.msra.mxu0 0.0
    %159 = vmatprep.subr.mxu0 0.0
    %160 = vmatpush2.msra.mxu0 0.0
    %161 = vmatprep.subr.mxu0 0.0
    %162 = vmatpush2.msra.mxu0 0.0
    %163 = vmatprep.subr.mxu0 0.0
    %164 = vmatpush2.msra.mxu0 0.0
    %165 = vmatprep.subr.mxu0 0.0
    %166 = vmatpush2.msra.mxu0 0.0
    %167 = vmatprep.subr.mxu0 0.0
    %168 = vmatpush2.msra.mxu0 0.0
    %169 = vmatprep.subr.mxu0 0.0
    %170 = vmatpush2.msra.mxu0 0.0
    %171 = vmatprep.subr.mxu0 0.0
    %172 = vmatpush2.msra.mxu0 0.0
    %173 = vmatprep.subr.mxu0 0.0
    %174 = vmatpush2.msra.mxu0 0.0
    %175 = vmatprep.subr.mxu0 0.0
    %176 = vmatpush2.msra.mxu0 0.0
    %177 = vmatprep.subr.mxu0 0.0
    %178 = vmatpush2.msra.mxu0 0.0
    %179 = vmatprep.subr.mxu0 0.0
    %180 = vmatpush2.msra.mxu0 0.0
    %181 = vmatprep.subr.mxu0 0.0
    %182 = vmatpush2.msra.mxu0 0.0
    %183 = vmatprep.mubr.f32.mxu0 0.0
    %184 = vmatmul.mubr.f32.gmra.mxu0 %v114
    %v185 = vpop.f32.mrf.mxu0
    %v186 = vadd.f32 %v111, %v185
    %v187 = vpop.f32.mrf.mxu0
    %188 = vmatprep.mubr.f32.mxu0 0.0
    %189 = vmatmul.mubr.f32.gmra.mxu0 %v117
    %v190 = vpop.f32.mrf.mxu0
    %v191 = vadd.f32 %v111, %v190
    %v192 = vpop.f32.mrf.mxu0
    %193 = vdwg.mxu0
    %v194 = vld [vmem:[#allocation7 + $0x1] sm:$0x1]
    %v195 = vld [vmem:[#allocation7 + $0x2] sm:$0x1]
    %v196 = vld [vmem:[#allocation7 + $0x3] sm:$0x1]
    %v197 = vld [vmem:[#allocation7 + $0x4] sm:$0x1]
    %v198 = vld [vmem:[#allocation7 + $0x5] sm:$0x1]
    %v199 = vld [vmem:[#allocation7 + $0x6] sm:$0x1]
    %v200 = vld [vmem:[%s2] sm:$0xff]
    %v201 = vld [vmem:[%s2 + $0x8] sm:$0xff]
    %v202 = vld [vmem:[%s2 + $0x10] sm:$0xff]
    %v203 = vld [vmem:[%s2 + $0x18] sm:$0xff]
    %v204 = vld [vmem:[%s3] sm:$0x1]
    %v205 = vlaneseq
    %v206 = vshrl.u32 %v205, 7
    %v207 = vsub.s32 0, %v206
    %v208 = vrot.slane %v204, %v207
    %vm209 = vcmask 261120
    %v211 = vsel %vm209, %v186, 0
    %v214 = vsel %vm209, %v191, 0
    %216 = vmatprep.subr.mxu0 0.0
    %217 = vmatpush1.msra.mxu0 0.0
    %218 = vmatprep.subr.mxu0 0.0
    %219 = vmatpush1.msra.mxu0 0.0
    %220 = vmatprep.subr.mxu0 0.0
    %221 = vmatpush1.msra.mxu0 0.0
    %222 = vmatprep.subr.mxu0 0.0
    %223 = vmatpush1.msra.mxu0 0.0
    %224 = vmatprep.subr.mxu0 0.0
    %225 = vmatpush1.msra.mxu0 0.0
    %226 = vmatprep.subr.mxu0 0.0
    %227 = vmatpush1.msra.mxu0 0.0
    %228 = vmatprep.subr.mxu0 0.0
    %229 = vmatpush1.msra.mxu0 0.0
    %230 = vmatprep.subr.mxu0 0.0
    %231 = vmatpush1.msra.mxu0 0.0
    %232 = vmatprep.subr.mxu0 0.0
    %233 = vmatpush1.msra.mxu0 0.0
    %234 = vmatprep.subr.mxu0 0.0
    %235 = vmatpush1.msra.mxu0 0.0
    %236 = vmatprep.subr.mxu0 0.0
    %237 = vmatpush1.msra.mxu0 0.0
    %238 = vmatprep.subr.mxu0 0.0
    %239 = vmatpush1.msra.mxu0 0.0
    %240 = vmatprep.subr.mxu0 0.0
    %241 = vmatpush1.msra.mxu0 %v203
    %242 = vmatprep.subr.mxu0 0.0
    %243 = vmatpush1.msra.mxu0 %v202
    %244 = vmatprep.subr.mxu0 0.0
    %245 = vmatpush1.msra.mxu0 %v201
    %246 = vmatprep.subr.mxu0 0.0
    %247 = vmatpush1.msra.mxu0 %v200
    %248 = vmatprep.subr.mxu0 0.0
    %249 = vmatpush2.msra.mxu0 0.0
    %250 = vmatprep.subr.mxu0 0.0
    %251 = vmatpush2.msra.mxu0 0.0
    %252 = vmatprep.subr.mxu0 0.0
    %253 = vmatpush2.msra.mxu0 0.0
    %254 = vmatprep.subr.mxu0 0.0
    %255 = vmatpush2.msra.mxu0 0.0
    %256 = vmatprep.subr.mxu0 0.0
    %257 = vmatpush2.msra.mxu0 0.0
    %258 = vmatprep.subr.mxu0 0.0
    %259 = vmatpush2.msra.mxu0 0.0
    %260 = vmatprep.subr.mxu0 0.0
    %261 = vmatpush2.msra.mxu0 0.0
    %262 = vmatprep.subr.mxu0 0.0
    %263 = vmatpush2.msra.mxu0 0.0
    %264 = vmatprep.subr.mxu0 0.0
    %265 = vmatpush2.msra.mxu0 0.0
    %266 = vmatprep.subr.mxu0 0.0
    %267 = vmatpush2.msra.mxu0 0.0
    %268 = vmatprep.subr.mxu0 0.0
    %269 = vmatpush2.msra.mxu0 0.0
    %270 = vmatprep.subr.mxu0 0.0
    %271 = vmatpush2.msra.mxu0 0.0
    %272 = vmatprep.subr.mxu0 0.0
    %273 = vmatpush2.msra.mxu0 0.0
    %274 = vmatprep.subr.mxu0 0.0
    %275 = vmatpush2.msra.mxu0 0.0
    %276 = vmatprep.subr.mxu0 0.0
    %277 = vmatpush2.msra.mxu0 0.0
    %278 = vmatprep.subr.mxu0 0.0
    %279 = vmatpush2.msra.mxu0 0.0
    %280 = vmatprep.mubr.f32.mxu0 0.0
    %281 = vmatmul.mubr.f32.gmra.mxu0 %v211
    %v282 = vpop.f32.mrf.mxu0
    %v283 = vadd.f32 %v208, %v282
    %v284 = vpop.f32.mrf.mxu0
    %285 = vmatprep.mubr.f32.mxu0 0.0
    %286 = vmatmul.mubr.f32.gmra.mxu0 %v214
    %v287 = vpop.f32.mrf.mxu0
    %v288 = vadd.f32 %v208, %v287
    %v289 = vpop.f32.mrf.mxu0
    %290 = vdwg.mxu0
    %v291 = vmul.f32 %v283, 0.35355338
    %v292 = vmul.f32 %v288, 0.35355338
    %295 = vrot.lane.b32.xlu0 %v291, 120
    %v296 = vpop.permute.xlu0 %295
    %297 = vrot.lane.b32.xlu0 %v292, 120
    %v298 = vpop.permute.xlu0 %297
    %301 = vrot.lane.b32.xlu0 %v291, 112
    %v302 = vpop.permute.xlu0 %301
    %303 = vrot.lane.b32.xlu0 %v292, 112
    %v304 = vpop.permute.xlu0 %303
    %307 = vrot.lane.b32.xlu0 %v291, 104
    %v308 = vpop.permute.xlu0 %307
    %309 = vrot.lane.b32.xlu0 %v292, 104
    %v310 = vpop.permute.xlu0 %309
    %v313 = vcombine.low %v291, %v302
    %v314 = vcombine.high %v291, %v302
    %v316 = vunpack.c.l.s4 1983009808
    %v317 = vunpack.c.0.s8 %v316
    %v318 = vlaneseq
    %v319 = vshrl.u32 %v318, 7
    %v320 = vsub.s32 %v317, %v319
    %v321 = vrot.slane %v313, %v320
    %v323 = vunpack.c.l.s4 1983009808
    %v324 = vunpack.c.0.s8 %v323
    %v325 = vlaneseq
    %v326 = vshrl.u32 %v325, 7
    %v327 = vsub.s32 %v324, %v326
    %v328 = vrot.slane %v314, %v327
    %v329 = vcombine.low %v296, %v308
    %v330 = vcombine.high %v296, %v308
    %v332 = vunpack.c.l.s4 1983009808
    %v333 = vunpack.c.0.s8 %v332
    %v334 = vlaneseq
    %v335 = vshrl.u32 %v334, 7
    %v336 = vsub.s32 %v333, %v335
    %v337 = vrot.slane %v329, %v336
    %v339 = vunpack.c.l.s4 1983009808
    %v340 = vunpack.c.0.s8 %v339
    %v341 = vlaneseq
    %v342 = vshrl.u32 %v341, 7
    %v343 = vsub.s32 %v340, %v342
    %v344 = vrot.slane %v330, %v343
    %v345 = vcombine.low %v321, %v337
    %v346 = vcombine.high %v321, %v337
    %v348 = vunpack.c.l.s4 1934713408
    %v349 = vunpack.c.0.s8 %v348
    %v350 = vlaneseq
    %v351 = vshrl.u32 %v350, 7
    %v352 = vsub.s32 %v349, %v351
    %v353 = vrot.slane %v345, %v352
    %v355 = vunpack.c.l.s4 1934713408
    %v356 = vunpack.c.0.s8 %v355
    %v357 = vlaneseq
    %v358 = vshrl.u32 %v357, 7
    %v359 = vsub.s32 %v356, %v358
    %v360 = vrot.slane %v346, %v359
    %v361 = vcombine.low %v328, %v344
    %v362 = vcombine.high %v328, %v344
    %v364 = vunpack.c.l.s4 1934713408
    %v365 = vunpack.c.0.s8 %v364
    %v366 = vlaneseq
    %v367 = vshrl.u32 %v366, 7
    %v368 = vsub.s32 %v365, %v367
    %v369 = vrot.slane %v361, %v368
    %v371 = vunpack.c.l.s4 1934713408
    %v372 = vunpack.c.0.s8 %v371
    %v373 = vlaneseq
    %v374 = vshrl.u32 %v373, 7
    %v375 = vsub.s32 %v372, %v374
    %v376 = vrot.slane %v362, %v375
    %v377 = vcombine.high %v353, 0.0
    %v378 = vcombine.high %v360, 0.0
    %v379 = vcombine.high %v369, 0.0
    %v380 = vcombine.high %v376, 0.0
    %v381 = vcombine.low %v292, %v304
    %v382 = vcombine.high %v292, %v304
    %v384 = vunpack.c.l.s4 1983009808
    %v385 = vunpack.c.0.s8 %v384
    %v386 = vlaneseq
    %v387 = vshrl.u32 %v386, 7
    %v388 = vsub.s32 %v385, %v387
    %v389 = vrot.slane %v381, %v388
    %v391 = vunpack.c.l.s4 1983009808
    %v392 = vunpack.c.0.s8 %v391
    %v393 = vlaneseq
    %v394 = vshrl.u32 %v393, 7
    %v395 = vsub.s32 %v392, %v394
    %v396 = vrot.slane %v382, %v395
    %v397 = vcombine.low %v298, %v310
    %v398 = vcombine.high %v298, %v310
    %v400 = vunpack.c.l.s4 1983009808
    %v401 = vunpack.c.0.s8 %v400
    %v402 = vlaneseq
    %v403 = vshrl.u32 %v402, 7
    %v404 = vsub.s32 %v401, %v403
    %v405 = vrot.slane %v397, %v404
    %v407 = vunpack.c.l.s4 1983009808
    %v408 = vunpack.c.0.s8 %v407
    %v409 = vlaneseq
    %v410 = vshrl.u32 %v409, 7
    %v411 = vsub.s32 %v408, %v410
    %v412 = vrot.slane %v398, %v411
    %v413 = vcombine.low %v389, %v405
    %v414 = vcombine.high %v389, %v405
    %v416 = vunpack.c.l.s4 1934713408
    %v417 = vunpack.c.0.s8 %v416
    %v418 = vlaneseq
    %v419 = vshrl.u32 %v418, 7
    %v420 = vsub.s32 %v417, %v419
    %v421 = vrot.slane %v413, %v420
    %v423 = vunpack.c.l.s4 1934713408
    %v424 = vunpack.c.0.s8 %v423
    %v425 = vlaneseq
    %v426 = vshrl.u32 %v425, 7
    %v427 = vsub.s32 %v424, %v426
    %v428 = vrot.slane %v414, %v427
    %v429 = vcombine.low %v396, %v412
    %v430 = vcombine.high %v396, %v412
    %v432 = vunpack.c.l.s4 1934713408
    %v433 = vunpack.c.0.s8 %v432
    %v434 = vlaneseq
    %v435 = vshrl.u32 %v434, 7
    %v436 = vsub.s32 %v433, %v435
    %v437 = vrot.slane %v429, %v436
    %v439 = vunpack.c.l.s4 1934713408
    %v440 = vunpack.c.0.s8 %v439
    %v441 = vlaneseq
    %v442 = vshrl.u32 %v441, 7
    %v443 = vsub.s32 %v440, %v442
    %v444 = vrot.slane %v430, %v443
    %v445 = vcombine.high %v421, 0.0
    %v446 = vcombine.high %v428, 0.0
    %v447 = vcombine.high %v437, 0.0
    %v448 = vcombine.high %v444, 0.0
    %v449 = vcombine.low %v353, %v360
    %v451 = vunpack.c.l.s4 1983009808
    %v452 = vunpack.c.0.s8 %v451
    %v453 = vlaneseq
    %v454 = vshrl.u32 %v453, 7
    %v455 = vsub.s32 %v452, %v454
    %v456 = vrot.slane %v449, %v455
    %v457 = vcombine.low %v377, %v378
    %v459 = vunpack.c.l.s4 1983009808
    %v460 = vunpack.c.0.s8 %v459
    %v461 = vlaneseq
    %v462 = vshrl.u32 %v461, 7
    %v463 = vsub.s32 %v460, %v462
    %v464 = vrot.slane %v457, %v463
    %v465 = vcombine.low %v369, %v376
    %v467 = vunpack.c.l.s4 1983009808
    %v468 = vunpack.c.0.s8 %v467
    %v469 = vlaneseq
    %v470 = vshrl.u32 %v469, 7
    %v471 = vsub.s32 %v468, %v470
    %v472 = vrot.slane %v465, %v471
    %v473 = vcombine.low %v379, %v380
    %v475 = vunpack.c.l.s4 1983009808
    %v476 = vunpack.c.0.s8 %v475
    %v477 = vlaneseq
    %v478 = vshrl.u32 %v477, 7
    %v479 = vsub.s32 %v476, %v478
    %v480 = vrot.slane %v473, %v479
    %v481 = vcombine.low %v456, %v464
    %v482 = vcombine.high %v456, %v464
    %v484 = vunpack.c.l.s4 1934713408
    %v485 = vunpack.c.0.s8 %v484
    %v486 = vlaneseq
    %v487 = vshrl.u32 %v486, 7
    %v488 = vsub.s32 %v485, %v487
    %v489 = vrot.slane %v481, %v488
    %v491 = vunpack.c.l.s4 1934713408
    %v492 = vunpack.c.0.s8 %v491
    %v493 = vlaneseq
    %v494 = vshrl.u32 %v493, 7
    %v495 = vsub.s32 %v492, %v494
    %v496 = vrot.slane %v482, %v495
    %v497 = vcombine.low %v472, %v480
    %v498 = vcombine.high %v472, %v480
    %v500 = vunpack.c.l.s4 1934713408
    %v501 = vunpack.c.0.s8 %v500
    %v502 = vlaneseq
    %v503 = vshrl.u32 %v502, 7
    %v504 = vsub.s32 %v501, %v503
    %v505 = vrot.slane %v497, %v504
    %v507 = vunpack.c.l.s4 1934713408
    %v508 = vunpack.c.0.s8 %v507
    %v509 = vlaneseq
    %v510 = vshrl.u32 %v509, 7
    %v511 = vsub.s32 %v508, %v510
    %v512 = vrot.slane %v498, %v511
    %v513 = vcombine.low %v489, %v505
    %v514 = vcombine.high %v489, %v505
    %v515 = vcombine.low %v496, %v512
    %v516 = vcombine.high %v496, %v512
    %v517 = vcombine.low %v421, %v428
    %v519 = vunpack.c.l.s4 1983009808
    %v520 = vunpack.c.0.s8 %v519
    %v521 = vlaneseq
    %v522 = vshrl.u32 %v521, 7
    %v523 = vsub.s32 %v520, %v522
    %v524 = vrot.slane %v517, %v523
    %v525 = vcombine.low %v445, %v446
    %v527 = vunpack.c.l.s4 1983009808
    %v528 = vunpack.c.0.s8 %v527
    %v529 = vlaneseq
    %v530 = vshrl.u32 %v529, 7
    %v531 = vsub.s32 %v528, %v530
    %v532 = vrot.slane %v525, %v531
    %v533 = vcombine.low %v437, %v444
    %v535 = vunpack.c.l.s4 1983009808
    %v536 = vunpack.c.0.s8 %v535
    %v537 = vlaneseq
    %v538 = vshrl.u32 %v537, 7
    %v539 = vsub.s32 %v536, %v538
    %v540 = vrot.slane %v533, %v539
    %v541 = vcombine.low %v447, %v448
    %v543 = vunpack.c.l.s4 1983009808
    %v544 = vunpack.c.0.s8 %v543
    %v545 = vlaneseq
    %v546 = vshrl.u32 %v545, 7
    %v547 = vsub.s32 %v544, %v546
    %v548 = vrot.slane %v541, %v547
    %v549 = vcombine.low %v524, %v532
    %v550 = vcombine.high %v524, %v532
    %v552 = vunpack.c.l.s4 1934713408
    %v553 = vunpack.c.0.s8 %v552
    %v554 = vlaneseq
    %v555 = vshrl.u32 %v554, 7
    %v556 = vsub.s32 %v553, %v555
    %v557 = vrot.slane %v549, %v556
    %v559 = vunpack.c.l.s4 1934713408
    %v560 = vunpack.c.0.s8 %v559
    %v561 = vlaneseq
    %v562 = vshrl.u32 %v561, 7
    %v563 = vsub.s32 %v560, %v562
    %v564 = vrot.slane %v550, %v563
    %v565 = vcombine.low %v540, %v548
    %v566 = vcombine.high %v540, %v548
    %v568 = vunpack.c.l.s4 1934713408
    %v569 = vunpack.c.0.s8 %v568
    %v570 = vlaneseq
    %v571 = vshrl.u32 %v570, 7
    %v572 = vsub.s32 %v569, %v571
    %v573 = vrot.slane %v565, %v572
    %v575 = vunpack.c.l.s4 1934713408
    %v576 = vunpack.c.0.s8 %v575
    %v577 = vlaneseq
    %v578 = vshrl.u32 %v577, 7
    %v579 = vsub.s32 %v576, %v578
    %v580 = vrot.slane %v566, %v579
    %v581 = vcombine.low %v557, %v573
    %v582 = vcombine.high %v557, %v573
    %v583 = vcombine.low %v564, %v580
    %v584 = vcombine.high %v564, %v580
    %587 = vrot.lane.b32.xlu0 %v283, 120
    %v588 = vpop.permute.xlu0 %587
    %589 = vrot.lane.b32.xlu0 %v288, 120
    %v590 = vpop.permute.xlu0 %589
    %591 = vrot.lane.b32.xlu0 %v283, 112
    %v592 = vpop.permute.xlu0 %591
    %593 = vrot.lane.b32.xlu0 %v288, 112
    %v594 = vpop.permute.xlu0 %593
    %595 = vrot.lane.b32.xlu0 %v283, 104
    %v596 = vpop.permute.xlu0 %595
    %597 = vrot.lane.b32.xlu0 %v288, 104
    %v598 = vpop.permute.xlu0 %597
    %599 = vrot.lane.b32.xlu0 %v283, 96
    %v600 = vpop.permute.xlu0 %599
    %601 = vrot.lane.b32.xlu0 %v288, 96
    %v602 = vpop.permute.xlu0 %601
    %603 = vrot.lane.b32.xlu0 %v588, 96
    %v604 = vpop.permute.xlu0 %603
    %605 = vrot.lane.b32.xlu0 %v590, 96
    %v606 = vpop.permute.xlu0 %605
    %607 = vrot.lane.b32.xlu0 %v592, 96
    %v608 = vpop.permute.xlu0 %607
    %609 = vrot.lane.b32.xlu0 %v594, 96
    %v610 = vpop.permute.xlu0 %609
    %611 = vrot.lane.b32.xlu0 %v596, 96
    %v612 = vpop.permute.xlu0 %611
    %613 = vrot.lane.b32.xlu0 %v598, 96
    %v614 = vpop.permute.xlu0 %613
    %v623 = vcombine.low %v600, %v608
    %v624 = vcombine.high %v600, %v608
    %v626 = vunpack.c.l.s4 1983009808
    %v627 = vunpack.c.0.s8 %v626
    %v628 = vlaneseq
    %v629 = vshrl.u32 %v628, 7
    %v630 = vsub.s32 %v627, %v629
    %v631 = vrot.slane %v623, %v630
    %v633 = vunpack.c.l.s4 1983009808
    %v634 = vunpack.c.0.s8 %v633
    %v635 = vlaneseq
    %v636 = vshrl.u32 %v635, 7
    %v637 = vsub.s32 %v634, %v636
    %v638 = vrot.slane %v624, %v637
    %v639 = vcombine.low %v604, %v612
    %v640 = vcombine.high %v604, %v612
    %v642 = vunpack.c.l.s4 1983009808
    %v643 = vunpack.c.0.s8 %v642
    %v644 = vlaneseq
    %v645 = vshrl.u32 %v644, 7
    %v646 = vsub.s32 %v643, %v645
    %v647 = vrot.slane %v639, %v646
    %v649 = vunpack.c.l.s4 1983009808
    %v650 = vunpack.c.0.s8 %v649
    %v651 = vlaneseq
    %v652 = vshrl.u32 %v651, 7
    %v653 = vsub.s32 %v650, %v652
    %v654 = vrot.slane %v640, %v653
    %v655 = vcombine.low %v631, %v647
    %v656 = vcombine.high %v631, %v647
    %v658 = vunpack.c.l.s4 1934713408
    %v659 = vunpack.c.0.s8 %v658
    %v660 = vlaneseq
    %v661 = vshrl.u32 %v660, 7
    %v662 = vsub.s32 %v659, %v661
    %v663 = vrot.slane %v655, %v662
    %v665 = vunpack.c.l.s4 1934713408
    %v666 = vunpack.c.0.s8 %v665
    %v667 = vlaneseq
    %v668 = vshrl.u32 %v667, 7
    %v669 = vsub.s32 %v666, %v668
    %v670 = vrot.slane %v656, %v669
    %v671 = vcombine.low %v638, %v654
    %v672 = vcombine.high %v638, %v654
    %v674 = vunpack.c.l.s4 1934713408
    %v675 = vunpack.c.0.s8 %v674
    %v676 = vlaneseq
    %v677 = vshrl.u32 %v676, 7
    %v678 = vsub.s32 %v675, %v677
    %v679 = vrot.slane %v671, %v678
    %v681 = vunpack.c.l.s4 1934713408
    %v682 = vunpack.c.0.s8 %v681
    %v683 = vlaneseq
    %v684 = vshrl.u32 %v683, 7
    %v685 = vsub.s32 %v682, %v684
    %v686 = vrot.slane %v672, %v685
    %v687 = vcombine.high %v663, 0.0
    %v688 = vcombine.high %v670, 0.0
    %v689 = vcombine.high %v679, 0.0
    %v690 = vcombine.high %v686, 0.0
    %v691 = vcombine.low %v602, %v610
    %v692 = vcombine.high %v602, %v610
    %v694 = vunpack.c.l.s4 1983009808
    %v695 = vunpack.c.0.s8 %v694
    %v696 = vlaneseq
    %v697 = vshrl.u32 %v696, 7
    %v698 = vsub.s32 %v695, %v697
    %v699 = vrot.slane %v691, %v698
    %v701 = vunpack.c.l.s4 1983009808
    %v702 = vunpack.c.0.s8 %v701
    %v703 = vlaneseq
    %v704 = vshrl.u32 %v703, 7
    %v705 = vsub.s32 %v702, %v704
    %v706 = vrot.slane %v692, %v705
    %v707 = vcombine.low %v606, %v614
    %v708 = vcombine.high %v606, %v614
    %v710 = vunpack.c.l.s4 1983009808
    %v711 = vunpack.c.0.s8 %v710
    %v712 = vlaneseq
    %v713 = vshrl.u32 %v712, 7
    %v714 = vsub.s32 %v711, %v713
    %v715 = vrot.slane %v707, %v714
    %v717 = vunpack.c.l.s4 1983009808
    %v718 = vunpack.c.0.s8 %v717
    %v719 = vlaneseq
    %v720 = vshrl.u32 %v719, 7
    %v721 = vsub.s32 %v718, %v720
    %v722 = vrot.slane %v708, %v721
    %v723 = vcombine.low %v699, %v715
    %v724 = vcombine.high %v699, %v715
    %v726 = vunpack.c.l.s4 1934713408
    %v727 = vunpack.c.0.s8 %v726
    %v728 = vlaneseq
    %v729 = vshrl.u32 %v728, 7
    %v730 = vsub.s32 %v727, %v729
    %v731 = vrot.slane %v723, %v730
    %v733 = vunpack.c.l.s4 1934713408
    %v734 = vunpack.c.0.s8 %v733
    %v735 = vlaneseq
    %v736 = vshrl.u32 %v735, 7
    %v737 = vsub.s32 %v734, %v736
    %v738 = vrot.slane %v724, %v737
    %v739 = vcombine.low %v706, %v722
    %v740 = vcombine.high %v706, %v722
    %v742 = vunpack.c.l.s4 1934713408
    %v743 = vunpack.c.0.s8 %v742
    %v744 = vlaneseq
    %v745 = vshrl.u32 %v744, 7
    %v746 = vsub.s32 %v743, %v745
    %v747 = vrot.slane %v739, %v746
    %v749 = vunpack.c.l.s4 1934713408
    %v750 = vunpack.c.0.s8 %v749
    %v751 = vlaneseq
    %v752 = vshrl.u32 %v751, 7
    %v753 = vsub.s32 %v750, %v752
    %v754 = vrot.slane %v740, %v753
    %v755 = vcombine.high %v731, 0.0
    %v756 = vcombine.high %v738, 0.0
    %v757 = vcombine.high %v747, 0.0
    %v758 = vcombine.high %v754, 0.0
    %v759 = vcombine.low %v663, %v670
    %v761 = vunpack.c.l.s4 1983009808
    %v762 = vunpack.c.0.s8 %v761
    %v763 = vlaneseq
    %v764 = vshrl.u32 %v763, 7
    %v765 = vsub.s32 %v762, %v764
    %v766 = vrot.slane %v759, %v765
    %v767 = vcombine.low %v687, %v688
    %v769 = vunpack.c.l.s4 1983009808
    %v770 = vunpack.c.0.s8 %v769
    %v771 = vlaneseq
    %v772 = vshrl.u32 %v771, 7
    %v773 = vsub.s32 %v770, %v772
    %v774 = vrot.slane %v767, %v773
    %v775 = vcombine.low %v679, %v686
    %v777 = vunpack.c.l.s4 1983009808
    %v778 = vunpack.c.0.s8 %v777
    %v779 = vlaneseq
    %v780 = vshrl.u32 %v779, 7
    %v781 = vsub.s32 %v778, %v780
    %v782 = vrot.slane %v775, %v781
    %v783 = vcombine.low %v689, %v690
    %v785 = vunpack.c.l.s4 1983009808
    %v786 = vunpack.c.0.s8 %v785
    %v787 = vlaneseq
    %v788 = vshrl.u32 %v787, 7
    %v789 = vsub.s32 %v786, %v788
    %v790 = vrot.slane %v783, %v789
    %v791 = vcombine.low %v766, %v774
    %v792 = vcombine.high %v766, %v774
    %v794 = vunpack.c.l.s4 1934713408
    %v795 = vunpack.c.0.s8 %v794
    %v796 = vlaneseq
    %v797 = vshrl.u32 %v796, 7
    %v798 = vsub.s32 %v795, %v797
    %v799 = vrot.slane %v791, %v798
    %v801 = vunpack.c.l.s4 1934713408
    %v802 = vunpack.c.0.s8 %v801
    %v803 = vlaneseq
    %v804 = vshrl.u32 %v803, 7
    %v805 = vsub.s32 %v802, %v804
    %v806 = vrot.slane %v792, %v805
    %v807 = vcombine.low %v782, %v790
    %v808 = vcombine.high %v782, %v790
    %v810 = vunpack.c.l.s4 1934713408
    %v811 = vunpack.c.0.s8 %v810
    %v812 = vlaneseq
    %v813 = vshrl.u32 %v812, 7
    %v814 = vsub.s32 %v811, %v813
    %v815 = vrot.slane %v807, %v814
    %v817 = vunpack.c.l.s4 1934713408
    %v818 = vunpack.c.0.s8 %v817
    %v819 = vlaneseq
    %v820 = vshrl.u32 %v819, 7
    %v821 = vsub.s32 %v818, %v820
    %v822 = vrot.slane %v808, %v821
    %v823 = vcombine.low %v799, %v815
    %v824 = vcombine.high %v799, %v815
    %v825 = vcombine.low %v806, %v822
    %v826 = vcombine.high %v806, %v822
    %v827 = vcombine.low %v731, %v738
    %v829 = vunpack.c.l.s4 1983009808
    %v830 = vunpack.c.0.s8 %v829
    %v831 = vlaneseq
    %v832 = vshrl.u32 %v831, 7
    %v833 = vsub.s32 %v830, %v832
    %v834 = vrot.slane %v827, %v833
    %v835 = vcombine.low %v755, %v756
    %v837 = vunpack.c.l.s4 1983009808
    %v838 = vunpack.c.0.s8 %v837
    %v839 = vlaneseq
    %v840 = vshrl.u32 %v839, 7
    %v841 = vsub.s32 %v838, %v840
    %v842 = vrot.slane %v835, %v841
    %v843 = vcombine.low %v747, %v754
    %v845 = vunpack.c.l.s4 1983009808
    %v846 = vunpack.c.0.s8 %v845
    %v847 = vlaneseq
    %v848 = vshrl.u32 %v847, 7
    %v849 = vsub.s32 %v846, %v848
    %v850 = vrot.slane %v843, %v849
    %v851 = vcombine.low %v757, %v758
    %v853 = vunpack.c.l.s4 1983009808
    %v854 = vunpack.c.0.s8 %v853
    %v855 = vlaneseq
    %v856 = vshrl.u32 %v855, 7
    %v857 = vsub.s32 %v854, %v856
    %v858 = vrot.slane %v851, %v857
    %v859 = vcombine.low %v834, %v842
    %v860 = vcombine.high %v834, %v842
    %v862 = vunpack.c.l.s4 1934713408
    %v863 = vunpack.c.0.s8 %v862
    %v864 = vlaneseq
    %v865 = vshrl.u32 %v864, 7
    %v866 = vsub.s32 %v863, %v865
    %v867 = vrot.slane %v859, %v866
    %v869 = vunpack.c.l.s4 1934713408
    %v870 = vunpack.c.0.s8 %v869
    %v871 = vlaneseq
    %v872 = vshrl.u32 %v871, 7
    %v873 = vsub.s32 %v870, %v872
    %v874 = vrot.slane %v860, %v873
    %v875 = vcombine.low %v850, %v858
    %v876 = vcombine.high %v850, %v858
    %v878 = vunpack.c.l.s4 1934713408
    %v879 = vunpack.c.0.s8 %v878
    %v880 = vlaneseq
    %v881 = vshrl.u32 %v880, 7
    %v882 = vsub.s32 %v879, %v881
    %v883 = vrot.slane %v875, %v882
    %v885 = vunpack.c.l.s4 1934713408
    %v886 = vunpack.c.0.s8 %v885
    %v887 = vlaneseq
    %v888 = vshrl.u32 %v887, 7
    %v889 = vsub.s32 %v886, %v888
    %v890 = vrot.slane %v876, %v889
    %v891 = vcombine.low %v867, %v883
    %v892 = vcombine.high %v867, %v883
    %v893 = vcombine.low %v874, %v890
    %v894 = vcombine.high %v874, %v890
    %895 = vrot.lane.b32.xlu0 %v283, 64
    %v896 = vpop.permute.xlu0 %895
    %897 = vrot.lane.b32.xlu0 %v288, 64
    %v898 = vpop.permute.xlu0 %897
    %899 = vrot.lane.b32.xlu0 %v588, 64
    %v900 = vpop.permute.xlu0 %899
    %901 = vrot.lane.b32.xlu0 %v590, 64
    %v902 = vpop.permute.xlu0 %901
    %903 = vrot.lane.b32.xlu0 %v592, 64
    %v904 = vpop.permute.xlu0 %903
    %905 = vrot.lane.b32.xlu0 %v594, 64
    %v906 = vpop.permute.xlu0 %905
    %907 = vrot.lane.b32.xlu0 %v596, 64
    %v908 = vpop.permute.xlu0 %907
    %909 = vrot.lane.b32.xlu0 %v598, 64
    %v910 = vpop.permute.xlu0 %909
    %v919 = vcombine.low %v896, %v904
    %v920 = vcombine.high %v896, %v904
    %v922 = vunpack.c.l.s4 1983009808
    %v923 = vunpack.c.0.s8 %v922
    %v924 = vlaneseq
    %v925 = vshrl.u32 %v924, 7
    %v926 = vsub.s32 %v923, %v925
    %v927 = vrot.slane %v919, %v926
    %v929 = vunpack.c.l.s4 1983009808
    %v930 = vunpack.c.0.s8 %v929
    %v931 = vlaneseq
    %v932 = vshrl.u32 %v931, 7
    %v933 = vsub.s32 %v930, %v932
    %v934 = vrot.slane %v920, %v933
    %v935 = vcombine.low %v900, %v908
    %v936 = vcombine.high %v900, %v908
    %v938 = vunpack.c.l.s4 1983009808
    %v939 = vunpack.c.0.s8 %v938
    %v940 = vlaneseq
    %v941 = vshrl.u32 %v940, 7
    %v942 = vsub.s32 %v939, %v941
    %v943 = vrot.slane %v935, %v942
    %v945 = vunpack.c.l.s4 1983009808
    %v946 = vunpack.c.0.s8 %v945
    %v947 = vlaneseq
    %v948 = vshrl.u32 %v947, 7
    %v949 = vsub.s32 %v946, %v948
    %v950 = vrot.slane %v936, %v949
    %v951 = vcombine.low %v927, %v943
    %v952 = vcombine.high %v927, %v943
    %v954 = vunpack.c.l.s4 1934713408
    %v955 = vunpack.c.0.s8 %v954
    %v956 = vlaneseq
    %v957 = vshrl.u32 %v956, 7
    %v958 = vsub.s32 %v955, %v957
    %v959 = vrot.slane %v951, %v958
    %v961 = vunpack.c.l.s4 1934713408
    %v962 = vunpack.c.0.s8 %v961
    %v963 = vlaneseq
    %v964 = vshrl.u32 %v963, 7
    %v965 = vsub.s32 %v962, %v964
    %v966 = vrot.slane %v952, %v965
    %v967 = vcombine.low %v934, %v950
    %v968 = vcombine.high %v934, %v950
    %v970 = vunpack.c.l.s4 1934713408
    %v971 = vunpack.c.0.s8 %v970
    %v972 = vlaneseq
    %v973 = vshrl.u32 %v972, 7
    %v974 = vsub.s32 %v971, %v973
    %v975 = vrot.slane %v967, %v974
    %v977 = vunpack.c.l.s4 1934713408
    %v978 = vunpack.c.0.s8 %v977
    %v979 = vlaneseq
    %v980 = vshrl.u32 %v979, 7
    %v981 = vsub.s32 %v978, %v980
    %v982 = vrot.slane %v968, %v981
    %v983 = vcombine.high %v959, 0.0
    %v984 = vcombine.high %v966, 0.0
    %v985 = vcombine.high %v975, 0.0
    %v986 = vcombine.high %v982, 0.0
    %v987 = vcombine.low %v898, %v906
    %v988 = vcombine.high %v898, %v906
    %v990 = vunpack.c.l.s4 1983009808
    %v991 = vunpack.c.0.s8 %v990
    %v992 = vlaneseq
    %v993 = vshrl.u32 %v992, 7
    %v994 = vsub.s32 %v991, %v993
    %v995 = vrot.slane %v987, %v994
    %v997 = vunpack.c.l.s4 1983009808
    %v998 = vunpack.c.0.s8 %v997
    %v999 = vlaneseq
    %v1000 = vshrl.u32 %v999, 7
    %v1001 = vsub.s32 %v998, %v1000
    %v1002 = vrot.slane %v988, %v1001
    %v1003 = vcombine.low %v902, %v910
    %v1004 = vcombine.high %v902, %v910
    %v1006 = vunpack.c.l.s4 1983009808
    %v1007 = vunpack.c.0.s8 %v1006
    %v1008 = vlaneseq
    %v1009 = vshrl.u32 %v1008, 7
    %v1010 = vsub.s32 %v1007, %v1009
    %v1011 = vrot.slane %v1003, %v1010
    %v1013 = vunpack.c.l.s4 1983009808
    %v1014 = vunpack.c.0.s8 %v1013
    %v1015 = vlaneseq
    %v1016 = vshrl.u32 %v1015, 7
    %v1017 = vsub.s32 %v1014, %v1016
    %v1018 = vrot.slane %v1004, %v1017
    %v1019 = vcombine.low %v995, %v1011
    %v1020 = vcombine.high %v995, %v1011
    %v1022 = vunpack.c.l.s4 1934713408
    %v1023 = vunpack.c.0.s8 %v1022
    %v1024 = vlaneseq
    %v1025 = vshrl.u32 %v1024, 7
    %v1026 = vsub.s32 %v1023, %v1025
    %v1027 = vrot.slane %v1019, %v1026
    %v1029 = vunpack.c.l.s4 1934713408
    %v1030 = vunpack.c.0.s8 %v1029
    %v1031 = vlaneseq
    %v1032 = vshrl.u32 %v1031, 7
    %v1033 = vsub.s32 %v1030, %v1032
    %v1034 = vrot.slane %v1020, %v1033
    %v1035 = vcombine.low %v1002, %v1018
    %v1036 = vcombine.high %v1002, %v1018
    %v1038 = vunpack.c.l.s4 1934713408
    %v1039 = vunpack.c.0.s8 %v1038
    %v1040 = vlaneseq
    %v1041 = vshrl.u32 %v1040, 7
    %v1042 = vsub.s32 %v1039, %v1041
    %v1043 = vrot.slane %v1035, %v1042
    %v1045 = vunpack.c.l.s4 1934713408
    %v1046 = vunpack.c.0.s8 %v1045
    %v1047 = vlaneseq
    %v1048 = vshrl.u32 %v1047, 7
    %v1049 = vsub.s32 %v1046, %v1048
    %v1050 = vrot.slane %v1036, %v1049
    %v1051 = vcombine.high %v1027, 0.0
    %v1052 = vcombine.high %v1034, 0.0
    %v1053 = vcombine.high %v1043, 0.0
    %v1054 = vcombine.high %v1050, 0.0
    %v1055 = vcombine.low %v959, %v966
    %v1057 = vunpack.c.l.s4 1983009808
    %v1058 = vunpack.c.0.s8 %v1057
    %v1059 = vlaneseq
    %v1060 = vshrl.u32 %v1059, 7
    %v1061 = vsub.s32 %v1058, %v1060
    %v1062 = vrot.slane %v1055, %v1061
    %v1063 = vcombine.low %v983, %v984
    %v1065 = vunpack.c.l.s4 1983009808
    %v1066 = vunpack.c.0.s8 %v1065
    %v1067 = vlaneseq
    %v1068 = vshrl.u32 %v1067, 7
    %v1069 = vsub.s32 %v1066, %v1068
    %v1070 = vrot.slane %v1063, %v1069
    %v1071 = vcombine.low %v975, %v982
    %v1073 = vunpack.c.l.s4 1983009808
    %v1074 = vunpack.c.0.s8 %v1073
    %v1075 = vlaneseq
    %v1076 = vshrl.u32 %v1075, 7
    %v1077 = vsub.s32 %v1074, %v1076
    %v1078 = vrot.slane %v1071, %v1077
    %v1079 = vcombine.low %v985, %v986
    %v1081 = vunpack.c.l.s4 1983009808
    %v1082 = vunpack.c.0.s8 %v1081
    %v1083 = vlaneseq
    %v1084 = vshrl.u32 %v1083, 7
    %v1085 = vsub.s32 %v1082, %v1084
    %v1086 = vrot.slane %v1079, %v1085
    %v1087 = vcombine.low %v1062, %v1070
    %v1088 = vcombine.high %v1062, %v1070
    %v1090 = vunpack.c.l.s4 1934713408
    %v1091 = vunpack.c.0.s8 %v1090
    %v1092 = vlaneseq
    %v1093 = vshrl.u32 %v1092, 7
    %v1094 = vsub.s32 %v1091, %v1093
    %v1095 = vrot.slane %v1087, %v1094
    %v1097 = vunpack.c.l.s4 1934713408
    %v1098 = vunpack.c.0.s8 %v1097
    %v1099 = vlaneseq
    %v1100 = vshrl.u32 %v1099, 7
    %v1101 = vsub.s32 %v1098, %v1100
    %v1102 = vrot.slane %v1088, %v1101
    %v1103 = vcombine.low %v1078, %v1086
    %v1104 = vcombine.high %v1078, %v1086
    %v1106 = vunpack.c.l.s4 1934713408
    %v1107 = vunpack.c.0.s8 %v1106
    %v1108 = vlaneseq
    %v1109 = vshrl.u32 %v1108, 7
    %v1110 = vsub.s32 %v1107, %v1109
    %v1111 = vrot.slane %v1103, %v1110
    %v1113 = vunpack.c.l.s4 1934713408
    %v1114 = vunpack.c.0.s8 %v1113
    %v1115 = vlaneseq
    %v1116 = vshrl.u32 %v1115, 7
    %v1117 = vsub.s32 %v1114, %v1116
    %v1118 = vrot.slane %v1104, %v1117
    %v1119 = vcombine.low %v1095, %v1111
    %v1120 = vcombine.high %v1095, %v1111
    %v1121 = vcombine.low %v1102, %v1118
    %v1122 = vcombine.high %v1102, %v1118
    %v1123 = vcombine.low %v1027, %v1034
    %v1125 = vunpack.c.l.s4 1983009808
    %v1126 = vunpack.c.0.s8 %v1125
    %v1127 = vlaneseq
    %v1128 = vshrl.u32 %v1127, 7
    %v1129 = vsub.s32 %v1126, %v1128
    %v1130 = vrot.slane %v1123, %v1129
    %v1131 = vcombine.low %v1051, %v1052
    %v1133 = vunpack.c.l.s4 1983009808
    %v1134 = vunpack.c.0.s8 %v1133
    %v1135 = vlaneseq
    %v1136 = vshrl.u32 %v1135, 7
    %v1137 = vsub.s32 %v1134, %v1136
    %v1138 = vrot.slane %v1131, %v1137
    %v1139 = vcombine.low %v1043, %v1050
    %v1141 = vunpack.c.l.s4 1983009808
    %v1142 = vunpack.c.0.s8 %v1141
    %v1143 = vlaneseq
    %v1144 = vshrl.u32 %v1143, 7
    %v1145 = vsub.s32 %v1142, %v1144
    %v1146 = vrot.slane %v1139, %v1145
    %v1147 = vcombine.low %v1053, %v1054
    %v1149 = vunpack.c.l.s4 1983009808
    %v1150 = vunpack.c.0.s8 %v1149
    %v1151 = vlaneseq
    %v1152 = vshrl.u32 %v1151, 7
    %v1153 = vsub.s32 %v1150, %v1152
    %v1154 = vrot.slane %v1147, %v1153
    %v1155 = vcombine.low %v1130, %v1138
    %v1156 = vcombine.high %v1130, %v1138
    %v1158 = vunpack.c.l.s4 1934713408
    %v1159 = vunpack.c.0.s8 %v1158
    %v1160 = vlaneseq
    %v1161 = vshrl.u32 %v1160, 7
    %v1162 = vsub.s32 %v1159, %v1161
    %v1163 = vrot.slane %v1155, %v1162
    %v1165 = vunpack.c.l.s4 1934713408
    %v1166 = vunpack.c.0.s8 %v1165
    %v1167 = vlaneseq
    %v1168 = vshrl.u32 %v1167, 7
    %v1169 = vsub.s32 %v1166, %v1168
    %v1170 = vrot.slane %v1156, %v1169
    %v1171 = vcombine.low %v1146, %v1154
    %v1172 = vcombine.high %v1146, %v1154
    %v1174 = vunpack.c.l.s4 1934713408
    %v1175 = vunpack.c.0.s8 %v1174
    %v1176 = vlaneseq
    %v1177 = vshrl.u32 %v1176, 7
    %v1178 = vsub.s32 %v1175, %v1177
    %v1179 = vrot.slane %v1171, %v1178
    %v1181 = vunpack.c.l.s4 1934713408
    %v1182 = vunpack.c.0.s8 %v1181
    %v1183 = vlaneseq
    %v1184 = vshrl.u32 %v1183, 7
    %v1185 = vsub.s32 %v1182, %v1184
    %v1186 = vrot.slane %v1172, %v1185
    %v1187 = vcombine.low %v1163, %v1179
    %v1188 = vcombine.high %v1163, %v1179
    %v1189 = vcombine.low %v1170, %v1186
    %v1190 = vcombine.high %v1170, %v1186
    %vm1191 = vcmask 64512
    %v1193 = vsel %vm1191, %v513, 0
    %v1196 = vsel %vm1191, %v581, 0
    %v1199 = vsel %vm1191, %v823, 0
    %v1202 = vsel %vm1191, %v891, 0
    %1204 = vmatprep.subr.mxu0 0.0
    %1205 = vmatpush1.xpose.msra.mxu0 0.0
    %1206 = vmatprep.subr.mxu0 0.0
    %1207 = vmatpush1.xpose.msra.mxu0 0.0
    %1208 = vmatprep.subr.mxu0 0.0
    %1209 = vmatpush1.xpose.msra.mxu0 0.0
    %1210 = vmatprep.subr.mxu0 0.0
    %1211 = vmatpush1.xpose.msra.mxu0 0.0
    %1212 = vmatprep.subr.mxu0 0.0
    %1213 = vmatpush1.xpose.msra.mxu0 0.0
    %1214 = vmatprep.subr.mxu0 0.0
    %1215 = vmatpush1.xpose.msra.mxu0 0.0
    %1216 = vmatprep.subr.mxu0 0.0
    %1217 = vmatpush1.xpose.msra.mxu0 0.0
    %1218 = vmatprep.subr.mxu0 0.0
    %1219 = vmatpush1.xpose.msra.mxu0 0.0
    %1220 = vmatprep.subr.mxu0 0.0
    %1221 = vmatpush1.xpose.msra.mxu0 0.0
    %1222 = vmatprep.subr.mxu0 0.0
    %1223 = vmatpush1.xpose.msra.mxu0 0.0
    %1224 = vmatprep.subr.mxu0 0.0
    %1225 = vmatpush1.xpose.msra.mxu0 0.0
    %1226 = vmatprep.subr.mxu0 0.0
    %1227 = vmatpush1.xpose.msra.mxu0 0.0
    %1228 = vmatprep.subr.mxu0 0.0
    %1229 = vmatpush1.xpose.msra.mxu0 0.0
    %1230 = vmatprep.subr.mxu0 0.0
    %1231 = vmatpush1.xpose.msra.mxu0 0.0
    %1232 = vmatprep.subr.mxu0 0.0
    %1233 = vmatpush1.xpose.msra.mxu0 %v1202
    %1234 = vmatprep.subr.mxu0 0.0
    %1235 = vmatpush1.xpose.msra.mxu0 %v1199
    %1236 = vmatprep.subr.mxu0 0.0
    %1237 = vmatpush2.xpose.msra.mxu0 0.0
    %1238 = vmatprep.subr.mxu0 0.0
    %1239 = vmatpush2.xpose.msra.mxu0 0.0
    %1240 = vmatprep.subr.mxu0 0.0
    %1241 = vmatpush2.xpose.msra.mxu0 0.0
    %1242 = vmatprep.subr.mxu0 0.0
    %1243 = vmatpush2.xpose.msra.mxu0 0.0
    %1244 = vmatprep.subr.mxu0 0.0
    %1245 = vmatpush2.xpose.msra.mxu0 0.0
    %1246 = vmatprep.subr.mxu0 0.0
    %1247 = vmatpush2.xpose.msra.mxu0 0.0
    %1248 = vmatprep.subr.mxu0 0.0
    %1249 = vmatpush2.xpose.msra.mxu0 0.0
    %1250 = vmatprep.subr.mxu0 0.0
    %1251 = vmatpush2.xpose.msra.mxu0 0.0
    %1252 = vmatprep.subr.mxu0 0.0
    %1253 = vmatpush2.xpose.msra.mxu0 0.0
    %1254 = vmatprep.subr.mxu0 0.0
    %1255 = vmatpush2.xpose.msra.mxu0 0.0
    %1256 = vmatprep.subr.mxu0 0.0
    %1257 = vmatpush2.xpose.msra.mxu0 0.0
    %1258 = vmatprep.subr.mxu0 0.0
    %1259 = vmatpush2.xpose.msra.mxu0 0.0
    %1260 = vmatprep.subr.mxu0 0.0
    %1261 = vmatpush2.xpose.msra.mxu0 0.0
    %1262 = vmatprep.subr.mxu0 0.0
    %1263 = vmatpush2.xpose.msra.mxu0 0.0
    %1264 = vmatprep.subr.mxu0 0.0
    %1265 = vmatpush2.xpose.msra.mxu0 0.0
    %1266 = vmatprep.subr.mxu0 0.0
    %1267 = vmatpush2.xpose.msra.mxu0 0.0
    %1268 = vmatprep.mubr.f32.mxu0 0.0
    %1269 = vmatmul.mubr.f32.gmra.mxu0 %v1193
    %v1270 = vpop.f32.mrf.mxu0
    %v1271 = vadd.f32 0.0, %v1270
    %v1272 = vpop.f32.mrf.mxu0
    %1273 = vmatprep.mubr.f32.mxu0 0.0
    %1274 = vmatmul.mubr.f32.gmra.mxu0 %v1196
    %v1275 = vpop.f32.mrf.mxu0
    %v1276 = vadd.f32 0.0, %v1275
    %v1277 = vpop.f32.mrf.mxu0
    %1278 = vdwg.mxu0
    %v1280 = vsel %vm1191, %v514, 0
    %v1283 = vsel %vm1191, %v582, 0
    %v1286 = vsel %vm1191, %v824, 0
    %v1289 = vsel %vm1191, %v892, 0
    %1291 = vmatprep.subr.mxu0 0.0
    %1292 = vmatpush1.xpose.msra.mxu0 0.0
    %1293 = vmatprep.subr.mxu0 0.0
    %1294 = vmatpush1.xpose.msra.mxu0 0.0
    %1295 = vmatprep.subr.mxu0 0.0
    %1296 = vmatpush1.xpose.msra.mxu0 0.0
    %1297 = vmatprep.subr.mxu0 0.0
    %1298 = vmatpush1.xpose.msra.mxu0 0.0
    %1299 = vmatprep.subr.mxu0 0.0
    %1300 = vmatpush1.xpose.msra.mxu0 0.0
    %1301 = vmatprep.subr.mxu0 0.0
    %1302 = vmatpush1.xpose.msra.mxu0 0.0
    %1303 = vmatprep.subr.mxu0 0.0
    %1304 = vmatpush1.xpose.msra.mxu0 0.0
    %1305 = vmatprep.subr.mxu0 0.0
    %1306 = vmatpush1.xpose.msra.mxu0 0.0
    %1307 = vmatprep.subr.mxu0 0.0
    %1308 = vmatpush1.xpose.msra.mxu0 0.0
    %1309 = vmatprep.subr.mxu0 0.0
    %1310 = vmatpush1.xpose.msra.mxu0 0.0
    %1311 = vmatprep.subr.mxu0 0.0
    %1312 = vmatpush1.xpose.msra.mxu0 0.0
    %1313 = vmatprep.subr.mxu0 0.0
    %1314 = vmatpush1.xpose.msra.mxu0 0.0
    %1315 = vmatprep.subr.mxu0 0.0
    %1316 = vmatpush1.xpose.msra.mxu0 0.0
    %1317 = vmatprep.subr.mxu0 0.0
    %1318 = vmatpush1.xpose.msra.mxu0 0.0
    %1319 = vmatprep.subr.mxu0 0.0
    %1320 = vmatpush1.xpose.msra.mxu0 %v1289
    %1321 = vmatprep.subr.mxu0 0.0
    %1322 = vmatpush1.xpose.msra.mxu0 %v1286
    %1323 = vmatprep.subr.mxu0 0.0
    %1324 = vmatpush2.xpose.msra.mxu0 0.0
    %1325 = vmatprep.subr.mxu0 0.0
    %1326 = vmatpush2.xpose.msra.mxu0 0.0
    %1327 = vmatprep.subr.mxu0 0.0
    %1328 = vmatpush2.xpose.msra.mxu0 0.0
    %1329 = vmatprep.subr.mxu0 0.0
    %1330 = vmatpush2.xpose.msra.mxu0 0.0
    %1331 = vmatprep.subr.mxu0 0.0
    %1332 = vmatpush2.xpose.msra.mxu0 0.0
    %1333 = vmatprep.subr.mxu0 0.0
    %1334 = vmatpush2.xpose.msra.mxu0 0.0
    %1335 = vmatprep.subr.mxu0 0.0
    %1336 = vmatpush2.xpose.msra.mxu0 0.0
    %1337 = vmatprep.subr.mxu0 0.0
    %1338 = vmatpush2.xpose.msra.mxu0 0.0
    %1339 = vmatprep.subr.mxu0 0.0
    %1340 = vmatpush2.xpose.msra.mxu0 0.0
    %1341 = vmatprep.subr.mxu0 0.0
    %1342 = vmatpush2.xpose.msra.mxu0 0.0
    %1343 = vmatprep.subr.mxu0 0.0
    %1344 = vmatpush2.xpose.msra.mxu0 0.0
    %1345 = vmatprep.subr.mxu0 0.0
    %1346 = vmatpush2.xpose.msra.mxu0 0.0
    %1347 = vmatprep.subr.mxu0 0.0
    %1348 = vmatpush2.xpose.msra.mxu0 0.0
    %1349 = vmatprep.subr.mxu0 0.0
    %1350 = vmatpush2.xpose.msra.mxu0 0.0
    %1351 = vmatprep.subr.mxu0 0.0
    %1352 = vmatpush2.xpose.msra.mxu0 0.0
    %1353 = vmatprep.subr.mxu0 0.0
    %1354 = vmatpush2.xpose.msra.mxu0 0.0
    %1355 = vmatprep.mubr.f32.mxu0 0.0
    %1356 = vmatmul.mubr.f32.gmra.mxu0 %v1280
    %v1357 = vpop.f32.mrf.mxu0
    %v1358 = vadd.f32 0.0, %v1357
    %v1359 = vpop.f32.mrf.mxu0
    %1360 = vmatprep.mubr.f32.mxu0 0.0
    %1361 = vmatmul.mubr.f32.gmra.mxu0 %v1283
    %v1362 = vpop.f32.mrf.mxu0
    %v1363 = vadd.f32 0.0, %v1362
    %v1364 = vpop.f32.mrf.mxu0
    %1365 = vdwg.mxu0
    %v1367 = vsel %vm1191, %v515, 0
    %v1370 = vsel %vm1191, %v583, 0
    %v1373 = vsel %vm1191, %v825, 0
    %v1376 = vsel %vm1191, %v893, 0
    %1378 = vmatprep.subr.mxu0 0.0
    %1379 = vmatpush1.xpose.msra.mxu0 0.0
    %1380 = vmatprep.subr.mxu0 0.0
    %1381 = vmatpush1.xpose.msra.mxu0 0.0
    %1382 = vmatprep.subr.mxu0 0.0
    %1383 = vmatpush1.xpose.msra.mxu0 0.0
    %1384 = vmatprep.subr.mxu0 0.0
    %1385 = vmatpush1.xpose.msra.mxu0 0.0
    %1386 = vmatprep.subr.mxu0 0.0
    %1387 = vmatpush1.xpose.msra.mxu0 0.0
    %1388 = vmatprep.subr.mxu0 0.0
    %1389 = vmatpush1.xpose.msra.mxu0 0.0
    %1390 = vmatprep.subr.mxu0 0.0
    %1391 = vmatpush1.xpose.msra.mxu0 0.0
    %1392 = vmatprep.subr.mxu0 0.0
    %1393 = vmatpush1.xpose.msra.mxu0 0.0
    %1394 = vmatprep.subr.mxu0 0.0
    %1395 = vmatpush1.xpose.msra.mxu0 0.0
    %1396 = vmatprep.subr.mxu0 0.0
    %1397 = vmatpush1.xpose.msra.mxu0 0.0
    %1398 = vmatprep.subr.mxu0 0.0
    %1399 = vmatpush1.xpose.msra.mxu0 0.0
    %1400 = vmatprep.subr.mxu0 0.0
    %1401 = vmatpush1.xpose.msra.mxu0 0.0
    %1402 = vmatprep.subr.mxu0 0.0
    %1403 = vmatpush1.xpose.msra.mxu0 0.0
    %1404 = vmatprep.subr.mxu0 0.0
    %1405 = vmatpush1.xpose.msra.mxu0 0.0
    %1406 = vmatprep.subr.mxu0 0.0
    %1407 = vmatpush1.xpose.msra.mxu0 %v1376
    %1408 = vmatprep.subr.mxu0 0.0
    %1409 = vmatpush1.xpose.msra.mxu0 %v1373
    %1410 = vmatprep.subr.mxu0 0.0
    %1411 = vmatpush2.xpose.msra.mxu0 0.0
    %1412 = vmatprep.subr.mxu0 0.0
    %1413 = vmatpush2.xpose.msra.mxu0 0.0
    %1414 = vmatprep.subr.mxu0 0.0
    %1415 = vmatpush2.xpose.msra.mxu0 0.0
    %1416 = vmatprep.subr.mxu0 0.0
    %1417 = vmatpush2.xpose.msra.mxu0 0.0
    %1418 = vmatprep.subr.mxu0 0.0
    %1419 = vmatpush2.xpose.msra.mxu0 0.0
    %1420 = vmatprep.subr.mxu0 0.0
    %1421 = vmatpush2.xpose.msra.mxu0 0.0
    %1422 = vmatprep.subr.mxu0 0.0
    %1423 = vmatpush2.xpose.msra.mxu0 0.0
    %1424 = vmatprep.subr.mxu0 0.0
    %1425 = vmatpush2.xpose.msra.mxu0 0.0
    %1426 = vmatprep.subr.mxu0 0.0
    %1427 = vmatpush2.xpose.msra.mxu0 0.0
    %1428 = vmatprep.subr.mxu0 0.0
    %1429 = vmatpush2.xpose.msra.mxu0 0.0
    %1430 = vmatprep.subr.mxu0 0.0
    %1431 = vmatpush2.xpose.msra.mxu0 0.0
    %1432 = vmatprep.subr.mxu0 0.0
    %1433 = vmatpush2.xpose.msra.mxu0 0.0
    %1434 = vmatprep.subr.mxu0 0.0
    %1435 = vmatpush2.xpose.msra.mxu0 0.0
    %1436 = vmatprep.subr.mxu0 0.0
    %1437 = vmatpush2.xpose.msra.mxu0 0.0
    %1438 = vmatprep.subr.mxu0 0.0
    %1439 = vmatpush2.xpose.msra.mxu0 0.0
    %1440 = vmatprep.subr.mxu0 0.0
    %1441 = vmatpush2.xpose.msra.mxu0 0.0
    %1442 = vmatprep.mubr.f32.mxu0 0.0
    %1443 = vmatmul.mubr.f32.gmra.mxu0 %v1367
    %v1444 = vpop.f32.mrf.mxu0
    %v1445 = vadd.f32 0.0, %v1444
    %v1446 = vpop.f32.mrf.mxu0
    %1447 = vmatprep.mubr.f32.mxu0 0.0
    %1448 = vmatmul.mubr.f32.gmra.mxu0 %v1370
    %v1449 = vpop.f32.mrf.mxu0
    %v1450 = vadd.f32 0.0, %v1449
    %v1451 = vpop.f32.mrf.mxu0
    %1452 = vdwg.mxu0
    %v1454 = vsel %vm1191, %v516, 0
    %v1457 = vsel %vm1191, %v584, 0
    %v1460 = vsel %vm1191, %v826, 0
    %v1463 = vsel %vm1191, %v894, 0
    %1465 = vmatprep.subr.mxu0 0.0
    %1466 = vmatpush1.xpose.msra.mxu0 0.0
    %1467 = vmatprep.subr.mxu0 0.0
    %1468 = vmatpush1.xpose.msra.mxu0 0.0
    %1469 = vmatprep.subr.mxu0 0.0
    %1470 = vmatpush1.xpose.msra.mxu0 0.0
    %1471 = vmatprep.subr.mxu0 0.0
    %1472 = vmatpush1.xpose.msra.mxu0 0.0
    %1473 = vmatprep.subr.mxu0 0.0
    %1474 = vmatpush1.xpose.msra.mxu0 0.0
    %1475 = vmatprep.subr.mxu0 0.0
    %1476 = vmatpush1.xpose.msra.mxu0 0.0
    %1477 = vmatprep.subr.mxu0 0.0
    %1478 = vmatpush1.xpose.msra.mxu0 0.0
    %1479 = vmatprep.subr.mxu0 0.0
    %1480 = vmatpush1.xpose.msra.mxu0 0.0
    %1481 = vmatprep.subr.mxu0 0.0
    %1482 = vmatpush1.xpose.msra.mxu0 0.0
    %1483 = vmatprep.subr.mxu0 0.0
    %1484 = vmatpush1.xpose.msra.mxu0 0.0
    %1485 = vmatprep.subr.mxu0 0.0
    %1486 = vmatpush1.xpose.msra.mxu0 0.0
    %1487 = vmatprep.subr.mxu0 0.0
    %1488 = vmatpush1.xpose.msra.mxu0 0.0
    %1489 = vmatprep.subr.mxu0 0.0
    %1490 = vmatpush1.xpose.msra.mxu0 0.0
    %1491 = vmatprep.subr.mxu0 0.0
    %1492 = vmatpush1.xpose.msra.mxu0 0.0
    %1493 = vmatprep.subr.mxu0 0.0
    %1494 = vmatpush1.xpose.msra.mxu0 %v1463
    %1495 = vmatprep.subr.mxu0 0.0
    %1496 = vmatpush1.xpose.msra.mxu0 %v1460
    %1497 = vmatprep.subr.mxu0 0.0
    %1498 = vmatpush2.xpose.msra.mxu0 0.0
    %1499 = vmatprep.subr.mxu0 0.0
    %1500 = vmatpush2.xpose.msra.mxu0 0.0
    %1501 = vmatprep.subr.mxu0 0.0
    %1502 = vmatpush2.xpose.msra.mxu0 0.0
    %1503 = vmatprep.subr.mxu0 0.0
    %1504 = vmatpush2.xpose.msra.mxu0 0.0
    %1505 = vmatprep.subr.mxu0 0.0
    %1506 = vmatpush2.xpose.msra.mxu0 0.0
    %1507 = vmatprep.subr.mxu0 0.0
    %1508 = vmatpush2.xpose.msra.mxu0 0.0
    %1509 = vmatprep.subr.mxu0 0.0
    %1510 = vmatpush2.xpose.msra.mxu0 0.0
    %1511 = vmatprep.subr.mxu0 0.0
    %1512 = vmatpush2.xpose.msra.mxu0 0.0
    %1513 = vmatprep.subr.mxu0 0.0
    %1514 = vmatpush2.xpose.msra.mxu0 0.0
    %1515 = vmatprep.subr.mxu0 0.0
    %1516 = vmatpush2.xpose.msra.mxu0 0.0
    %1517 = vmatprep.subr.mxu0 0.0
    %1518 = vmatpush2.xpose.msra.mxu0 0.0
    %1519 = vmatprep.subr.mxu0 0.0
    %1520 = vmatpush2.xpose.msra.mxu0 0.0
    %1521 = vmatprep.subr.mxu0 0.0
    %1522 = vmatpush2.xpose.msra.mxu0 0.0
    %1523 = vmatprep.subr.mxu0 0.0
    %1524 = vmatpush2.xpose.msra.mxu0 0.0
    %1525 = vmatprep.subr.mxu0 0.0
    %1526 = vmatpush2.xpose.msra.mxu0 0.0
    %1527 = vmatprep.subr.mxu0 0.0
    %1528 = vmatpush2.xpose.msra.mxu0 0.0
    %1529 = vmatprep.mubr.f32.mxu0 0.0
    %1530 = vmatmul.mubr.f32.gmra.mxu0 %v1454
    %v1531 = vpop.f32.mrf.mxu0
    %v1532 = vadd.f32 0.0, %v1531
    %v1533 = vpop.f32.mrf.mxu0
    %1534 = vmatprep.mubr.f32.mxu0 0.0
    %1535 = vmatmul.mubr.f32.gmra.mxu0 %v1457
    %v1536 = vpop.f32.mrf.mxu0
    %v1537 = vadd.f32 0.0, %v1536
    %v1538 = vpop.f32.mrf.mxu0
    %1539 = vdwg.mxu0
    %v1540 = vsel %vm112, %v1271, -inf
    %1541 = vmax.xlane.f32.xlu0 %v1540
    %v1542 = vpop.xlane.xlu0 %1541
    %v1543 = vsel %vm112, %v1276, -inf
    %1544 = vmax.xlane.f32.xlu0 %v1543
    %v1545 = vpop.xlane.xlu0 %1544
    %v1546 = vsel %vm112, %v1358, -inf
    %1547 = vmax.xlane.f32.xlu0 %v1546
    %v1548 = vpop.xlane.xlu0 %1547
    %v1549 = vsel %vm112, %v1363, -inf
    %1550 = vmax.xlane.f32.xlu0 %v1549
    %v1551 = vpop.xlane.xlu0 %1550
    %v1552 = vsel %vm112, %v1445, -inf
    %1553 = vmax.xlane.f32.xlu0 %v1552
    %v1554 = vpop.xlane.xlu0 %1553
    %v1555 = vsel %vm112, %v1450, -inf
    %1556 = vmax.xlane.f32.xlu0 %v1555
    %v1557 = vpop.xlane.xlu0 %1556
    %v1558 = vsel %vm112, %v1532, -inf
    %1559 = vmax.xlane.f32.xlu0 %v1558
    %v1560 = vpop.xlane.xlu0 %1559
    %v1561 = vsel %vm112, %v1537, -inf
    %1562 = vmax.xlane.f32.xlu0 %v1561
    %v1563 = vpop.xlane.xlu0 %1562
    %v1564 = vsub.f32 %v1271, %v1542
    %v1565 = vsub.f32 %v1276, %v1545
    %v1566 = vsub.f32 %v1358, %v1548
    %v1567 = vsub.f32 %v1363, %v1551
    %v1568 = vsub.f32 %v1445, %v1554
    %v1569 = vsub.f32 %v1450, %v1557
    %v1570 = vsub.f32 %v1532, %v1560
    %v1571 = vsub.f32 %v1537, %v1563
    %v1572 = vmul.f32 %v1564, 1.442695
    %v1573 = vpow.pop %v1572
    %v1574 = vmul.f32 %v1565, 1.442695
    %v1575 = vpow.pop %v1574
    %v1576 = vmul.f32 %v1566, 1.442695
    %v1577 = vpow.pop %v1576
    %v1578 = vmul.f32 %v1567, 1.442695
    %v1579 = vpow.pop %v1578
    %v1580 = vmul.f32 %v1568, 1.442695
    %v1581 = vpow.pop %v1580
    %v1582 = vmul.f32 %v1569, 1.442695
    %v1583 = vpow.pop %v1582
    %v1584 = vmul.f32 %v1570, 1.442695
    %v1585 = vpow.pop %v1584
    %v1586 = vmul.f32 %v1571, 1.442695
    %v1587 = vpow.pop %v1586
    %v1588 = vsel %vm112, %v1573, 0.0
    %1589 = vadd.xlane.f32.xlu0 %v1588
    %v1590 = vpop.xlane.xlu0 %1589
    %v1591 = vsel %vm112, %v1575, 0.0
    %1592 = vadd.xlane.f32.xlu0 %v1591
    %v1593 = vpop.xlane.xlu0 %1592
    %v1594 = vsel %vm112, %v1577, 0.0
    %1595 = vadd.xlane.f32.xlu0 %v1594
    %v1596 = vpop.xlane.xlu0 %1595
    %v1597 = vsel %vm112, %v1579, 0.0
    %1598 = vadd.xlane.f32.xlu0 %v1597
    %v1599 = vpop.xlane.xlu0 %1598
    %v1600 = vsel %vm112, %v1581, 0.0
    %1601 = vadd.xlane.f32.xlu0 %v1600
    %v1602 = vpop.xlane.xlu0 %1601
    %v1603 = vsel %vm112, %v1583, 0.0
    %1604 = vadd.xlane.f32.xlu0 %v1603
    %v1605 = vpop.xlane.xlu0 %1604
    %v1606 = vsel %vm112, %v1585, 0.0
    %1607 = vadd.xlane.f32.xlu0 %v1606
    %v1608 = vpop.xlane.xlu0 %1607
    %v1609 = vsel %vm112, %v1587, 0.0
    %1610 = vadd.xlane.f32.xlu0 %v1609
    %v1611 = vpop.xlane.xlu0 %1610
    %v1612 = vrcp.pop %v1590
    %v1613 = vmul.f32 %v1573, %v1612
    %v1614 = vrcp.pop %v1593
    %v1615 = vmul.f32 %v1575, %v1614
    %v1616 = vrcp.pop %v1596
    %v1617 = vmul.f32 %v1577, %v1616
    %v1618 = vrcp.pop %v1599
    %v1619 = vmul.f32 %v1579, %v1618
    %v1620 = vrcp.pop %v1602
    %v1621 = vmul.f32 %v1581, %v1620
    %v1622 = vrcp.pop %v1605
    %v1623 = vmul.f32 %v1583, %v1622
    %v1624 = vrcp.pop %v1608
    %v1625 = vmul.f32 %v1585, %v1624
    %v1626 = vrcp.pop %v1611
    %v1627 = vmul.f32 %v1587, %v1626
    %v1629 = vsel %vm112, %v1613, 0
    %v1632 = vsel %vm112, %v1615, 0
    %1634 = vmatprep.subr.mxu0 0.0
    %1635 = vmatpush1.msra.mxu0 0.0
    %1636 = vmatprep.subr.mxu0 0.0
    %1637 = vmatpush1.msra.mxu0 0.0
    %1638 = vmatprep.subr.mxu0 0.0
    %1639 = vmatpush1.msra.mxu0 0.0
    %1640 = vmatprep.subr.mxu0 0.0
    %1641 = vmatpush1.msra.mxu0 0.0
    %1642 = vmatprep.subr.mxu0 0.0
    %1643 = vmatpush1.msra.mxu0 0.0
    %1644 = vmatprep.subr.mxu0 0.0
    %1645 = vmatpush1.msra.mxu0 0.0
    %1646 = vmatprep.subr.mxu0 0.0
    %1647 = vmatpush1.msra.mxu0 0.0
    %1648 = vmatprep.subr.mxu0 0.0
    %1649 = vmatpush1.msra.mxu0 0.0
    %1650 = vmatprep.subr.mxu0 0.0
    %1651 = vmatpush1.msra.mxu0 0.0
    %1652 = vmatprep.subr.mxu0 0.0
    %1653 = vmatpush1.msra.mxu0 0.0
    %1654 = vmatprep.subr.mxu0 0.0
    %1655 = vmatpush1.msra.mxu0 0.0
    %1656 = vmatprep.subr.mxu0 0.0
    %1657 = vmatpush1.msra.mxu0 0.0
    %1658 = vmatprep.subr.mxu0 0.0
    %1659 = vmatpush1.msra.mxu0 0.0
    %1660 = vmatprep.subr.mxu0 0.0
    %1661 = vmatpush1.msra.mxu0 0.0
    %1662 = vmatprep.subr.mxu0 0.0
    %1663 = vmatpush1.msra.mxu0 %v1187
    %1664 = vmatprep.subr.mxu0 0.0
    %1665 = vmatpush1.msra.mxu0 %v1119
    %1666 = vmatprep.subr.mxu0 0.0
    %1667 = vmatpush2.msra.mxu0 0.0
    %1668 = vmatprep.subr.mxu0 0.0
    %1669 = vmatpush2.msra.mxu0 0.0
    %1670 = vmatprep.subr.mxu0 0.0
    %1671 = vmatpush2.msra.mxu0 0.0
    %1672 = vmatprep.subr.mxu0 0.0
    %1673 = vmatpush2.msra.mxu0 0.0
    %1674 = vmatprep.subr.mxu0 0.0
    %1675 = vmatpush2.msra.mxu0 0.0
    %1676 = vmatprep.subr.mxu0 0.0
    %1677 = vmatpush2.msra.mxu0 0.0
    %1678 = vmatprep.subr.mxu0 0.0
    %1679 = vmatpush2.msra.mxu0 0.0
    %1680 = vmatprep.subr.mxu0 0.0
    %1681 = vmatpush2.msra.mxu0 0.0
    %1682 = vmatprep.subr.mxu0 0.0
    %1683 = vmatpush2.msra.mxu0 0.0
    %1684 = vmatprep.subr.mxu0 0.0
    %1685 = vmatpush2.msra.mxu0 0.0
    %1686 = vmatprep.subr.mxu0 0.0
    %1687 = vmatpush2.msra.mxu0 0.0
    %1688 = vmatprep.subr.mxu0 0.0
    %1689 = vmatpush2.msra.mxu0 0.0
    %1690 = vmatprep.subr.mxu0 0.0
    %1691 = vmatpush2.msra.mxu0 0.0
    %1692 = vmatprep.subr.mxu0 0.0
    %1693 = vmatpush2.msra.mxu0 0.0
    %1694 = vmatprep.subr.mxu0 0.0
    %1695 = vmatpush2.msra.mxu0 0.0
    %1696 = vmatprep.subr.mxu0 0.0
    %1697 = vmatpush2.msra.mxu0 0.0
    %1698 = vmatprep.mubr.f32.mxu0 0.0
    %1699 = vmatmul.mubr.f32.gmra.mxu0 %v1629
    %v1700 = vpop.f32.mrf.mxu0
    %v1701 = vadd.f32 0.0, %v1700
    %v1702 = vpop.f32.mrf.mxu0
    %1703 = vmatprep.mubr.f32.mxu0 0.0
    %1704 = vmatmul.mubr.f32.gmra.mxu0 %v1632
    %v1705 = vpop.f32.mrf.mxu0
    %v1706 = vadd.f32 0.0, %v1705
    %v1707 = vpop.f32.mrf.mxu0
    %1708 = vdwg.mxu0
    %v1710 = vsel %vm112, %v1617, 0
    %v1713 = vsel %vm112, %v1619, 0
    %1715 = vmatprep.subr.mxu0 0.0
    %1716 = vmatpush1.msra.mxu0 0.0
    %1717 = vmatprep.subr.mxu0 0.0
    %1718 = vmatpush1.msra.mxu0 0.0
    %1719 = vmatprep.subr.mxu0 0.0
    %1720 = vmatpush1.msra.mxu0 0.0
    %1721 = vmatprep.subr.mxu0 0.0
    %1722 = vmatpush1.msra.mxu0 0.0
    %1723 = vmatprep.subr.mxu0 0.0
    %1724 = vmatpush1.msra.mxu0 0.0
    %1725 = vmatprep.subr.mxu0 0.0
    %1726 = vmatpush1.msra.mxu0 0.0
    %1727 = vmatprep.subr.mxu0 0.0
    %1728 = vmatpush1.msra.mxu0 0.0
    %1729 = vmatprep.subr.mxu0 0.0
    %1730 = vmatpush1.msra.mxu0 0.0
    %1731 = vmatprep.subr.mxu0 0.0
    %1732 = vmatpush1.msra.mxu0 0.0
    %1733 = vmatprep.subr.mxu0 0.0
    %1734 = vmatpush1.msra.mxu0 0.0
    %1735 = vmatprep.subr.mxu0 0.0
    %1736 = vmatpush1.msra.mxu0 0.0
    %1737 = vmatprep.subr.mxu0 0.0
    %1738 = vmatpush1.msra.mxu0 0.0
    %1739 = vmatprep.subr.mxu0 0.0
    %1740 = vmatpush1.msra.mxu0 0.0
    %1741 = vmatprep.subr.mxu0 0.0
    %1742 = vmatpush1.msra.mxu0 0.0
    %1743 = vmatprep.subr.mxu0 0.0
    %1744 = vmatpush1.msra.mxu0 %v1188
    %1745 = vmatprep.subr.mxu0 0.0
    %1746 = vmatpush1.msra.mxu0 %v1120
    %1747 = vmatprep.subr.mxu0 0.0
    %1748 = vmatpush2.msra.mxu0 0.0
    %1749 = vmatprep.subr.mxu0 0.0
    %1750 = vmatpush2.msra.mxu0 0.0
    %1751 = vmatprep.subr.mxu0 0.0
    %1752 = vmatpush2.msra.mxu0 0.0
    %1753 = vmatprep.subr.mxu0 0.0
    %1754 = vmatpush2.msra.mxu0 0.0
    %1755 = vmatprep.subr.mxu0 0.0
    %1756 = vmatpush2.msra.mxu0 0.0
    %1757 = vmatprep.subr.mxu0 0.0
    %1758 = vmatpush2.msra.mxu0 0.0
    %1759 = vmatprep.subr.mxu0 0.0
    %1760 = vmatpush2.msra.mxu0 0.0
    %1761 = vmatprep.subr.mxu0 0.0
    %1762 = vmatpush2.msra.mxu0 0.0
    %1763 = vmatprep.subr.mxu0 0.0
    %1764 = vmatpush2.msra.mxu0 0.0
    %1765 = vmatprep.subr.mxu0 0.0
    %1766 = vmatpush2.msra.mxu0 0.0
    %1767 = vmatprep.subr.mxu0 0.0
    %1768 = vmatpush2.msra.mxu0 0.0
    %1769 = vmatprep.subr.mxu0 0.0
    %1770 = vmatpush2.msra.mxu0 0.0
    %1771 = vmatprep.subr.mxu0 0.0
    %1772 = vmatpush2.msra.mxu0 0.0
    %1773 = vmatprep.subr.mxu0 0.0
    %1774 = vmatpush2.msra.mxu0 0.0
    %1775 = vmatprep.subr.mxu0 0.0
    %1776 = vmatpush2.msra.mxu0 0.0
    %1777 = vmatprep.subr.mxu0 0.0
    %1778 = vmatpush2.msra.mxu0 0.0
    %1779 = vmatprep.mubr.f32.mxu0 0.0
    %1780 = vmatmul.mubr.f32.gmra.mxu0 %v1710
    %v1781 = vpop.f32.mrf.mxu0
    %v1782 = vadd.f32 0.0, %v1781
    %v1783 = vpop.f32.mrf.mxu0
    %1784 = vmatprep.mubr.f32.mxu0 0.0
    %1785 = vmatmul.mubr.f32.gmra.mxu0 %v1713
    %v1786 = vpop.f32.mrf.mxu0
    %v1787 = vadd.f32 0.0, %v1786
    %v1788 = vpop.f32.mrf.mxu0
    %1789 = vdwg.mxu0
    %v1791 = vsel %vm112, %v1621, 0
    %v1794 = vsel %vm112, %v1623, 0
    %1796 = vmatprep.subr.mxu0 0.0
    %1797 = vmatpush1.msra.mxu0 0.0
    %1798 = vmatprep.subr.mxu0 0.0
    %1799 = vmatpush1.msra.mxu0 0.0
    %1800 = vmatprep.subr.mxu0 0.0
    %1801 = vmatpush1.msra.mxu0 0.0
    %1802 = vmatprep.subr.mxu0 0.0
    %1803 = vmatpush1.msra.mxu0 0.0
    %1804 = vmatprep.subr.mxu0 0.0
    %1805 = vmatpush1.msra.mxu0 0.0
    %1806 = vmatprep.subr.mxu0 0.0
    %1807 = vmatpush1.msra.mxu0 0.0
    %1808 = vmatprep.subr.mxu0 0.0
    %1809 = vmatpush1.msra.mxu0 0.0
    %1810 = vmatprep.subr.mxu0 0.0
    %1811 = vmatpush1.msra.mxu0 0.0
    %1812 = vmatprep.subr.mxu0 0.0
    %1813 = vmatpush1.msra.mxu0 0.0
    %1814 = vmatprep.subr.mxu0 0.0
    %1815 = vmatpush1.msra.mxu0 0.0
    %1816 = vmatprep.subr.mxu0 0.0
    %1817 = vmatpush1.msra.mxu0 0.0
    %1818 = vmatprep.subr.mxu0 0.0
    %1819 = vmatpush1.msra.mxu0 0.0
    %1820 = vmatprep.subr.mxu0 0.0
    %1821 = vmatpush1.msra.mxu0 0.0
    %1822 = vmatprep.subr.mxu0 0.0
    %1823 = vmatpush1.msra.mxu0 0.0
    %1824 = vmatprep.subr.mxu0 0.0
    %1825 = vmatpush1.msra.mxu0 %v1189
    %1826 = vmatprep.subr.mxu0 0.0
    %1827 = vmatpush1.msra.mxu0 %v1121
    %1828 = vmatprep.subr.mxu0 0.0
    %1829 = vmatpush2.msra.mxu0 0.0
    %1830 = vmatprep.subr.mxu0 0.0
    %1831 = vmatpush2.msra.mxu0 0.0
    %1832 = vmatprep.subr.mxu0 0.0
    %1833 = vmatpush2.msra.mxu0 0.0
    %1834 = vmatprep.subr.mxu0 0.0
    %1835 = vmatpush2.msra.mxu0 0.0
    %1836 = vmatprep.subr.mxu0 0.0
    %1837 = vmatpush2.msra.mxu0 0.0
    %1838 = vmatprep.subr.mxu0 0.0
    %1839 = vmatpush2.msra.mxu0 0.0
    %1840 = vmatprep.subr.mxu0 0.0
    %1841 = vmatpush2.msra.mxu0 0.0
    %1842 = vmatprep.subr.mxu0 0.0
    %1843 = vmatpush2.msra.mxu0 0.0
    %1844 = vmatprep.subr.mxu0 0.0
    %1845 = vmatpush2.msra.mxu0 0.0
    %1846 = vmatprep.subr.mxu0 0.0
    %1847 = vmatpush2.msra.mxu0 0.0
    %1848 = vmatprep.subr.mxu0 0.0
    %1849 = vmatpush2.msra.mxu0 0.0
    %1850 = vmatprep.subr.mxu0 0.0
    %1851 = vmatpush2.msra.mxu0 0.0
    %1852 = vmatprep.subr.mxu0 0.0
    %1853 = vmatpush2.msra.mxu0 0.0
    %1854 = vmatprep.subr.mxu0 0.0
    %1855 = vmatpush2.msra.mxu0 0.0
    %1856 = vmatprep.subr.mxu0 0.0
    %1857 = vmatpush2.msra.mxu0 0.0
    %1858 = vmatprep.subr.mxu0 0.0
    %1859 = vmatpush2.msra.mxu0 0.0
    %1860 = vmatprep.mubr.f32.mxu0 0.0
    %1861 = vmatmul.mubr.f32.gmra.mxu0 %v1791
    %v1862 = vpop.f32.mrf.mxu0
    %v1863 = vadd.f32 0.0, %v1862
    %v1864 = vpop.f32.mrf.mxu0
    %1865 = vmatprep.mubr.f32.mxu0 0.0
    %1866 = vmatmul.mubr.f32.gmra.mxu0 %v1794
    %v1867 = vpop.f32.mrf.mxu0
    %v1868 = vadd.f32 0.0, %v1867
    %v1869 = vpop.f32.mrf.mxu0
    %1870 = vdwg.mxu0
    %v1872 = vsel %vm112, %v1625, 0
    %v1875 = vsel %vm112, %v1627, 0
    %1877 = vmatprep.subr.mxu0 0.0
    %1878 = vmatpush1.msra.mxu0 0.0
    %1879 = vmatprep.subr.mxu0 0.0
    %1880 = vmatpush1.msra.mxu0 0.0
    %1881 = vmatprep.subr.mxu0 0.0
    %1882 = vmatpush1.msra.mxu0 0.0
    %1883 = vmatprep.subr.mxu0 0.0
    %1884 = vmatpush1.msra.mxu0 0.0
    %1885 = vmatprep.subr.mxu0 0.0
    %1886 = vmatpush1.msra.mxu0 0.0
    %1887 = vmatprep.subr.mxu0 0.0
    %1888 = vmatpush1.msra.mxu0 0.0
    %1889 = vmatprep.subr.mxu0 0.0
    %1890 = vmatpush1.msra.mxu0 0.0
    %1891 = vmatprep.subr.mxu0 0.0
    %1892 = vmatpush1.msra.mxu0 0.0
    %1893 = vmatprep.subr.mxu0 0.0
    %1894 = vmatpush1.msra.mxu0 0.0
    %1895 = vmatprep.subr.mxu0 0.0
    %1896 = vmatpush1.msra.mxu0 0.0
    %1897 = vmatprep.subr.mxu0 0.0
    %1898 = vmatpush1.msra.mxu0 0.0
    %1899 = vmatprep.subr.mxu0 0.0
    %1900 = vmatpush1.msra.mxu0 0.0
    %1901 = vmatprep.subr.mxu0 0.0
    %1902 = vmatpush1.msra.mxu0 0.0
    %1903 = vmatprep.subr.mxu0 0.0
    %1904 = vmatpush1.msra.mxu0 0.0
    %1905 = vmatprep.subr.mxu0 0.0
    %1906 = vmatpush1.msra.mxu0 %v1190
    %1907 = vmatprep.subr.mxu0 0.0
    %1908 = vmatpush1.msra.mxu0 %v1122
    %1909 = vmatprep.subr.mxu0 0.0
    %1910 = vmatpush2.msra.mxu0 0.0
    %1911 = vmatprep.subr.mxu0 0.0
    %1912 = vmatpush2.msra.mxu0 0.0
    %1913 = vmatprep.subr.mxu0 0.0
    %1914 = vmatpush2.msra.mxu0 0.0
    %1915 = vmatprep.subr.mxu0 0.0
    %1916 = vmatpush2.msra.mxu0 0.0
    %1917 = vmatprep.subr.mxu0 0.0
    %1918 = vmatpush2.msra.mxu0 0.0
    %1919 = vmatprep.subr.mxu0 0.0
    %1920 = vmatpush2.msra.mxu0 0.0
    %1921 = vmatprep.subr.mxu0 0.0
    %1922 = vmatpush2.msra.mxu0 0.0
    %1923 = vmatprep.subr.mxu0 0.0
    %1924 = vmatpush2.msra.mxu0 0.0
    %1925 = vmatprep.subr.mxu0 0.0
    %1926 = vmatpush2.msra.mxu0 0.0
    %1927 = vmatprep.subr.mxu0 0.0
    %1928 = vmatpush2.msra.mxu0 0.0
    %1929 = vmatprep.subr.mxu0 0.0
    %1930 = vmatpush2.msra.mxu0 0.0
    %1931 = vmatprep.subr.mxu0 0.0
    %1932 = vmatpush2.msra.mxu0 0.0
    %1933 = vmatprep.subr.mxu0 0.0
    %1934 = vmatpush2.msra.mxu0 0.0
    %1935 = vmatprep.subr.mxu0 0.0
    %1936 = vmatpush2.msra.mxu0 0.0
    %1937 = vmatprep.subr.mxu0 0.0
    %1938 = vmatpush2.msra.mxu0 0.0
    %1939 = vmatprep.subr.mxu0 0.0
    %1940 = vmatpush2.msra.mxu0 0.0
    %1941 = vmatprep.mubr.f32.mxu0 0.0
    %1942 = vmatmul.mubr.f32.gmra.mxu0 %v1872
    %v1943 = vpop.f32.mrf.mxu0
    %v1944 = vadd.f32 0.0, %v1943
    %v1945 = vpop.f32.mrf.mxu0
    %1946 = vmatprep.mubr.f32.mxu0 0.0
    %1947 = vmatmul.mubr.f32.gmra.mxu0 %v1875
    %v1948 = vpop.f32.mrf.mxu0
    %v1949 = vadd.f32 0.0, %v1948
    %v1950 = vpop.f32.mrf.mxu0
    %1951 = vdwg.mxu0
    %v1952 = vcombine.low %v1701, %v1863
    %v1953 = vcombine.high %v1701, %v1863
    %v1955 = vunpack.c.l.s4 1983009808
    %v1956 = vunpack.c.0.s8 %v1955
    %v1957 = vlaneseq
    %v1958 = vshrl.u32 %v1957, 7
    %v1959 = vsub.s32 %v1956, %v1958
    %v1960 = vrot.slane %v1952, %v1959
    %v1962 = vunpack.c.l.s4 1983009808
    %v1963 = vunpack.c.0.s8 %v1962
    %v1964 = vlaneseq
    %v1965 = vshrl.u32 %v1964, 7
    %v1966 = vsub.s32 %v1963, %v1965
    %v1967 = vrot.slane %v1953, %v1966
    %v1968 = vcombine.low %v1782, %v1944
    %v1969 = vcombine.high %v1782, %v1944
    %v1971 = vunpack.c.l.s4 1983009808
    %v1972 = vunpack.c.0.s8 %v1971
    %v1973 = vlaneseq
    %v1974 = vshrl.u32 %v1973, 7
    %v1975 = vsub.s32 %v1972, %v1974
    %v1976 = vrot.slane %v1968, %v1975
    %v1978 = vunpack.c.l.s4 1983009808
    %v1979 = vunpack.c.0.s8 %v1978
    %v1980 = vlaneseq
    %v1981 = vshrl.u32 %v1980, 7
    %v1982 = vsub.s32 %v1979, %v1981
    %v1983 = vrot.slane %v1969, %v1982
    %v1984 = vcombine.low %v1960, %v1976
    %v1985 = vcombine.high %v1960, %v1976
    %v1987 = vunpack.c.l.s4 1934713408
    %v1988 = vunpack.c.0.s8 %v1987
    %v1989 = vlaneseq
    %v1990 = vshrl.u32 %v1989, 7
    %v1991 = vsub.s32 %v1988, %v1990
    %v1992 = vrot.slane %v1984, %v1991
    %v1994 = vunpack.c.l.s4 1934713408
    %v1995 = vunpack.c.0.s8 %v1994
    %v1996 = vlaneseq
    %v1997 = vshrl.u32 %v1996, 7
    %v1998 = vsub.s32 %v1995, %v1997
    %v1999 = vrot.slane %v1985, %v1998
    %v2000 = vcombine.low %v1967, %v1983
    %v2001 = vcombine.high %v1967, %v1983
    %v2003 = vunpack.c.l.s4 1934713408
    %v2004 = vunpack.c.0.s8 %v2003
    %v2005 = vlaneseq
    %v2006 = vshrl.u32 %v2005, 7
    %v2007 = vsub.s32 %v2004, %v2006
    %v2008 = vrot.slane %v2000, %v2007
    %v2010 = vunpack.c.l.s4 1934713408
    %v2011 = vunpack.c.0.s8 %v2010
    %v2012 = vlaneseq
    %v2013 = vshrl.u32 %v2012, 7
    %v2014 = vsub.s32 %v2011, %v2013
    %v2015 = vrot.slane %v2001, %v2014
    %v2016 = vcombine.high %v1992, 0.0
    %v2017 = vcombine.high %v1999, 0.0
    %v2018 = vcombine.high %v2008, 0.0
    %v2019 = vcombine.high %v2015, 0.0
    %v2020 = vcombine.low %v1706, %v1868
    %v2021 = vcombine.high %v1706, %v1868
    %v2023 = vunpack.c.l.s4 1983009808
    %v2024 = vunpack.c.0.s8 %v2023
    %v2025 = vlaneseq
    %v2026 = vshrl.u32 %v2025, 7
    %v2027 = vsub.s32 %v2024, %v2026
    %v2028 = vrot.slane %v2020, %v2027
    %v2030 = vunpack.c.l.s4 1983009808
    %v2031 = vunpack.c.0.s8 %v2030
    %v2032 = vlaneseq
    %v2033 = vshrl.u32 %v2032, 7
    %v2034 = vsub.s32 %v2031, %v2033
    %v2035 = vrot.slane %v2021, %v2034
    %v2036 = vcombine.low %v1787, %v1949
    %v2037 = vcombine.high %v1787, %v1949
    %v2039 = vunpack.c.l.s4 1983009808
    %v2040 = vunpack.c.0.s8 %v2039
    %v2041 = vlaneseq
    %v2042 = vshrl.u32 %v2041, 7
    %v2043 = vsub.s32 %v2040, %v2042
    %v2044 = vrot.slane %v2036, %v2043
    %v2046 = vunpack.c.l.s4 1983009808
    %v2047 = vunpack.c.0.s8 %v2046
    %v2048 = vlaneseq
    %v2049 = vshrl.u32 %v2048, 7
    %v2050 = vsub.s32 %v2047, %v2049
    %v2051 = vrot.slane %v2037, %v2050
    %v2052 = vcombine.low %v2028, %v2044
    %v2053 = vcombine.high %v2028, %v2044
    %v2055 = vunpack.c.l.s4 1934713408
    %v2056 = vunpack.c.0.s8 %v2055
    %v2057 = vlaneseq
    %v2058 = vshrl.u32 %v2057, 7
    %v2059 = vsub.s32 %v2056, %v2058
    %v2060 = vrot.slane %v2052, %v2059
    %v2062 = vunpack.c.l.s4 1934713408
    %v2063 = vunpack.c.0.s8 %v2062
    %v2064 = vlaneseq
    %v2065 = vshrl.u32 %v2064, 7
    %v2066 = vsub.s32 %v2063, %v2065
    %v2067 = vrot.slane %v2053, %v2066
    %v2068 = vcombine.low %v2035, %v2051
    %v2069 = vcombine.high %v2035, %v2051
    %v2071 = vunpack.c.l.s4 1934713408
    %v2072 = vunpack.c.0.s8 %v2071
    %v2073 = vlaneseq
    %v2074 = vshrl.u32 %v2073, 7
    %v2075 = vsub.s32 %v2072, %v2074
    %v2076 = vrot.slane %v2068, %v2075
    %v2078 = vunpack.c.l.s4 1934713408
    %v2079 = vunpack.c.0.s8 %v2078
    %v2080 = vlaneseq
    %v2081 = vshrl.u32 %v2080, 7
    %v2082 = vsub.s32 %v2079, %v2081
    %v2083 = vrot.slane %v2069, %v2082
    %v2084 = vcombine.high %v2060, 0.0
    %v2085 = vcombine.high %v2067, 0.0
    %v2086 = vcombine.high %v2076, 0.0
    %v2087 = vcombine.high %v2083, 0.0
    %v2088 = vcombine.low %v1992, %v1999
    %v2090 = vunpack.c.l.s4 1983009808
    %v2091 = vunpack.c.0.s8 %v2090
    %v2092 = vlaneseq
    %v2093 = vshrl.u32 %v2092, 7
    %v2094 = vsub.s32 %v2091, %v2093
    %v2095 = vrot.slane %v2088, %v2094
    %v2096 = vcombine.low %v2016, %v2017
    %v2098 = vunpack.c.l.s4 1983009808
    %v2099 = vunpack.c.0.s8 %v2098
    %v2100 = vlaneseq
    %v2101 = vshrl.u32 %v2100, 7
    %v2102 = vsub.s32 %v2099, %v2101
    %v2103 = vrot.slane %v2096, %v2102
    %v2104 = vcombine.low %v2008, %v2015
    %v2106 = vunpack.c.l.s4 1983009808
    %v2107 = vunpack.c.0.s8 %v2106
    %v2108 = vlaneseq
    %v2109 = vshrl.u32 %v2108, 7
    %v2110 = vsub.s32 %v2107, %v2109
    %v2111 = vrot.slane %v2104, %v2110
    %v2112 = vcombine.low %v2018, %v2019
    %v2114 = vunpack.c.l.s4 1983009808
    %v2115 = vunpack.c.0.s8 %v2114
    %v2116 = vlaneseq
    %v2117 = vshrl.u32 %v2116, 7
    %v2118 = vsub.s32 %v2115, %v2117
    %v2119 = vrot.slane %v2112, %v2118
    %v2120 = vcombine.low %v2095, %v2103
    %v2121 = vcombine.high %v2095, %v2103
    %v2123 = vunpack.c.l.s4 1934713408
    %v2124 = vunpack.c.0.s8 %v2123
    %v2125 = vlaneseq
    %v2126 = vshrl.u32 %v2125, 7
    %v2127 = vsub.s32 %v2124, %v2126
    %v2128 = vrot.slane %v2120, %v2127
    %v2130 = vunpack.c.l.s4 1934713408
    %v2131 = vunpack.c.0.s8 %v2130
    %v2132 = vlaneseq
    %v2133 = vshrl.u32 %v2132, 7
    %v2134 = vsub.s32 %v2131, %v2133
    %v2135 = vrot.slane %v2121, %v2134
    %v2136 = vcombine.low %v2111, %v2119
    %v2137 = vcombine.high %v2111, %v2119
    %v2139 = vunpack.c.l.s4 1934713408
    %v2140 = vunpack.c.0.s8 %v2139
    %v2141 = vlaneseq
    %v2142 = vshrl.u32 %v2141, 7
    %v2143 = vsub.s32 %v2140, %v2142
    %v2144 = vrot.slane %v2136, %v2143
    %v2146 = vunpack.c.l.s4 1934713408
    %v2147 = vunpack.c.0.s8 %v2146
    %v2148 = vlaneseq
    %v2149 = vshrl.u32 %v2148, 7
    %v2150 = vsub.s32 %v2147, %v2149
    %v2151 = vrot.slane %v2137, %v2150
    %v2152 = vcombine.low %v2128, %v2144
    %v2153 = vcombine.high %v2128, %v2144
    %v2154 = vcombine.low %v2135, %v2151
    %v2155 = vcombine.high %v2135, %v2151
    %v2156 = vcombine.low %v2060, %v2067
    %v2158 = vunpack.c.l.s4 1983009808
    %v2159 = vunpack.c.0.s8 %v2158
    %v2160 = vlaneseq
    %v2161 = vshrl.u32 %v2160, 7
    %v2162 = vsub.s32 %v2159, %v2161
    %v2163 = vrot.slane %v2156, %v2162
    %v2164 = vcombine.low %v2084, %v2085
    %v2166 = vunpack.c.l.s4 1983009808
    %v2167 = vunpack.c.0.s8 %v2166
    %v2168 = vlaneseq
    %v2169 = vshrl.u32 %v2168, 7
    %v2170 = vsub.s32 %v2167, %v2169
    %v2171 = vrot.slane %v2164, %v2170
    %v2172 = vcombine.low %v2076, %v2083
    %v2174 = vunpack.c.l.s4 1983009808
    %v2175 = vunpack.c.0.s8 %v2174
    %v2176 = vlaneseq
    %v2177 = vshrl.u32 %v2176, 7
    %v2178 = vsub.s32 %v2175, %v2177
    %v2179 = vrot.slane %v2172, %v2178
    %v2180 = vcombine.low %v2086, %v2087
    %v2182 = vunpack.c.l.s4 1983009808
    %v2183 = vunpack.c.0.s8 %v2182
    %v2184 = vlaneseq
    %v2185 = vshrl.u32 %v2184, 7
    %v2186 = vsub.s32 %v2183, %v2185
    %v2187 = vrot.slane %v2180, %v2186
    %v2188 = vcombine.low %v2163, %v2171
    %v2189 = vcombine.high %v2163, %v2171
    %v2191 = vunpack.c.l.s4 1934713408
    %v2192 = vunpack.c.0.s8 %v2191
    %v2193 = vlaneseq
    %v2194 = vshrl.u32 %v2193, 7
    %v2195 = vsub.s32 %v2192, %v2194
    %v2196 = vrot.slane %v2188, %v2195
    %v2198 = vunpack.c.l.s4 1934713408
    %v2199 = vunpack.c.0.s8 %v2198
    %v2200 = vlaneseq
    %v2201 = vshrl.u32 %v2200, 7
    %v2202 = vsub.s32 %v2199, %v2201
    %v2203 = vrot.slane %v2189, %v2202
    %v2204 = vcombine.low %v2179, %v2187
    %v2205 = vcombine.high %v2179, %v2187
    %v2207 = vunpack.c.l.s4 1934713408
    %v2208 = vunpack.c.0.s8 %v2207
    %v2209 = vlaneseq
    %v2210 = vshrl.u32 %v2209, 7
    %v2211 = vsub.s32 %v2208, %v2210
    %v2212 = vrot.slane %v2204, %v2211
    %v2214 = vunpack.c.l.s4 1934713408
    %v2215 = vunpack.c.0.s8 %v2214
    %v2216 = vlaneseq
    %v2217 = vshrl.u32 %v2216, 7
    %v2218 = vsub.s32 %v2215, %v2217
    %v2219 = vrot.slane %v2205, %v2218
    %v2220 = vcombine.low %v2196, %v2212
    %v2221 = vcombine.high %v2196, %v2212
    %v2222 = vcombine.low %v2203, %v2219
    %v2223 = vcombine.high %v2203, %v2219
    %2226 = vrot.lane.b32.xlu0 %v2153, 8
    %v2227 = vpop.permute.xlu0 %2226
    %2228 = vrot.lane.b32.xlu0 %v2221, 8
    %v2229 = vpop.permute.xlu0 %2228
    %2234 = vrot.lane.b32.xlu0 %v2154, 16
    %v2235 = vpop.permute.xlu0 %2234
    %2236 = vrot.lane.b32.xlu0 %v2222, 16
    %v2237 = vpop.permute.xlu0 %2236
    %2242 = vrot.lane.b32.xlu0 %v2155, 24
    %v2243 = vpop.permute.xlu0 %2242
    %2244 = vrot.lane.b32.xlu0 %v2223, 24
    %v2245 = vpop.permute.xlu0 %2244
    %v2248 = vsel %vm1191, %v2152, %v2227
    %v2249 = vsel %vm1191, %v2220, %v2229
    %v2250 = vsel %vm112, %v2248, %v2235
    %v2251 = vsel %vm112, %v2249, %v2237
    %vm2252 = vcmask 195584
    %v2253 = vsel %vm2252, %v2250, %v2243
    %v2254 = vsel %vm2252, %v2251, %v2245
    %v2255 = vld [vmem:[%s4] sm:$0xff]
    %v2256 = vld [vmem:[%s4 + $0x8] sm:$0xff]
    %v2257 = vld [vmem:[%s4 + $0x10] sm:$0xff]
    %v2258 = vld [vmem:[%s4 + $0x18] sm:$0xff]
    %v2259 = vlaneseq
    %v2260 = vshrl.u32 %v2259, 7
    %v2261 = vsub.s32 0, %v2260
    %v2262 = vrot.slane %v194, %v2261
    %v2264 = vsel %vm209, %v2253, 0
    %v2267 = vsel %vm209, %v2254, 0
    %2269 = vmatprep.subr.mxu0 0.0
    %2270 = vmatpush1.msra.mxu0 0.0
    %2271 = vmatprep.subr.mxu0 0.0
    %2272 = vmatpush1.msra.mxu0 0.0
    %2273 = vmatprep.subr.mxu0 0.0
    %2274 = vmatpush1.msra.mxu0 0.0
    %2275 = vmatprep.subr.mxu0 0.0
    %2276 = vmatpush1.msra.mxu0 0.0
    %2277 = vmatprep.subr.mxu0 0.0
    %2278 = vmatpush1.msra.mxu0 0.0
    %2279 = vmatprep.subr.mxu0 0.0
    %2280 = vmatpush1.msra.mxu0 0.0
    %2281 = vmatprep.subr.mxu0 0.0
    %2282 = vmatpush1.msra.mxu0 0.0
    %2283 = vmatprep.subr.mxu0 0.0
    %2284 = vmatpush1.msra.mxu0 0.0
    %2285 = vmatprep.subr.mxu0 0.0
    %2286 = vmatpush1.msra.mxu0 0.0
    %2287 = vmatprep.subr.mxu0 0.0
    %2288 = vmatpush1.msra.mxu0 0.0
    %2289 = vmatprep.subr.mxu0 0.0
    %2290 = vmatpush1.msra.mxu0 0.0
    %2291 = vmatprep.subr.mxu0 0.0
    %2292 = vmatpush1.msra.mxu0 0.0
    %2293 = vmatprep.subr.mxu0 0.0
    %2294 = vmatpush1.msra.mxu0 %v2258
    %2295 = vmatprep.subr.mxu0 0.0
    %2296 = vmatpush1.msra.mxu0 %v2257
    %2297 = vmatprep.subr.mxu0 0.0
    %2298 = vmatpush1.msra.mxu0 %v2256
    %2299 = vmatprep.subr.mxu0 0.0
    %2300 = vmatpush1.msra.mxu0 %v2255
    %2301 = vmatprep.subr.mxu0 0.0
    %2302 = vmatpush2.msra.mxu0 0.0
    %2303 = vmatprep.subr.mxu0 0.0
    %2304 = vmatpush2.msra.mxu0 0.0
    %2305 = vmatprep.subr.mxu0 0.0
    %2306 = vmatpush2.msra.mxu0 0.0
    %2307 = vmatprep.subr.mxu0 0.0
    %2308 = vmatpush2.msra.mxu0 0.0
    %2309 = vmatprep.subr.mxu0 0.0
    %2310 = vmatpush2.msra.mxu0 0.0
    %2311 = vmatprep.subr.mxu0 0.0
    %2312 = vmatpush2.msra.mxu0 0.0
    %2313 = vmatprep.subr.mxu0 0.0
    %2314 = vmatpush2.msra.mxu0 0.0
    %2315 = vmatprep.subr.mxu0 0.0
    %2316 = vmatpush2.msra.mxu0 0.0
    %2317 = vmatprep.subr.mxu0 0.0
    %2318 = vmatpush2.msra.mxu0 0.0
    %2319 = vmatprep.subr.mxu0 0.0
    %2320 = vmatpush2.msra.mxu0 0.0
    %2321 = vmatprep.subr.mxu0 0.0
    %2322 = vmatpush2.msra.mxu0 0.0
    %2323 = vmatprep.subr.mxu0 0.0
    %2324 = vmatpush2.msra.mxu0 0.0
    %2325 = vmatprep.subr.mxu0 0.0
    %2326 = vmatpush2.msra.mxu0 0.0
    %2327 = vmatprep.subr.mxu0 0.0
    %2328 = vmatpush2.msra.mxu0 0.0
    %2329 = vmatprep.subr.mxu0 0.0
    %2330 = vmatpush2.msra.mxu0 0.0
    %2331 = vmatprep.subr.mxu0 0.0
    %2332 = vmatpush2.msra.mxu0 0.0
    %2333 = vmatprep.mubr.f32.mxu0 0.0
    %2334 = vmatmul.mubr.f32.gmra.mxu0 %v2264
    %v2335 = vpop.f32.mrf.mxu0
    %v2336 = vadd.f32 %v2262, %v2335
    %v2337 = vpop.f32.mrf.mxu0
    %2338 = vmatprep.mubr.f32.mxu0 0.0
    %2339 = vmatmul.mubr.f32.gmra.mxu0 %v2267
    %v2340 = vpop.f32.mrf.mxu0
    %v2341 = vadd.f32 %v2262, %v2340
    %v2342 = vpop.f32.mrf.mxu0
    %2343 = vdwg.mxu0
    %v2344 = vadd.f32 %v186, %v2336
    %v2345 = vadd.f32 %v191, %v2341
    %v2346 = vsel %vm209, %v2344, 0.0
    %2347 = vadd.xlane.f32.xlu0 %v2346
    %v2348 = vpop.xlane.xlu0 %2347
    %v2349 = vsel %vm209, %v2345, 0.0
    %2350 = vadd.xlane.f32.xlu0 %v2349
    %v2351 = vpop.xlane.xlu0 %2350
    %v2352 = vrcp.pop 32.0
    %v2353 = vmul.f32 %v2348, %v2352
    %v2354 = vmul.f32 %v2351, %v2352
    %v2355 = vsub.f32 %v2344, %v2353
    %v2356 = vsub.f32 %v2345, %v2354
    %v2357 = vmul.f32 %v2355, %v2355
    %v2358 = vmul.f32 %v2356, %v2356
    %v2359 = vsel %vm209, %v2357, 0.0
    %2360 = vadd.xlane.f32.xlu0 %v2359
    %v2361 = vpop.xlane.xlu0 %2360
    %v2362 = vsel %vm209, %v2358, 0.0
    %2363 = vadd.xlane.f32.xlu0 %v2362
    %v2364 = vpop.xlane.xlu0 %2363
    %v2365 = vmul.f32 %v2361, %v2352
    %v2366 = vmul.f32 %v2364, %v2352
    %v2367 = vadd.f32 %v2365, 1e-05
    %v2368 = vadd.f32 %v2366, 1e-05
    %v2369 = vrsqrt.pop %v2367
    %v2370 = vrsqrt.pop %v2368
    %v2371 = vmul.f32 %v2355, %v2369
    %v2372 = vmul.f32 %v2356, %v2370
    %v2373 = vlaneseq
    %v2374 = vshrl.u32 %v2373, 7
    %v2375 = vsub.s32 0, %v2374
    %v2376 = vrot.slane %v195, %v2375
    %v2377 = vmul.f32 %v2371, %v2376
    %v2378 = vmul.f32 %v2372, %v2376
    %v2379 = vlaneseq
    %v2380 = vshrl.u32 %v2379, 7
    %v2381 = vsub.s32 0, %v2380
    %v2382 = vrot.slane %v196, %v2381
    %v2383 = vadd.f32 %v2377, %v2382
    %v2384 = vadd.f32 %v2378, %v2382
    %v2385 = vld [vmem:[%s5] sm:$0xff]
    %v2386 = vld [vmem:[%s5 + $0x8] sm:$0xff]
    %v2387 = vld [vmem:[%s5 + $0x10] sm:$0xff]
    %v2388 = vld [vmem:[%s5 + $0x18] sm:$0xff]
    %v2389 = vld [vmem:[%s6] sm:$0x1]
    %v2390 = vlaneseq
    %v2391 = vshrl.u32 %v2390, 7
    %v2392 = vsub.s32 0, %v2391
    %v2393 = vrot.slane %v2389, %v2392
    %v2395 = vsel %vm209, %v2383, 0
    %v2398 = vsel %vm209, %v2384, 0
    %2400 = vmatprep.subr.mxu0 0.0
    %2401 = vmatpush1.msra.mxu0 0.0
    %2402 = vmatprep.subr.mxu0 0.0
    %2403 = vmatpush1.msra.mxu0 0.0
    %2404 = vmatprep.subr.mxu0 0.0
    %2405 = vmatpush1.msra.mxu0 0.0
    %2406 = vmatprep.subr.mxu0 0.0
    %2407 = vmatpush1.msra.mxu0 0.0
    %2408 = vmatprep.subr.mxu0 0.0
    %2409 = vmatpush1.msra.mxu0 0.0
    %2410 = vmatprep.subr.mxu0 0.0
    %2411 = vmatpush1.msra.mxu0 0.0
    %2412 = vmatprep.subr.mxu0 0.0
    %2413 = vmatpush1.msra.mxu0 0.0
    %2414 = vmatprep.subr.mxu0 0.0
    %2415 = vmatpush1.msra.mxu0 0.0
    %2416 = vmatprep.subr.mxu0 0.0
    %2417 = vmatpush1.msra.mxu0 0.0
    %2418 = vmatprep.subr.mxu0 0.0
    %2419 = vmatpush1.msra.mxu0 0.0
    %2420 = vmatprep.subr.mxu0 0.0
    %2421 = vmatpush1.msra.mxu0 0.0
    %2422 = vmatprep.subr.mxu0 0.0
    %2423 = vmatpush1.msra.mxu0 0.0
    %2424 = vmatprep.subr.mxu0 0.0
    %2425 = vmatpush1.msra.mxu0 %v2388
    %2426 = vmatprep.subr.mxu0 0.0
    %2427 = vmatpush1.msra.mxu0 %v2387
    %2428 = vmatprep.subr.mxu0 0.0
    %2429 = vmatpush1.msra.mxu0 %v2386
    %2430 = vmatprep.subr.mxu0 0.0
    %2431 = vmatpush1.msra.mxu0 %v2385
    %2432 = vmatprep.subr.mxu0 0.0
    %2433 = vmatpush2.msra.mxu0 0.0
    %2434 = vmatprep.subr.mxu0 0.0
    %2435 = vmatpush2.msra.mxu0 0.0
    %2436 = vmatprep.subr.mxu0 0.0
    %2437 = vmatpush2.msra.mxu0 0.0
    %2438 = vmatprep.subr.mxu0 0.0
    %2439 = vmatpush2.msra.mxu0 0.0
    %2440 = vmatprep.subr.mxu0 0.0
    %2441 = vmatpush2.msra.mxu0 0.0
    %2442 = vmatprep.subr.mxu0 0.0
    %2443 = vmatpush2.msra.mxu0 0.0
    %2444 = vmatprep.subr.mxu0 0.0
    %2445 = vmatpush2.msra.mxu0 0.0
    %2446 = vmatprep.subr.mxu0 0.0
    %2447 = vmatpush2.msra.mxu0 0.0
    %2448 = vmatprep.subr.mxu0 0.0
    %2449 = vmatpush2.msra.mxu0 0.0
    %2450 = vmatprep.subr.mxu0 0.0
    %2451 = vmatpush2.msra.mxu0 0.0
    %2452 = vmatprep.subr.mxu0 0.0
    %2453 = vmatpush2.msra.mxu0 0.0
    %2454 = vmatprep.subr.mxu0 0.0
    %2455 = vmatpush2.msra.mxu0 0.0
    %2456 = vmatprep.subr.mxu0 0.0
    %2457 = vmatpush2.msra.mxu0 0.0
    %2458 = vmatprep.subr.mxu0 0.0
    %2459 = vmatpush2.msra.mxu0 0.0
    %2460 = vmatprep.subr.mxu0 0.0
    %2461 = vmatpush2.msra.mxu0 0.0
    %2462 = vmatprep.subr.mxu0 0.0
    %2463 = vmatpush2.msra.mxu0 0.0
    %2464 = vmatprep.mubr.f32.mxu0 0.0
    %2465 = vmatmul.mubr.f32.gmra.mxu0 %v2395
    %v2466 = vpop.f32.mrf.mxu0
    %v2467 = vadd.f32 %v2393, %v2466
    %v2468 = vpop.f32.mrf.mxu0
    %2469 = vmatprep.mubr.f32.mxu0 0.0
    %2470 = vmatmul.mubr.f32.gmra.mxu0 %v2398
    %v2471 = vpop.f32.mrf.mxu0
    %v2472 = vadd.f32 %v2393, %v2471
    %v2473 = vpop.f32.mrf.mxu0
    %2474 = vdwg.mxu0
    %v2475 = vmax.f32 %v2467, 0.0
    %v2476 = vmax.f32 %v2472, 0.0
    %v2477 = vld [vmem:[%s7] sm:$0xff]
    %v2478 = vld [vmem:[%s7 + $0x8] sm:$0xff]
    %v2479 = vld [vmem:[%s7 + $0x10] sm:$0xff]
    %v2480 = vld [vmem:[%s7 + $0x18] sm:$0xff]
    %v2481 = vld [vmem:[%s7 + $0x20] sm:$0xff]
    %v2482 = vld [vmem:[%s7 + $0x28] sm:$0xff]
    %v2483 = vld [vmem:[%s7 + $0x30] sm:$0xff]
    %v2484 = vld [vmem:[%s7 + $0x38] sm:$0xff]
    %v2485 = vlaneseq
    %v2486 = vshrl.u32 %v2485, 7
    %v2487 = vsub.s32 0, %v2486
    %v2488 = vrot.slane %v197, %v2487
    %vm2489 = vcmask 523264
    %v2491 = vsel %vm2489, %v2475, 0
    %v2494 = vsel %vm2489, %v2476, 0
    %2496 = vmatprep.subr.mxu0 0.0
    %2497 = vmatpush1.msra.mxu0 0.0
    %2498 = vmatprep.subr.mxu0 0.0
    %2499 = vmatpush1.msra.mxu0 0.0
    %2500 = vmatprep.subr.mxu0 0.0
    %2501 = vmatpush1.msra.mxu0 0.0
    %2502 = vmatprep.subr.mxu0 0.0
    %2503 = vmatpush1.msra.mxu0 0.0
    %2504 = vmatprep.subr.mxu0 0.0
    %2505 = vmatpush1.msra.mxu0 0.0
    %2506 = vmatprep.subr.mxu0 0.0
    %2507 = vmatpush1.msra.mxu0 0.0
    %2508 = vmatprep.subr.mxu0 0.0
    %2509 = vmatpush1.msra.mxu0 0.0
    %2510 = vmatprep.subr.mxu0 0.0
    %2511 = vmatpush1.msra.mxu0 0.0
    %2512 = vmatprep.subr.mxu0 0.0
    %2513 = vmatpush1.msra.mxu0 %v2484
    %2514 = vmatprep.subr.mxu0 0.0
    %2515 = vmatpush1.msra.mxu0 %v2483
    %2516 = vmatprep.subr.mxu0 0.0
    %2517 = vmatpush1.msra.mxu0 %v2482
    %2518 = vmatprep.subr.mxu0 0.0
    %2519 = vmatpush1.msra.mxu0 %v2481
    %2520 = vmatprep.subr.mxu0 0.0
    %2521 = vmatpush1.msra.mxu0 %v2480
    %2522 = vmatprep.subr.mxu0 0.0
    %2523 = vmatpush1.msra.mxu0 %v2479
    %2524 = vmatprep.subr.mxu0 0.0
    %2525 = vmatpush1.msra.mxu0 %v2478
    %2526 = vmatprep.subr.mxu0 0.0
    %2527 = vmatpush1.msra.mxu0 %v2477
    %2528 = vmatprep.subr.mxu0 0.0
    %2529 = vmatpush2.msra.mxu0 0.0
    %2530 = vmatprep.subr.mxu0 0.0
    %2531 = vmatpush2.msra.mxu0 0.0
    %2532 = vmatprep.subr.mxu0 0.0
    %2533 = vmatpush2.msra.mxu0 0.0
    %2534 = vmatprep.subr.mxu0 0.0
    %2535 = vmatpush2.msra.mxu0 0.0
    %2536 = vmatprep.subr.mxu0 0.0
    %2537 = vmatpush2.msra.mxu0 0.0
    %2538 = vmatprep.subr.mxu0 0.0
    %2539 = vmatpush2.msra.mxu0 0.0
    %2540 = vmatprep.subr.mxu0 0.0
    %2541 = vmatpush2.msra.mxu0 0.0
    %2542 = vmatprep.subr.mxu0 0.0
    %2543 = vmatpush2.msra.mxu0 0.0
    %2544 = vmatprep.subr.mxu0 0.0
    %2545 = vmatpush2.msra.mxu0 0.0
    %2546 = vmatprep.subr.mxu0 0.0
    %2547 = vmatpush2.msra.mxu0 0.0
    %2548 = vmatprep.subr.mxu0 0.0
    %2549 = vmatpush2.msra.mxu0 0.0
    %2550 = vmatprep.subr.mxu0 0.0
    %2551 = vmatpush2.msra.mxu0 0.0
    %2552 = vmatprep.subr.mxu0 0.0
    %2553 = vmatpush2.msra.mxu0 0.0
    %2554 = vmatprep.subr.mxu0 0.0
    %2555 = vmatpush2.msra.mxu0 0.0
    %2556 = vmatprep.subr.mxu0 0.0
    %2557 = vmatpush2.msra.mxu0 0.0
    %2558 = vmatprep.subr.mxu0 0.0
    %2559 = vmatpush2.msra.mxu0 0.0
    %2560 = vmatprep.mubr.f32.mxu0 0.0
    %2561 = vmatmul.mubr.f32.gmra.mxu0 %v2491
    %v2562 = vpop.f32.mrf.mxu0
    %v2563 = vadd.f32 %v2488, %v2562
    %v2564 = vpop.f32.mrf.mxu0
    %2565 = vmatprep.mubr.f32.mxu0 0.0
    %2566 = vmatmul.mubr.f32.gmra.mxu0 %v2494
    %v2567 = vpop.f32.mrf.mxu0
    %v2568 = vadd.f32 %v2488, %v2567
    %v2569 = vpop.f32.mrf.mxu0
    %2570 = vdwg.mxu0
    %v2571 = vadd.f32 %v2383, %v2563
    %v2572 = vadd.f32 %v2384, %v2568
    %v2573 = vsel %vm209, %v2571, 0.0
    %2574 = vadd.xlane.f32.xlu0 %v2573
    %v2575 = vpop.xlane.xlu0 %2574
    %v2576 = vsel %vm209, %v2572, 0.0
    %2577 = vadd.xlane.f32.xlu0 %v2576
    %v2578 = vpop.xlane.xlu0 %2577
    %v2579 = vmul.f32 %v2575, %v2352
    %v2580 = vmul.f32 %v2578, %v2352
    %v2581 = vsub.f32 %v2571, %v2579
    %v2582 = vsub.f32 %v2572, %v2580
    %v2583 = vmul.f32 %v2581, %v2581
    %v2584 = vmul.f32 %v2582, %v2582
    %v2585 = vsel %vm209, %v2583, 0.0
    %2586 = vadd.xlane.f32.xlu0 %v2585
    %v2587 = vpop.xlane.xlu0 %2586
    %v2588 = vsel %vm209, %v2584, 0.0
    %2589 = vadd.xlane.f32.xlu0 %v2588
    %v2590 = vpop.xlane.xlu0 %2589
    %v2591 = vmul.f32 %v2587, %v2352
    %v2592 = vmul.f32 %v2590, %v2352
    %v2593 = vadd.f32 %v2591, 1e-05
    %v2594 = vadd.f32 %v2592, 1e-05
    %v2595 = vrsqrt.pop %v2593
    %v2596 = vrsqrt.pop %v2594
    %v2597 = vmul.f32 %v2581, %v2595
    %v2598 = vmul.f32 %v2582, %v2596
    %v2599 = vlaneseq
    %v2600 = vshrl.u32 %v2599, 7
    %v2601 = vsub.s32 0, %v2600
    %v2602 = vrot.slane %v198, %v2601
    %v2603 = vmul.f32 %v2597, %v2602
    %v2604 = vmul.f32 %v2598, %v2602
    %v2605 = vlaneseq
    %v2606 = vshrl.u32 %v2605, 7
    %v2607 = vsub.s32 0, %v2606
    %v2608 = vrot.slane %v199, %v2607
    %v2609 = vadd.f32 %v2603, %v2608
    %v2610 = vadd.f32 %v2604, %v2608
    %v2611 = vld [vmem:[#allocation7 + $0x7] sm:$0x1]
    %v2612 = vld [vmem:[#allocation7 + $0x8] sm:$0x1]
    %v2613 = vld [vmem:[#allocation7 + $0x9] sm:$0x1]
    %v2614 = vld [vmem:[#allocation7 + $0xa] sm:$0x1]
    %v2615 = vld [vmem:[#allocation7 + $0xb] sm:$0x1]
    %v2616 = vld [vmem:[#allocation7 + $0xc] sm:$0x1]
    %s2617 = scalar_lea.vmem %s2, 32
    %v2618 = vld [vmem:[%s2617] sm:$0xff]
    %v2619 = vld [vmem:[%s2617 + $0x8] sm:$0xff]
    %v2620 = vld [vmem:[%s2617 + $0x10] sm:$0xff]
    %v2621 = vld [vmem:[%s2617 + $0x18] sm:$0xff]
    %v2622 = vld [vmem:[%s3 + $0x1] sm:$0x1]
    %v2623 = vlaneseq
    %v2624 = vshrl.u32 %v2623, 7
    %v2625 = vsub.s32 0, %v2624
    %v2626 = vrot.slane %v2622, %v2625
    %v2628 = vsel %vm209, %v2609, 0
    %v2631 = vsel %vm209, %v2610, 0
    %2633 = vmatprep.subr.mxu0 0.0
    %2634 = vmatpush1.msra.mxu0 0.0
    %2635 = vmatprep.subr.mxu0 0.0
    %2636 = vmatpush1.msra.mxu0 0.0
    %2637 = vmatprep.subr.mxu0 0.0
    %2638 = vmatpush1.msra.mxu0 0.0
    %2639 = vmatprep.subr.mxu0 0.0
    %2640 = vmatpush1.msra.mxu0 0.0
    %2641 = vmatprep.subr.mxu0 0.0
    %2642 = vmatpush1.msra.mxu0 0.0
    %2643 = vmatprep.subr.mxu0 0.0
    %2644 = vmatpush1.msra.mxu0 0.0
    %2645 = vmatprep.subr.mxu0 0.0
    %2646 = vmatpush1.msra.mxu0 0.0
    %2647 = vmatprep.subr.mxu0 0.0
    %2648 = vmatpush1.msra.mxu0 0.0
    %2649 = vmatprep.subr.mxu0 0.0
    %2650 = vmatpush1.msra.mxu0 0.0
    %2651 = vmatprep.subr.mxu0 0.0
    %2652 = vmatpush1.msra.mxu0 0.0
    %2653 = vmatprep.subr.mxu0 0.0
    %2654 = vmatpush1.msra.mxu0 0.0
    %2655 = vmatprep.subr.mxu0 0.0
    %2656 = vmatpush1.msra.mxu0 0.0
    %2657 = vmatprep.subr.mxu0 0.0
    %2658 = vmatpush1.msra.mxu0 %v2621
    %2659 = vmatprep.subr.mxu0 0.0
    %2660 = vmatpush1.msra.mxu0 %v2620
    %2661 = vmatprep.subr.mxu0 0.0
    %2662 = vmatpush1.msra.mxu0 %v2619
    %2663 = vmatprep.subr.mxu0 0.0
    %2664 = vmatpush1.msra.mxu0 %v2618
    %2665 = vmatprep.subr.mxu0 0.0
    %2666 = vmatpush2.msra.mxu0 0.0
    %2667 = vmatprep.subr.mxu0 0.0
    %2668 = vmatpush2.msra.mxu0 0.0
    %2669 = vmatprep.subr.mxu0 0.0
    %2670 = vmatpush2.msra.mxu0 0.0
    %2671 = vmatprep.subr.mxu0 0.0
    %2672 = vmatpush2.msra.mxu0 0.0
    %2673 = vmatprep.subr.mxu0 0.0
    %2674 = vmatpush2.msra.mxu0 0.0
    %2675 = vmatprep.subr.mxu0 0.0
    %2676 = vmatpush2.msra.mxu0 0.0
    %2677 = vmatprep.subr.mxu0 0.0
    %2678 = vmatpush2.msra.mxu0 0.0
    %2679 = vmatprep.subr.mxu0 0.0
    %2680 = vmatpush2.msra.mxu0 0.0
    %2681 = vmatprep.subr.mxu0 0.0
    %2682 = vmatpush2.msra.mxu0 0.0
    %2683 = vmatprep.subr.mxu0 0.0
    %2684 = vmatpush2.msra.mxu0 0.0
    %2685 = vmatprep.subr.mxu0 0.0
    %2686 = vmatpush2.msra.mxu0 0.0
    %2687 = vmatprep.subr.mxu0 0.0
    %2688 = vmatpush2.msra.mxu0 0.0
    %2689 = vmatprep.subr.mxu0 0.0
    %2690 = vmatpush2.msra.mxu0 0.0
    %2691 = vmatprep.subr.mxu0 0.0
    %2692 = vmatpush2.msra.mxu0 0.0
    %2693 = vmatprep.subr.mxu0 0.0
    %2694 = vmatpush2.msra.mxu0 0.0
    %2695 = vmatprep.subr.mxu0 0.0
    %2696 = vmatpush2.msra.mxu0 0.0
    %2697 = vmatprep.mubr.f32.mxu0 0.0
    %2698 = vmatmul.mubr.f32.gmra.mxu0 %v2628
    %v2699 = vpop.f32.mrf.mxu0
    %v2700 = vadd.f32 %v2626, %v2699
    %v2701 = vpop.f32.mrf.mxu0
    %2702 = vmatprep.mubr.f32.mxu0 0.0
    %2703 = vmatmul.mubr.f32.gmra.mxu0 %v2631
    %v2704 = vpop.f32.mrf.mxu0
    %v2705 = vadd.f32 %v2626, %v2704
    %v2706 = vpop.f32.mrf.mxu0
    %2707 = vdwg.mxu0
    %v2708 = vmul.f32 %v2700, 0.35355338
    %v2709 = vmul.f32 %v2705, 0.35355338
    %2712 = vrot.lane.b32.xlu0 %v2708, 120
    %v2713 = vpop.permute.xlu0 %2712
    %2714 = vrot.lane.b32.xlu0 %v2709, 120
    %v2715 = vpop.permute.xlu0 %2714
    %2718 = vrot.lane.b32.xlu0 %v2708, 112
    %v2719 = vpop.permute.xlu0 %2718
    %2720 = vrot.lane.b32.xlu0 %v2709, 112
    %v2721 = vpop.permute.xlu0 %2720
    %2724 = vrot.lane.b32.xlu0 %v2708, 104
    %v2725 = vpop.permute.xlu0 %2724
    %2726 = vrot.lane.b32.xlu0 %v2709, 104
    %v2727 = vpop.permute.xlu0 %2726
    %v2730 = vcombine.low %v2708, %v2719
    %v2731 = vcombine.high %v2708, %v2719
    %v2733 = vunpack.c.l.s4 1983009808
    %v2734 = vunpack.c.0.s8 %v2733
    %v2735 = vlaneseq
    %v2736 = vshrl.u32 %v2735, 7
    %v2737 = vsub.s32 %v2734, %v2736
    %v2738 = vrot.slane %v2730, %v2737
    %v2740 = vunpack.c.l.s4 1983009808
    %v2741 = vunpack.c.0.s8 %v2740
    %v2742 = vlaneseq
    %v2743 = vshrl.u32 %v2742, 7
    %v2744 = vsub.s32 %v2741, %v2743
    %v2745 = vrot.slane %v2731, %v2744
    %v2746 = vcombine.low %v2713, %v2725
    %v2747 = vcombine.high %v2713, %v2725
    %v2749 = vunpack.c.l.s4 1983009808
    %v2750 = vunpack.c.0.s8 %v2749
    %v2751 = vlaneseq
    %v2752 = vshrl.u32 %v2751, 7
    %v2753 = vsub.s32 %v2750, %v2752
    %v2754 = vrot.slane %v2746, %v2753
    %v2756 = vunpack.c.l.s4 1983009808
    %v2757 = vunpack.c.0.s8 %v2756
    %v2758 = vlaneseq
    %v2759 = vshrl.u32 %v2758, 7
    %v2760 = vsub.s32 %v2757, %v2759
    %v2761 = vrot.slane %v2747, %v2760
    %v2762 = vcombine.low %v2738, %v2754
    %v2763 = vcombine.high %v2738, %v2754
    %v2765 = vunpack.c.l.s4 1934713408
    %v2766 = vunpack.c.0.s8 %v2765
    %v2767 = vlaneseq
    %v2768 = vshrl.u32 %v2767, 7
    %v2769 = vsub.s32 %v2766, %v2768
    %v2770 = vrot.slane %v2762, %v2769
    %v2772 = vunpack.c.l.s4 1934713408
    %v2773 = vunpack.c.0.s8 %v2772
    %v2774 = vlaneseq
    %v2775 = vshrl.u32 %v2774, 7
    %v2776 = vsub.s32 %v2773, %v2775
    %v2777 = vrot.slane %v2763, %v2776
    %v2778 = vcombine.low %v2745, %v2761
    %v2779 = vcombine.high %v2745, %v2761
    %v2781 = vunpack.c.l.s4 1934713408
    %v2782 = vunpack.c.0.s8 %v2781
    %v2783 = vlaneseq
    %v2784 = vshrl.u32 %v2783, 7
    %v2785 = vsub.s32 %v2782, %v2784
    %v2786 = vrot.slane %v2778, %v2785
    %v2788 = vunpack.c.l.s4 1934713408
    %v2789 = vunpack.c.0.s8 %v2788
    %v2790 = vlaneseq
    %v2791 = vshrl.u32 %v2790, 7
    %v2792 = vsub.s32 %v2789, %v2791
    %v2793 = vrot.slane %v2779, %v2792
    %v2794 = vcombine.high %v2770, 0.0
    %v2795 = vcombine.high %v2777, 0.0
    %v2796 = vcombine.high %v2786, 0.0
    %v2797 = vcombine.high %v2793, 0.0
    %v2798 = vcombine.low %v2709, %v2721
    %v2799 = vcombine.high %v2709, %v2721
    %v2801 = vunpack.c.l.s4 1983009808
    %v2802 = vunpack.c.0.s8 %v2801
    %v2803 = vlaneseq
    %v2804 = vshrl.u32 %v2803, 7
    %v2805 = vsub.s32 %v2802, %v2804
    %v2806 = vrot.slane %v2798, %v2805
    %v2808 = vunpack.c.l.s4 1983009808
    %v2809 = vunpack.c.0.s8 %v2808
    %v2810 = vlaneseq
    %v2811 = vshrl.u32 %v2810, 7
    %v2812 = vsub.s32 %v2809, %v2811
    %v2813 = vrot.slane %v2799, %v2812
    %v2814 = vcombine.low %v2715, %v2727
    %v2815 = vcombine.high %v2715, %v2727
    %v2817 = vunpack.c.l.s4 1983009808
    %v2818 = vunpack.c.0.s8 %v2817
    %v2819 = vlaneseq
    %v2820 = vshrl.u32 %v2819, 7
    %v2821 = vsub.s32 %v2818, %v2820
    %v2822 = vrot.slane %v2814, %v2821
    %v2824 = vunpack.c.l.s4 1983009808
    %v2825 = vunpack.c.0.s8 %v2824
    %v2826 = vlaneseq
    %v2827 = vshrl.u32 %v2826, 7
    %v2828 = vsub.s32 %v2825, %v2827
    %v2829 = vrot.slane %v2815, %v2828
    %v2830 = vcombine.low %v2806, %v2822
    %v2831 = vcombine.high %v2806, %v2822
    %v2833 = vunpack.c.l.s4 1934713408
    %v2834 = vunpack.c.0.s8 %v2833
    %v2835 = vlaneseq
    %v2836 = vshrl.u32 %v2835, 7
    %v2837 = vsub.s32 %v2834, %v2836
    %v2838 = vrot.slane %v2830, %v2837
    %v2840 = vunpack.c.l.s4 1934713408
    %v2841 = vunpack.c.0.s8 %v2840
    %v2842 = vlaneseq
    %v2843 = vshrl.u32 %v2842, 7
    %v2844 = vsub.s32 %v2841, %v2843
    %v2845 = vrot.slane %v2831, %v2844
    %v2846 = vcombine.low %v2813, %v2829
    %v2847 = vcombine.high %v2813, %v2829
    %v2849 = vunpack.c.l.s4 1934713408
    %v2850 = vunpack.c.0.s8 %v2849
    %v2851 = vlaneseq
    %v2852 = vshrl.u32 %v2851, 7
    %v2853 = vsub.s32 %v2850, %v2852
    %v2854 = vrot.slane %v2846, %v2853
    %v2856 = vunpack.c.l.s4 1934713408
    %v2857 = vunpack.c.0.s8 %v2856
    %v2858 = vlaneseq
    %v2859 = vshrl.u32 %v2858, 7
    %v2860 = vsub.s32 %v2857, %v2859
    %v2861 = vrot.slane %v2847, %v2860
    %v2862 = vcombine.high %v2838, 0.0
    %v2863 = vcombine.high %v2845, 0.0
    %v2864 = vcombine.high %v2854, 0.0
    %v2865 = vcombine.high %v2861, 0.0
    %v2866 = vcombine.low %v2770, %v2777
    %v2868 = vunpack.c.l.s4 1983009808
    %v2869 = vunpack.c.0.s8 %v2868
    %v2870 = vlaneseq
    %v2871 = vshrl.u32 %v2870, 7
    %v2872 = vsub.s32 %v2869, %v2871
    %v2873 = vrot.slane %v2866, %v2872
    %v2874 = vcombine.low %v2794, %v2795
    %v2876 = vunpack.c.l.s4 1983009808
    %v2877 = vunpack.c.0.s8 %v2876
    %v2878 = vlaneseq
    %v2879 = vshrl.u32 %v2878, 7
    %v2880 = vsub.s32 %v2877, %v2879
    %v2881 = vrot.slane %v2874, %v2880
    %v2882 = vcombine.low %v2786, %v2793
    %v2884 = vunpack.c.l.s4 1983009808
    %v2885 = vunpack.c.0.s8 %v2884
    %v2886 = vlaneseq
    %v2887 = vshrl.u32 %v2886, 7
    %v2888 = vsub.s32 %v2885, %v2887
    %v2889 = vrot.slane %v2882, %v2888
    %v2890 = vcombine.low %v2796, %v2797
    %v2892 = vunpack.c.l.s4 1983009808
    %v2893 = vunpack.c.0.s8 %v2892
    %v2894 = vlaneseq
    %v2895 = vshrl.u32 %v2894, 7
    %v2896 = vsub.s32 %v2893, %v2895
    %v2897 = vrot.slane %v2890, %v2896
    %v2898 = vcombine.low %v2873, %v2881
    %v2899 = vcombine.high %v2873, %v2881
    %v2901 = vunpack.c.l.s4 1934713408
    %v2902 = vunpack.c.0.s8 %v2901
    %v2903 = vlaneseq
    %v2904 = vshrl.u32 %v2903, 7
    %v2905 = vsub.s32 %v2902, %v2904
    %v2906 = vrot.slane %v2898, %v2905
    %v2908 = vunpack.c.l.s4 1934713408
    %v2909 = vunpack.c.0.s8 %v2908
    %v2910 = vlaneseq
    %v2911 = vshrl.u32 %v2910, 7
    %v2912 = vsub.s32 %v2909, %v2911
    %v2913 = vrot.slane %v2899, %v2912
    %v2914 = vcombine.low %v2889, %v2897
    %v2915 = vcombine.high %v2889, %v2897
    %v2917 = vunpack.c.l.s4 1934713408
    %v2918 = vunpack.c.0.s8 %v2917
    %v2919 = vlaneseq
    %v2920 = vshrl.u32 %v2919, 7
    %v2921 = vsub.s32 %v2918, %v2920
    %v2922 = vrot.slane %v2914, %v2921
    %v2924 = vunpack.c.l.s4 1934713408
    %v2925 = vunpack.c.0.s8 %v2924
    %v2926 = vlaneseq
    %v2927 = vshrl.u32 %v2926, 7
    %v2928 = vsub.s32 %v2925, %v2927
    %v2929 = vrot.slane %v2915, %v2928
    %v2930 = vcombine.low %v2906, %v2922
    %v2931 = vcombine.high %v2906, %v2922
    %v2932 = vcombine.low %v2913, %v2929
    %v2933 = vcombine.high %v2913, %v2929
    %v2934 = vcombine.low %v2838, %v2845
    %v2936 = vunpack.c.l.s4 1983009808
    %v2937 = vunpack.c.0.s8 %v2936
    %v2938 = vlaneseq
    %v2939 = vshrl.u32 %v2938, 7
    %v2940 = vsub.s32 %v2937, %v2939
    %v2941 = vrot.slane %v2934, %v2940
    %v2942 = vcombine.low %v2862, %v2863
    %v2944 = vunpack.c.l.s4 1983009808
    %v2945 = vunpack.c.0.s8 %v2944
    %v2946 = vlaneseq
    %v2947 = vshrl.u32 %v2946, 7
    %v2948 = vsub.s32 %v2945, %v2947
    %v2949 = vrot.slane %v2942, %v2948
    %v2950 = vcombine.low %v2854, %v2861
    %v2952 = vunpack.c.l.s4 1983009808
    %v2953 = vunpack.c.0.s8 %v2952
    %v2954 = vlaneseq
    %v2955 = vshrl.u32 %v2954, 7
    %v2956 = vsub.s32 %v2953, %v2955
    %v2957 = vrot.slane %v2950, %v2956
    %v2958 = vcombine.low %v2864, %v2865
    %v2960 = vunpack.c.l.s4 1983009808
    %v2961 = vunpack.c.0.s8 %v2960
    %v2962 = vlaneseq
    %v2963 = vshrl.u32 %v2962, 7
    %v2964 = vsub.s32 %v2961, %v2963
    %v2965 = vrot.slane %v2958, %v2964
    %v2966 = vcombine.low %v2941, %v2949
    %v2967 = vcombine.high %v2941, %v2949
    %v2969 = vunpack.c.l.s4 1934713408
    %v2970 = vunpack.c.0.s8 %v2969
    %v2971 = vlaneseq
    %v2972 = vshrl.u32 %v2971, 7
    %v2973 = vsub.s32 %v2970, %v2972
    %v2974 = vrot.slane %v2966, %v2973
    %v2976 = vunpack.c.l.s4 1934713408
    %v2977 = vunpack.c.0.s8 %v2976
    %v2978 = vlaneseq
    %v2979 = vshrl.u32 %v2978, 7
    %v2980 = vsub.s32 %v2977, %v2979
    %v2981 = vrot.slane %v2967, %v2980
    %v2982 = vcombine.low %v2957, %v2965
    %v2983 = vcombine.high %v2957, %v2965
    %v2985 = vunpack.c.l.s4 1934713408
    %v2986 = vunpack.c.0.s8 %v2985
    %v2987 = vlaneseq
    %v2988 = vshrl.u32 %v2987, 7
    %v2989 = vsub.s32 %v2986, %v2988
    %v2990 = vrot.slane %v2982, %v2989
    %v2992 = vunpack.c.l.s4 1934713408
    %v2993 = vunpack.c.0.s8 %v2992
    %v2994 = vlaneseq
    %v2995 = vshrl.u32 %v2994, 7
    %v2996 = vsub.s32 %v2993, %v2995
    %v2997 = vrot.slane %v2983, %v2996
    %v2998 = vcombine.low %v2974, %v2990
    %v2999 = vcombine.high %v2974, %v2990
    %v3000 = vcombine.low %v2981, %v2997
    %v3001 = vcombine.high %v2981, %v2997
    %3004 = vrot.lane.b32.xlu0 %v2700, 120
    %v3005 = vpop.permute.xlu0 %3004
    %3006 = vrot.lane.b32.xlu0 %v2705, 120
    %v3007 = vpop.permute.xlu0 %3006
    %3008 = vrot.lane.b32.xlu0 %v2700, 112
    %v3009 = vpop.permute.xlu0 %3008
    %3010 = vrot.lane.b32.xlu0 %v2705, 112
    %v3011 = vpop.permute.xlu0 %3010
    %3012 = vrot.lane.b32.xlu0 %v2700, 104
    %v3013 = vpop.permute.xlu0 %3012
    %3014 = vrot.lane.b32.xlu0 %v2705, 104
    %v3015 = vpop.permute.xlu0 %3014
    %3016 = vrot.lane.b32.xlu0 %v2700, 96
    %v3017 = vpop.permute.xlu0 %3016
    %3018 = vrot.lane.b32.xlu0 %v2705, 96
    %v3019 = vpop.permute.xlu0 %3018
    %3020 = vrot.lane.b32.xlu0 %v3005, 96
    %v3021 = vpop.permute.xlu0 %3020
    %3022 = vrot.lane.b32.xlu0 %v3007, 96
    %v3023 = vpop.permute.xlu0 %3022
    %3024 = vrot.lane.b32.xlu0 %v3009, 96
    %v3025 = vpop.permute.xlu0 %3024
    %3026 = vrot.lane.b32.xlu0 %v3011, 96
    %v3027 = vpop.permute.xlu0 %3026
    %3028 = vrot.lane.b32.xlu0 %v3013, 96
    %v3029 = vpop.permute.xlu0 %3028
    %3030 = vrot.lane.b32.xlu0 %v3015, 96
    %v3031 = vpop.permute.xlu0 %3030
    %v3040 = vcombine.low %v3017, %v3025
    %v3041 = vcombine.high %v3017, %v3025
    %v3043 = vunpack.c.l.s4 1983009808
    %v3044 = vunpack.c.0.s8 %v3043
    %v3045 = vlaneseq
    %v3046 = vshrl.u32 %v3045, 7
    %v3047 = vsub.s32 %v3044, %v3046
    %v3048 = vrot.slane %v3040, %v3047
    %v3050 = vunpack.c.l.s4 1983009808
    %v3051 = vunpack.c.0.s8 %v3050
    %v3052 = vlaneseq
    %v3053 = vshrl.u32 %v3052, 7
    %v3054 = vsub.s32 %v3051, %v3053
    %v3055 = vrot.slane %v3041, %v3054
    %v3056 = vcombine.low %v3021, %v3029
    %v3057 = vcombine.high %v3021, %v3029
    %v3059 = vunpack.c.l.s4 1983009808
    %v3060 = vunpack.c.0.s8 %v3059
    %v3061 = vlaneseq
    %v3062 = vshrl.u32 %v3061, 7
    %v3063 = vsub.s32 %v3060, %v3062
    %v3064 = vrot.slane %v3056, %v3063
    %v3066 = vunpack.c.l.s4 1983009808
    %v3067 = vunpack.c.0.s8 %v3066
    %v3068 = vlaneseq
    %v3069 = vshrl.u32 %v3068, 7
    %v3070 = vsub.s32 %v3067, %v3069
    %v3071 = vrot.slane %v3057, %v3070
    %v3072 = vcombine.low %v3048, %v3064
    %v3073 = vcombine.high %v3048, %v3064
    %v3075 = vunpack.c.l.s4 1934713408
    %v3076 = vunpack.c.0.s8 %v3075
    %v3077 = vlaneseq
    %v3078 = vshrl.u32 %v3077, 7
    %v3079 = vsub.s32 %v3076, %v3078
    %v3080 = vrot.slane %v3072, %v3079
    %v3082 = vunpack.c.l.s4 1934713408
    %v3083 = vunpack.c.0.s8 %v3082
    %v3084 = vlaneseq
    %v3085 = vshrl.u32 %v3084, 7
    %v3086 = vsub.s32 %v3083, %v3085
    %v3087 = vrot.slane %v3073, %v3086
    %v3088 = vcombine.low %v3055, %v3071
    %v3089 = vcombine.high %v3055, %v3071
    %v3091 = vunpack.c.l.s4 1934713408
    %v3092 = vunpack.c.0.s8 %v3091
    %v3093 = vlaneseq
    %v3094 = vshrl.u32 %v3093, 7
    %v3095 = vsub.s32 %v3092, %v3094
    %v3096 = vrot.slane %v3088, %v3095
    %v3098 = vunpack.c.l.s4 1934713408
    %v3099 = vunpack.c.0.s8 %v3098
    %v3100 = vlaneseq
    %v3101 = vshrl.u32 %v3100, 7
    %v3102 = vsub.s32 %v3099, %v3101
    %v3103 = vrot.slane %v3089, %v3102
    %v3104 = vcombine.high %v3080, 0.0
    %v3105 = vcombine.high %v3087, 0.0
    %v3106 = vcombine.high %v3096, 0.0
    %v3107 = vcombine.high %v3103, 0.0
    %v3108 = vcombine.low %v3019, %v3027
    %v3109 = vcombine.high %v3019, %v3027
    %v3111 = vunpack.c.l.s4 1983009808
    %v3112 = vunpack.c.0.s8 %v3111
    %v3113 = vlaneseq
    %v3114 = vshrl.u32 %v3113, 7
    %v3115 = vsub.s32 %v3112, %v3114
    %v3116 = vrot.slane %v3108, %v3115
    %v3118 = vunpack.c.l.s4 1983009808
    %v3119 = vunpack.c.0.s8 %v3118
    %v3120 = vlaneseq
    %v3121 = vshrl.u32 %v3120, 7
    %v3122 = vsub.s32 %v3119, %v3121
    %v3123 = vrot.slane %v3109, %v3122
    %v3124 = vcombine.low %v3023, %v3031
    %v3125 = vcombine.high %v3023, %v3031
    %v3127 = vunpack.c.l.s4 1983009808
    %v3128 = vunpack.c.0.s8 %v3127
    %v3129 = vlaneseq
    %v3130 = vshrl.u32 %v3129, 7
    %v3131 = vsub.s32 %v3128, %v3130
    %v3132 = vrot.slane %v3124, %v3131
    %v3134 = vunpack.c.l.s4 1983009808
    %v3135 = vunpack.c.0.s8 %v3134
    %v3136 = vlaneseq
    %v3137 = vshrl.u32 %v3136, 7
    %v3138 = vsub.s32 %v3135, %v3137
    %v3139 = vrot.slane %v3125, %v3138
    %v3140 = vcombine.low %v3116, %v3132
    %v3141 = vcombine.high %v3116, %v3132
    %v3143 = vunpack.c.l.s4 1934713408
    %v3144 = vunpack.c.0.s8 %v3143
    %v3145 = vlaneseq
    %v3146 = vshrl.u32 %v3145, 7
    %v3147 = vsub.s32 %v3144, %v3146
    %v3148 = vrot.slane %v3140, %v3147
    %v3150 = vunpack.c.l.s4 1934713408
    %v3151 = vunpack.c.0.s8 %v3150
    %v3152 = vlaneseq
    %v3153 = vshrl.u32 %v3152, 7
    %v3154 = vsub.s32 %v3151, %v3153
    %v3155 = vrot.slane %v3141, %v3154
    %v3156 = vcombine.low %v3123, %v3139
    %v3157 = vcombine.high %v3123, %v3139
    %v3159 = vunpack.c.l.s4 1934713408
    %v3160 = vunpack.c.0.s8 %v3159
    %v3161 = vlaneseq
    %v3162 = vshrl.u32 %v3161, 7
    %v3163 = vsub.s32 %v3160, %v3162
    %v3164 = vrot.slane %v3156, %v3163
    %v3166 = vunpack.c.l.s4 1934713408
    %v3167 = vunpack.c.0.s8 %v3166
    %v3168 = vlaneseq
    %v3169 = vshrl.u32 %v3168, 7
    %v3170 = vsub.s32 %v3167, %v3169
    %v3171 = vrot.slane %v3157, %v3170
    %v3172 = vcombine.high %v3148, 0.0
    %v3173 = vcombine.high %v3155, 0.0
    %v3174 = vcombine.high %v3164, 0.0
    %v3175 = vcombine.high %v3171, 0.0
    %v3176 = vcombine.low %v3080, %v3087
    %v3178 = vunpack.c.l.s4 1983009808
    %v3179 = vunpack.c.0.s8 %v3178
    %v3180 = vlaneseq
    %v3181 = vshrl.u32 %v3180, 7
    %v3182 = vsub.s32 %v3179, %v3181
    %v3183 = vrot.slane %v3176, %v3182
    %v3184 = vcombine.low %v3104, %v3105
    %v3186 = vunpack.c.l.s4 1983009808
    %v3187 = vunpack.c.0.s8 %v3186
    %v3188 = vlaneseq
    %v3189 = vshrl.u32 %v3188, 7
    %v3190 = vsub.s32 %v3187, %v3189
    %v3191 = vrot.slane %v3184, %v3190
    %v3192 = vcombine.low %v3096, %v3103
    %v3194 = vunpack.c.l.s4 1983009808
    %v3195 = vunpack.c.0.s8 %v3194
    %v3196 = vlaneseq
    %v3197 = vshrl.u32 %v3196, 7
    %v3198 = vsub.s32 %v3195, %v3197
    %v3199 = vrot.slane %v3192, %v3198
    %v3200 = vcombine.low %v3106, %v3107
    %v3202 = vunpack.c.l.s4 1983009808
    %v3203 = vunpack.c.0.s8 %v3202
    %v3204 = vlaneseq
    %v3205 = vshrl.u32 %v3204, 7
    %v3206 = vsub.s32 %v3203, %v3205
    %v3207 = vrot.slane %v3200, %v3206
    %v3208 = vcombine.low %v3183, %v3191
    %v3209 = vcombine.high %v3183, %v3191
    %v3211 = vunpack.c.l.s4 1934713408
    %v3212 = vunpack.c.0.s8 %v3211
    %v3213 = vlaneseq
    %v3214 = vshrl.u32 %v3213, 7
    %v3215 = vsub.s32 %v3212, %v3214
    %v3216 = vrot.slane %v3208, %v3215
    %v3218 = vunpack.c.l.s4 1934713408
    %v3219 = vunpack.c.0.s8 %v3218
    %v3220 = vlaneseq
    %v3221 = vshrl.u32 %v3220, 7
    %v3222 = vsub.s32 %v3219, %v3221
    %v3223 = vrot.slane %v3209, %v3222
    %v3224 = vcombine.low %v3199, %v3207
    %v3225 = vcombine.high %v3199, %v3207
    %v3227 = vunpack.c.l.s4 1934713408
    %v3228 = vunpack.c.0.s8 %v3227
    %v3229 = vlaneseq
    %v3230 = vshrl.u32 %v3229, 7
    %v3231 = vsub.s32 %v3228, %v3230
    %v3232 = vrot.slane %v3224, %v3231
    %v3234 = vunpack.c.l.s4 1934713408
    %v3235 = vunpack.c.0.s8 %v3234
    %v3236 = vlaneseq
    %v3237 = vshrl.u32 %v3236, 7
    %v3238 = vsub.s32 %v3235, %v3237
    %v3239 = vrot.slane %v3225, %v3238
    %v3240 = vcombine.low %v3216, %v3232
    %v3241 = vcombine.high %v3216, %v3232
    %v3242 = vcombine.low %v3223, %v3239
    %v3243 = vcombine.high %v3223, %v3239
    %v3244 = vcombine.low %v3148, %v3155
    %v3246 = vunpack.c.l.s4 1983009808
    %v3247 = vunpack.c.0.s8 %v3246
    %v3248 = vlaneseq
    %v3249 = vshrl.u32 %v3248, 7
    %v3250 = vsub.s32 %v3247, %v3249
    %v3251 = vrot.slane %v3244, %v3250
    %v3252 = vcombine.low %v3172, %v3173
    %v3254 = vunpack.c.l.s4 1983009808
    %v3255 = vunpack.c.0.s8 %v3254
    %v3256 = vlaneseq
    %v3257 = vshrl.u32 %v3256, 7
    %v3258 = vsub.s32 %v3255, %v3257
    %v3259 = vrot.slane %v3252, %v3258
    %v3260 = vcombine.low %v3164, %v3171
    %v3262 = vunpack.c.l.s4 1983009808
    %v3263 = vunpack.c.0.s8 %v3262
    %v3264 = vlaneseq
    %v3265 = vshrl.u32 %v3264, 7
    %v3266 = vsub.s32 %v3263, %v3265
    %v3267 = vrot.slane %v3260, %v3266
    %v3268 = vcombine.low %v3174, %v3175
    %v3270 = vunpack.c.l.s4 1983009808
    %v3271 = vunpack.c.0.s8 %v3270
    %v3272 = vlaneseq
    %v3273 = vshrl.u32 %v3272, 7
    %v3274 = vsub.s32 %v3271, %v3273
    %v3275 = vrot.slane %v3268, %v3274
    %v3276 = vcombine.low %v3251, %v3259
    %v3277 = vcombine.high %v3251, %v3259
    %v3279 = vunpack.c.l.s4 1934713408
    %v3280 = vunpack.c.0.s8 %v3279
    %v3281 = vlaneseq
    %v3282 = vshrl.u32 %v3281, 7
    %v3283 = vsub.s32 %v3280, %v3282
    %v3284 = vrot.slane %v3276, %v3283
    %v3286 = vunpack.c.l.s4 1934713408
    %v3287 = vunpack.c.0.s8 %v3286
    %v3288 = vlaneseq
    %v3289 = vshrl.u32 %v3288, 7
    %v3290 = vsub.s32 %v3287, %v3289
    %v3291 = vrot.slane %v3277, %v3290
    %v3292 = vcombine.low %v3267, %v3275
    %v3293 = vcombine.high %v3267, %v3275
    %v3295 = vunpack.c.l.s4 1934713408
    %v3296 = vunpack.c.0.s8 %v3295
    %v3297 = vlaneseq
    %v3298 = vshrl.u32 %v3297, 7
    %v3299 = vsub.s32 %v3296, %v3298
    %v3300 = vrot.slane %v3292, %v3299
    %v3302 = vunpack.c.l.s4 1934713408
    %v3303 = vunpack.c.0.s8 %v3302
    %v3304 = vlaneseq
    %v3305 = vshrl.u32 %v3304, 7
    %v3306 = vsub.s32 %v3303, %v3305
    %v3307 = vrot.slane %v3293, %v3306
    %v3308 = vcombine.low %v3284, %v3300
    %v3309 = vcombine.high %v3284, %v3300
    %v3310 = vcombine.low %v3291, %v3307
    %v3311 = vcombine.high %v3291, %v3307
    %3312 = vrot.lane.b32.xlu0 %v2700, 64
    %v3313 = vpop.permute.xlu0 %3312
    %3314 = vrot.lane.b32.xlu0 %v2705, 64
    %v3315 = vpop.permute.xlu0 %3314
    %3316 = vrot.lane.b32.xlu0 %v3005, 64
    %v3317 = vpop.permute.xlu0 %3316
    %3318 = vrot.lane.b32.xlu0 %v3007, 64
    %v3319 = vpop.permute.xlu0 %3318
    %3320 = vrot.lane.b32.xlu0 %v3009, 64
    %v3321 = vpop.permute.xlu0 %3320
    %3322 = vrot.lane.b32.xlu0 %v3011, 64
    %v3323 = vpop.permute.xlu0 %3322
    %3324 = vrot.lane.b32.xlu0 %v3013, 64
    %v3325 = vpop.permute.xlu0 %3324
    %3326 = vrot.lane.b32.xlu0 %v3015, 64
    %v3327 = vpop.permute.xlu0 %3326
    %v3336 = vcombine.low %v3313, %v3321
    %v3337 = vcombine.high %v3313, %v3321
    %v3339 = vunpack.c.l.s4 1983009808
    %v3340 = vunpack.c.0.s8 %v3339
    %v3341 = vlaneseq
    %v3342 = vshrl.u32 %v3341, 7
    %v3343 = vsub.s32 %v3340, %v3342
    %v3344 = vrot.slane %v3336, %v3343
    %v3346 = vunpack.c.l.s4 1983009808
    %v3347 = vunpack.c.0.s8 %v3346
    %v3348 = vlaneseq
    %v3349 = vshrl.u32 %v3348, 7
    %v3350 = vsub.s32 %v3347, %v3349
    %v3351 = vrot.slane %v3337, %v3350
    %v3352 = vcombine.low %v3317, %v3325
    %v3353 = vcombine.high %v3317, %v3325
    %v3355 = vunpack.c.l.s4 1983009808
    %v3356 = vunpack.c.0.s8 %v3355
    %v3357 = vlaneseq
    %v3358 = vshrl.u32 %v3357, 7
    %v3359 = vsub.s32 %v3356, %v3358
    %v3360 = vrot.slane %v3352, %v3359
    %v3362 = vunpack.c.l.s4 1983009808
    %v3363 = vunpack.c.0.s8 %v3362
    %v3364 = vlaneseq
    %v3365 = vshrl.u32 %v3364, 7
    %v3366 = vsub.s32 %v3363, %v3365
    %v3367 = vrot.slane %v3353, %v3366
    %v3368 = vcombine.low %v3344, %v3360
    %v3369 = vcombine.high %v3344, %v3360
    %v3371 = vunpack.c.l.s4 1934713408
    %v3372 = vunpack.c.0.s8 %v3371
    %v3373 = vlaneseq
    %v3374 = vshrl.u32 %v3373, 7
    %v3375 = vsub.s32 %v3372, %v3374
    %v3376 = vrot.slane %v3368, %v3375
    %v3378 = vunpack.c.l.s4 1934713408
    %v3379 = vunpack.c.0.s8 %v3378
    %v3380 = vlaneseq
    %v3381 = vshrl.u32 %v3380, 7
    %v3382 = vsub.s32 %v3379, %v3381
    %v3383 = vrot.slane %v3369, %v3382
    %v3384 = vcombine.low %v3351, %v3367
    %v3385 = vcombine.high %v3351, %v3367
    %v3387 = vunpack.c.l.s4 1934713408
    %v3388 = vunpack.c.0.s8 %v3387
    %v3389 = vlaneseq
    %v3390 = vshrl.u32 %v3389, 7
    %v3391 = vsub.s32 %v3388, %v3390
    %v3392 = vrot.slane %v3384, %v3391
    %v3394 = vunpack.c.l.s4 1934713408
    %v3395 = vunpack.c.0.s8 %v3394
    %v3396 = vlaneseq
    %v3397 = vshrl.u32 %v3396, 7
    %v3398 = vsub.s32 %v3395, %v3397
    %v3399 = vrot.slane %v3385, %v3398
    %v3400 = vcombine.high %v3376, 0.0
    %v3401 = vcombine.high %v3383, 0.0
    %v3402 = vcombine.high %v3392, 0.0
    %v3403 = vcombine.high %v3399, 0.0
    %v3404 = vcombine.low %v3315, %v3323
    %v3405 = vcombine.high %v3315, %v3323
    %v3407 = vunpack.c.l.s4 1983009808
    %v3408 = vunpack.c.0.s8 %v3407
    %v3409 = vlaneseq
    %v3410 = vshrl.u32 %v3409, 7
    %v3411 = vsub.s32 %v3408, %v3410
    %v3412 = vrot.slane %v3404, %v3411
    %v3414 = vunpack.c.l.s4 1983009808
    %v3415 = vunpack.c.0.s8 %v3414
    %v3416 = vlaneseq
    %v3417 = vshrl.u32 %v3416, 7
    %v3418 = vsub.s32 %v3415, %v3417
    %v3419 = vrot.slane %v3405, %v3418
    %v3420 = vcombine.low %v3319, %v3327
    %v3421 = vcombine.high %v3319, %v3327
    %v3423 = vunpack.c.l.s4 1983009808
    %v3424 = vunpack.c.0.s8 %v3423
    %v3425 = vlaneseq
    %v3426 = vshrl.u32 %v3425, 7
    %v3427 = vsub.s32 %v3424, %v3426
    %v3428 = vrot.slane %v3420, %v3427
    %v3430 = vunpack.c.l.s4 1983009808
    %v3431 = vunpack.c.0.s8 %v3430
    %v3432 = vlaneseq
    %v3433 = vshrl.u32 %v3432, 7
    %v3434 = vsub.s32 %v3431, %v3433
    %v3435 = vrot.slane %v3421, %v3434
    %v3436 = vcombine.low %v3412, %v3428
    %v3437 = vcombine.high %v3412, %v3428
    %v3439 = vunpack.c.l.s4 1934713408
    %v3440 = vunpack.c.0.s8 %v3439
    %v3441 = vlaneseq
    %v3442 = vshrl.u32 %v3441, 7
    %v3443 = vsub.s32 %v3440, %v3442
    %v3444 = vrot.slane %v3436, %v3443
    %v3446 = vunpack.c.l.s4 1934713408
    %v3447 = vunpack.c.0.s8 %v3446
    %v3448 = vlaneseq
    %v3449 = vshrl.u32 %v3448, 7
    %v3450 = vsub.s32 %v3447, %v3449
    %v3451 = vrot.slane %v3437, %v3450
    %v3452 = vcombine.low %v3419, %v3435
    %v3453 = vcombine.high %v3419, %v3435
    %v3455 = vunpack.c.l.s4 1934713408
    %v3456 = vunpack.c.0.s8 %v3455
    %v3457 = vlaneseq
    %v3458 = vshrl.u32 %v3457, 7
    %v3459 = vsub.s32 %v3456, %v3458
    %v3460 = vrot.slane %v3452, %v3459
    %v3462 = vunpack.c.l.s4 1934713408
    %v3463 = vunpack.c.0.s8 %v3462
    %v3464 = vlaneseq
    %v3465 = vshrl.u32 %v3464, 7
    %v3466 = vsub.s32 %v3463, %v3465
    %v3467 = vrot.slane %v3453, %v3466
    %v3468 = vcombine.high %v3444, 0.0
    %v3469 = vcombine.high %v3451, 0.0
    %v3470 = vcombine.high %v3460, 0.0
    %v3471 = vcombine.high %v3467, 0.0
    %v3472 = vcombine.low %v3376, %v3383
    %v3474 = vunpack.c.l.s4 1983009808
    %v3475 = vunpack.c.0.s8 %v3474
    %v3476 = vlaneseq
    %v3477 = vshrl.u32 %v3476, 7
    %v3478 = vsub.s32 %v3475, %v3477
    %v3479 = vrot.slane %v3472, %v3478
    %v3480 = vcombine.low %v3400, %v3401
    %v3482 = vunpack.c.l.s4 1983009808
    %v3483 = vunpack.c.0.s8 %v3482
    %v3484 = vlaneseq
    %v3485 = vshrl.u32 %v3484, 7
    %v3486 = vsub.s32 %v3483, %v3485
    %v3487 = vrot.slane %v3480, %v3486
    %v3488 = vcombine.low %v3392, %v3399
    %v3490 = vunpack.c.l.s4 1983009808
    %v3491 = vunpack.c.0.s8 %v3490
    %v3492 = vlaneseq
    %v3493 = vshrl.u32 %v3492, 7
    %v3494 = vsub.s32 %v3491, %v3493
    %v3495 = vrot.slane %v3488, %v3494
    %v3496 = vcombine.low %v3402, %v3403
    %v3498 = vunpack.c.l.s4 1983009808
    %v3499 = vunpack.c.0.s8 %v3498
    %v3500 = vlaneseq
    %v3501 = vshrl.u32 %v3500, 7
    %v3502 = vsub.s32 %v3499, %v3501
    %v3503 = vrot.slane %v3496, %v3502
    %v3504 = vcombine.low %v3479, %v3487
    %v3505 = vcombine.high %v3479, %v3487
    %v3507 = vunpack.c.l.s4 1934713408
    %v3508 = vunpack.c.0.s8 %v3507
    %v3509 = vlaneseq
    %v3510 = vshrl.u32 %v3509, 7
    %v3511 = vsub.s32 %v3508, %v3510
    %v3512 = vrot.slane %v3504, %v3511
    %v3514 = vunpack.c.l.s4 1934713408
    %v3515 = vunpack.c.0.s8 %v3514
    %v3516 = vlaneseq
    %v3517 = vshrl.u32 %v3516, 7
    %v3518 = vsub.s32 %v3515, %v3517
    %v3519 = vrot.slane %v3505, %v3518
    %v3520 = vcombine.low %v3495, %v3503
    %v3521 = vcombine.high %v3495, %v3503
    %v3523 = vunpack.c.l.s4 1934713408
    %v3524 = vunpack.c.0.s8 %v3523
    %v3525 = vlaneseq
    %v3526 = vshrl.u32 %v3525, 7
    %v3527 = vsub.s32 %v3524, %v3526
    %v3528 = vrot.slane %v3520, %v3527
    %v3530 = vunpack.c.l.s4 1934713408
    %v3531 = vunpack.c.0.s8 %v3530
    %v3532 = vlaneseq
    %v3533 = vshrl.u32 %v3532, 7
    %v3534 = vsub.s32 %v3531, %v3533
    %v3535 = vrot.slane %v3521, %v3534
    %v3536 = vcombine.low %v3512, %v3528
    %v3537 = vcombine.high %v3512, %v3528
    %v3538 = vcombine.low %v3519, %v3535
    %v3539 = vcombine.high %v3519, %v3535
    %v3540 = vcombine.low %v3444, %v3451
    %v3542 = vunpack.c.l.s4 1983009808
    %v3543 = vunpack.c.0.s8 %v3542
    %v3544 = vlaneseq
    %v3545 = vshrl.u32 %v3544, 7
    %v3546 = vsub.s32 %v3543, %v3545
    %v3547 = vrot.slane %v3540, %v3546
    %v3548 = vcombine.low %v3468, %v3469
    %v3550 = vunpack.c.l.s4 1983009808
    %v3551 = vunpack.c.0.s8 %v3550
    %v3552 = vlaneseq
    %v3553 = vshrl.u32 %v3552, 7
    %v3554 = vsub.s32 %v3551, %v3553
    %v3555 = vrot.slane %v3548, %v3554
    %v3556 = vcombine.low %v3460, %v3467
    %v3558 = vunpack.c.l.s4 1983009808
    %v3559 = vunpack.c.0.s8 %v3558
    %v3560 = vlaneseq
    %v3561 = vshrl.u32 %v3560, 7
    %v3562 = vsub.s32 %v3559, %v3561
    %v3563 = vrot.slane %v3556, %v3562
    %v3564 = vcombine.low %v3470, %v3471
    %v3566 = vunpack.c.l.s4 1983009808
    %v3567 = vunpack.c.0.s8 %v3566
    %v3568 = vlaneseq
    %v3569 = vshrl.u32 %v3568, 7
    %v3570 = vsub.s32 %v3567, %v3569
    %v3571 = vrot.slane %v3564, %v3570
    %v3572 = vcombine.low %v3547, %v3555
    %v3573 = vcombine.high %v3547, %v3555
    %v3575 = vunpack.c.l.s4 1934713408
    %v3576 = vunpack.c.0.s8 %v3575
    %v3577 = vlaneseq
    %v3578 = vshrl.u32 %v3577, 7
    %v3579 = vsub.s32 %v3576, %v3578
    %v3580 = vrot.slane %v3572, %v3579
    %v3582 = vunpack.c.l.s4 1934713408
    %v3583 = vunpack.c.0.s8 %v3582
    %v3584 = vlaneseq
    %v3585 = vshrl.u32 %v3584, 7
    %v3586 = vsub.s32 %v3583, %v3585
    %v3587 = vrot.slane %v3573, %v3586
    %v3588 = vcombine.low %v3563, %v3571
    %v3589 = vcombine.high %v3563, %v3571
    %v3591 = vunpack.c.l.s4 1934713408
    %v3592 = vunpack.c.0.s8 %v3591
    %v3593 = vlaneseq
    %v3594 = vshrl.u32 %v3593, 7
    %v3595 = vsub.s32 %v3592, %v3594
    %v3596 = vrot.slane %v3588, %v3595
    %v3598 = vunpack.c.l.s4 1934713408
    %v3599 = vunpack.c.0.s8 %v3598
    %v3600 = vlaneseq
    %v3601 = vshrl.u32 %v3600, 7
    %v3602 = vsub.s32 %v3599, %v3601
    %v3603 = vrot.slane %v3589, %v3602
    %v3604 = vcombine.low %v3580, %v3596
    %v3605 = vcombine.high %v3580, %v3596
    %v3606 = vcombine.low %v3587, %v3603
    %v3607 = vcombine.high %v3587, %v3603
    %v3609 = vsel %vm1191, %v2930, 0
    %v3612 = vsel %vm1191, %v2998, 0
    %v3615 = vsel %vm1191, %v3240, 0
    %v3618 = vsel %vm1191, %v3308, 0
    %3620 = vmatprep.subr.mxu0 0.0
    %3621 = vmatpush1.xpose.msra.mxu0 0.0
    %3622 = vmatprep.subr.mxu0 0.0
    %3623 = vmatpush1.xpose.msra.mxu0 0.0
    %3624 = vmatprep.subr.mxu0 0.0
    %3625 = vmatpush1.xpose.msra.mxu0 0.0
    %3626 = vmatprep.subr.mxu0 0.0
    %3627 = vmatpush1.xpose.msra.mxu0 0.0
    %3628 = vmatprep.subr.mxu0 0.0
    %3629 = vmatpush1.xpose.msra.mxu0 0.0
    %3630 = vmatprep.subr.mxu0 0.0
    %3631 = vmatpush1.xpose.msra.mxu0 0.0
    %3632 = vmatprep.subr.mxu0 0.0
    %3633 = vmatpush1.xpose.msra.mxu0 0.0
    %3634 = vmatprep.subr.mxu0 0.0
    %3635 = vmatpush1.xpose.msra.mxu0 0.0
    %3636 = vmatprep.subr.mxu0 0.0
    %3637 = vmatpush1.xpose.msra.mxu0 0.0
    %3638 = vmatprep.subr.mxu0 0.0
    %3639 = vmatpush1.xpose.msra.mxu0 0.0
    %3640 = vmatprep.subr.mxu0 0.0
    %3641 = vmatpush1.xpose.msra.mxu0 0.0
    %3642 = vmatprep.subr.mxu0 0.0
    %3643 = vmatpush1.xpose.msra.mxu0 0.0
    %3644 = vmatprep.subr.mxu0 0.0
    %3645 = vmatpush1.xpose.msra.mxu0 0.0
    %3646 = vmatprep.subr.mxu0 0.0
    %3647 = vmatpush1.xpose.msra.mxu0 0.0
    %3648 = vmatprep.subr.mxu0 0.0
    %3649 = vmatpush1.xpose.msra.mxu0 %v3618
    %3650 = vmatprep.subr.mxu0 0.0
    %3651 = vmatpush1.xpose.msra.mxu0 %v3615
    %3652 = vmatprep.subr.mxu0 0.0
    %3653 = vmatpush2.xpose.msra.mxu0 0.0
    %3654 = vmatprep.subr.mxu0 0.0
    %3655 = vmatpush2.xpose.msra.mxu0 0.0
    %3656 = vmatprep.subr.mxu0 0.0
    %3657 = vmatpush2.xpose.msra.mxu0 0.0
    %3658 = vmatprep.subr.mxu0 0.0
    %3659 = vmatpush2.xpose.msra.mxu0 0.0
    %3660 = vmatprep.subr.mxu0 0.0
    %3661 = vmatpush2.xpose.msra.mxu0 0.0
    %3662 = vmatprep.subr.mxu0 0.0
    %3663 = vmatpush2.xpose.msra.mxu0 0.0
    %3664 = vmatprep.subr.mxu0 0.0
    %3665 = vmatpush2.xpose.msra.mxu0 0.0
    %3666 = vmatprep.subr.mxu0 0.0
    %3667 = vmatpush2.xpose.msra.mxu0 0.0
    %3668 = vmatprep.subr.mxu0 0.0
    %3669 = vmatpush2.xpose.msra.mxu0 0.0
    %3670 = vmatprep.subr.mxu0 0.0
    %3671 = vmatpush2.xpose.msra.mxu0 0.0
    %3672 = vmatprep.subr.mxu0 0.0
    %3673 = vmatpush2.xpose.msra.mxu0 0.0
    %3674 = vmatprep.subr.mxu0 0.0
    %3675 = vmatpush2.xpose.msra.mxu0 0.0
    %3676 = vmatprep.subr.mxu0 0.0
    %3677 = vmatpush2.xpose.msra.mxu0 0.0
    %3678 = vmatprep.subr.mxu0 0.0
    %3679 = vmatpush2.xpose.msra.mxu0 0.0
    %3680 = vmatprep.subr.mxu0 0.0
    %3681 = vmatpush2.xpose.msra.mxu0 0.0
    %3682 = vmatprep.subr.mxu0 0.0
    %3683 = vmatpush2.xpose.msra.mxu0 0.0
    %3684 = vmatprep.mubr.f32.mxu0 0.0
    %3685 = vmatmul.mubr.f32.gmra.mxu0 %v3609
    %v3686 = vpop.f32.mrf.mxu0
    %v3687 = vadd.f32 0.0, %v3686
    %v3688 = vpop.f32.mrf.mxu0
    %3689 = vmatprep.mubr.f32.mxu0 0.0
    %3690 = vmatmul.mubr.f32.gmra.mxu0 %v3612
    %v3691 = vpop.f32.mrf.mxu0
    %v3692 = vadd.f32 0.0, %v3691
    %v3693 = vpop.f32.mrf.mxu0
    %3694 = vdwg.mxu0
    %v3696 = vsel %vm1191, %v2931, 0
    %v3699 = vsel %vm1191, %v2999, 0
    %v3702 = vsel %vm1191, %v3241, 0
    %v3705 = vsel %vm1191, %v3309, 0
    %3707 = vmatprep.subr.mxu0 0.0
    %3708 = vmatpush1.xpose.msra.mxu0 0.0
    %3709 = vmatprep.subr.mxu0 0.0
    %3710 = vmatpush1.xpose.msra.mxu0 0.0
    %3711 = vmatprep.subr.mxu0 0.0
    %3712 = vmatpush1.xpose.msra.mxu0 0.0
    %3713 = vmatprep.subr.mxu0 0.0
    %3714 = vmatpush1.xpose.msra.mxu0 0.0
    %3715 = vmatprep.subr.mxu0 0.0
    %3716 = vmatpush1.xpose.msra.mxu0 0.0
    %3717 = vmatprep.subr.mxu0 0.0
    %3718 = vmatpush1.xpose.msra.mxu0 0.0
    %3719 = vmatprep.subr.mxu0 0.0
    %3720 = vmatpush1.xpose.msra.mxu0 0.0
    %3721 = vmatprep.subr.mxu0 0.0
    %3722 = vmatpush1.xpose.msra.mxu0 0.0
    %3723 = vmatprep.subr.mxu0 0.0
    %3724 = vmatpush1.xpose.msra.mxu0 0.0
    %3725 = vmatprep.subr.mxu0 0.0
    %3726 = vmatpush1.xpose.msra.mxu0 0.0
    %3727 = vmatprep.subr.mxu0 0.0
    %3728 = vmatpush1.xpose.msra.mxu0 0.0
    %3729 = vmatprep.subr.mxu0 0.0
    %3730 = vmatpush1.xpose.msra.mxu0 0.0
    %3731 = vmatprep.subr.mxu0 0.0
    %3732 = vmatpush1.xpose.msra.mxu0 0.0
    %3733 = vmatprep.subr.mxu0 0.0
    %3734 = vmatpush1.xpose.msra.mxu0 0.0
    %3735 = vmatprep.subr.mxu0 0.0
    %3736 = vmatpush1.xpose.msra.mxu0 %v3705
    %3737 = vmatprep.subr.mxu0 0.0
    %3738 = vmatpush1.xpose.msra.mxu0 %v3702
    %3739 = vmatprep.subr.mxu0 0.0
    %3740 = vmatpush2.xpose.msra.mxu0 0.0
    %3741 = vmatprep.subr.mxu0 0.0
    %3742 = vmatpush2.xpose.msra.mxu0 0.0
    %3743 = vmatprep.subr.mxu0 0.0
    %3744 = vmatpush2.xpose.msra.mxu0 0.0
    %3745 = vmatprep.subr.mxu0 0.0
    %3746 = vmatpush2.xpose.msra.mxu0 0.0
    %3747 = vmatprep.subr.mxu0 0.0
    %3748 = vmatpush2.xpose.msra.mxu0 0.0
    %3749 = vmatprep.subr.mxu0 0.0
    %3750 = vmatpush2.xpose.msra.mxu0 0.0
    %3751 = vmatprep.subr.mxu0 0.0
    %3752 = vmatpush2.xpose.msra.mxu0 0.0
    %3753 = vmatprep.subr.mxu0 0.0
    %3754 = vmatpush2.xpose.msra.mxu0 0.0
    %3755 = vmatprep.subr.mxu0 0.0
    %3756 = vmatpush2.xpose.msra.mxu0 0.0
    %3757 = vmatprep.subr.mxu0 0.0
    %3758 = vmatpush2.xpose.msra.mxu0 0.0
    %3759 = vmatprep.subr.mxu0 0.0
    %3760 = vmatpush2.xpose.msra.mxu0 0.0
    %3761 = vmatprep.subr.mxu0 0.0
    %3762 = vmatpush2.xpose.msra.mxu0 0.0
    %3763 = vmatprep.subr.mxu0 0.0
    %3764 = vmatpush2.xpose.msra.mxu0 0.0
    %3765 = vmatprep.subr.mxu0 0.0
    %3766 = vmatpush2.xpose.msra.mxu0 0.0
    %3767 = vmatprep.subr.mxu0 0.0
    %3768 = vmatpush2.xpose.msra.mxu0 0.0
    %3769 = vmatprep.subr.mxu0 0.0
    %3770 = vmatpush2.xpose.msra.mxu0 0.0
    %3771 = vmatprep.mubr.f32.mxu0 0.0
    %3772 = vmatmul.mubr.f32.gmra.mxu0 %v3696
    %v3773 = vpop.f32.mrf.mxu0
    %v3774 = vadd.f32 0.0, %v3773
    %v3775 = vpop.f32.mrf.mxu0
    %3776 = vmatprep.mubr.f32.mxu0 0.0
    %3777 = vmatmul.mubr.f32.gmra.mxu0 %v3699
    %v3778 = vpop.f32.mrf.mxu0
    %v3779 = vadd.f32 0.0, %v3778
    %v3780 = vpop.f32.mrf.mxu0
    %3781 = vdwg.mxu0
    %v3783 = vsel %vm1191, %v2932, 0
    %v3786 = vsel %vm1191, %v3000, 0
    %v3789 = vsel %vm1191, %v3242, 0
    %v3792 = vsel %vm1191, %v3310, 0
    %3794 = vmatprep.subr.mxu0 0.0
    %3795 = vmatpush1.xpose.msra.mxu0 0.0
    %3796 = vmatprep.subr.mxu0 0.0
    %3797 = vmatpush1.xpose.msra.mxu0 0.0
    %3798 = vmatprep.subr.mxu0 0.0
    %3799 = vmatpush1.xpose.msra.mxu0 0.0
    %3800 = vmatprep.subr.mxu0 0.0
    %3801 = vmatpush1.xpose.msra.mxu0 0.0
    %3802 = vmatprep.subr.mxu0 0.0
    %3803 = vmatpush1.xpose.msra.mxu0 0.0
    %3804 = vmatprep.subr.mxu0 0.0
    %3805 = vmatpush1.xpose.msra.mxu0 0.0
    %3806 = vmatprep.subr.mxu0 0.0
    %3807 = vmatpush1.xpose.msra.mxu0 0.0
    %3808 = vmatprep.subr.mxu0 0.0
    %3809 = vmatpush1.xpose.msra.mxu0 0.0
    %3810 = vmatprep.subr.mxu0 0.0
    %3811 = vmatpush1.xpose.msra.mxu0 0.0
    %3812 = vmatprep.subr.mxu0 0.0
    %3813 = vmatpush1.xpose.msra.mxu0 0.0
    %3814 = vmatprep.subr.mxu0 0.0
    %3815 = vmatpush1.xpose.msra.mxu0 0.0
    %3816 = vmatprep.subr.mxu0 0.0
    %3817 = vmatpush1.xpose.msra.mxu0 0.0
    %3818 = vmatprep.subr.mxu0 0.0
    %3819 = vmatpush1.xpose.msra.mxu0 0.0
    %3820 = vmatprep.subr.mxu0 0.0
    %3821 = vmatpush1.xpose.msra.mxu0 0.0
    %3822 = vmatprep.subr.mxu0 0.0
    %3823 = vmatpush1.xpose.msra.mxu0 %v3792
    %3824 = vmatprep.subr.mxu0 0.0
    %3825 = vmatpush1.xpose.msra.mxu0 %v3789
    %3826 = vmatprep.subr.mxu0 0.0
    %3827 = vmatpush2.xpose.msra.mxu0 0.0
    %3828 = vmatprep.subr.mxu0 0.0
    %3829 = vmatpush2.xpose.msra.mxu0 0.0
    %3830 = vmatprep.subr.mxu0 0.0
    %3831 = vmatpush2.xpose.msra.mxu0 0.0
    %3832 = vmatprep.subr.mxu0 0.0
    %3833 = vmatpush2.xpose.msra.mxu0 0.0
    %3834 = vmatprep.subr.mxu0 0.0
    %3835 = vmatpush2.xpose.msra.mxu0 0.0
    %3836 = vmatprep.subr.mxu0 0.0
    %3837 = vmatpush2.xpose.msra.mxu0 0.0
    %3838 = vmatprep.subr.mxu0 0.0
    %3839 = vmatpush2.xpose.msra.mxu0 0.0
    %3840 = vmatprep.subr.mxu0 0.0
    %3841 = vmatpush2.xpose.msra.mxu0 0.0
    %3842 = vmatprep.subr.mxu0 0.0
    %3843 = vmatpush2.xpose.msra.mxu0 0.0
    %3844 = vmatprep.subr.mxu0 0.0
    %3845 = vmatpush2.xpose.msra.mxu0 0.0
    %3846 = vmatprep.subr.mxu0 0.0
    %3847 = vmatpush2.xpose.msra.mxu0 0.0
    %3848 = vmatprep.subr.mxu0 0.0
    %3849 = vmatpush2.xpose.msra.mxu0 0.0
    %3850 = vmatprep.subr.mxu0 0.0
    %3851 = vmatpush2.xpose.msra.mxu0 0.0
    %3852 = vmatprep.subr.mxu0 0.0
    %3853 = vmatpush2.xpose.msra.mxu0 0.0
    %3854 = vmatprep.subr.mxu0 0.0
    %3855 = vmatpush2.xpose.msra.mxu0 0.0
    %3856 = vmatprep.subr.mxu0 0.0
    %3857 = vmatpush2.xpose.msra.mxu0 0.0
    %3858 = vmatprep.mubr.f32.mxu0 0.0
    %3859 = vmatmul.mubr.f32.gmra.mxu0 %v3783
    %v3860 = vpop.f32.mrf.mxu0
    %v3861 = vadd.f32 0.0, %v3860
    %v3862 = vpop.f32.mrf.mxu0
    %3863 = vmatprep.mubr.f32.mxu0 0.0
    %3864 = vmatmul.mubr.f32.gmra.mxu0 %v3786
    %v3865 = vpop.f32.mrf.mxu0
    %v3866 = vadd.f32 0.0, %v3865
    %v3867 = vpop.f32.mrf.mxu0
    %3868 = vdwg.mxu0
    %v3870 = vsel %vm1191, %v2933, 0
    %v3873 = vsel %vm1191, %v3001, 0
    %v3876 = vsel %vm1191, %v3243, 0
    %v3879 = vsel %vm1191, %v3311, 0
    %3881 = vmatprep.subr.mxu0 0.0
    %3882 = vmatpush1.xpose.msra.mxu0 0.0
    %3883 = vmatprep.subr.mxu0 0.0
    %3884 = vmatpush1.xpose.msra.mxu0 0.0
    %3885 = vmatprep.subr.mxu0 0.0
    %3886 = vmatpush1.xpose.msra.mxu0 0.0
    %3887 = vmatprep.subr.mxu0 0.0
    %3888 = vmatpush1.xpose.msra.mxu0 0.0
    %3889 = vmatprep.subr.mxu0 0.0
    %3890 = vmatpush1.xpose.msra.mxu0 0.0
    %3891 = vmatprep.subr.mxu0 0.0
    %3892 = vmatpush1.xpose.msra.mxu0 0.0
    %3893 = vmatprep.subr.mxu0 0.0
    %3894 = vmatpush1.xpose.msra.mxu0 0.0
    %3895 = vmatprep.subr.mxu0 0.0
    %3896 = vmatpush1.xpose.msra.mxu0 0.0
    %3897 = vmatprep.subr.mxu0 0.0
    %3898 = vmatpush1.xpose.msra.mxu0 0.0
    %3899 = vmatprep.subr.mxu0 0.0
    %3900 = vmatpush1.xpose.msra.mxu0 0.0
    %3901 = vmatprep.subr.mxu0 0.0
    %3902 = vmatpush1.xpose.msra.mxu0 0.0
    %3903 = vmatprep.subr.mxu0 0.0
    %3904 = vmatpush1.xpose.msra.mxu0 0.0
    %3905 = vmatprep.subr.mxu0 0.0
    %3906 = vmatpush1.xpose.msra.mxu0 0.0
    %3907 = vmatprep.subr.mxu0 0.0
    %3908 = vmatpush1.xpose.msra.mxu0 0.0
    %3909 = vmatprep.subr.mxu0 0.0
    %3910 = vmatpush1.xpose.msra.mxu0 %v3879
    %3911 = vmatprep.subr.mxu0 0.0
    %3912 = vmatpush1.xpose.msra.mxu0 %v3876
    %3913 = vmatprep.subr.mxu0 0.0
    %3914 = vmatpush2.xpose.msra.mxu0 0.0
    %3915 = vmatprep.subr.mxu0 0.0
    %3916 = vmatpush2.xpose.msra.mxu0 0.0
    %3917 = vmatprep.subr.mxu0 0.0
    %3918 = vmatpush2.xpose.msra.mxu0 0.0
    %3919 = vmatprep.subr.mxu0 0.0
    %3920 = vmatpush2.xpose.msra.mxu0 0.0
    %3921 = vmatprep.subr.mxu0 0.0
    %3922 = vmatpush2.xpose.msra.mxu0 0.0
    %3923 = vmatprep.subr.mxu0 0.0
    %3924 = vmatpush2.xpose.msra.mxu0 0.0
    %3925 = vmatprep.subr.mxu0 0.0
    %3926 = vmatpush2.xpose.msra.mxu0 0.0
    %3927 = vmatprep.subr.mxu0 0.0
    %3928 = vmatpush2.xpose.msra.mxu0 0.0
    %3929 = vmatprep.subr.mxu0 0.0
    %3930 = vmatpush2.xpose.msra.mxu0 0.0
    %3931 = vmatprep.subr.mxu0 0.0
    %3932 = vmatpush2.xpose.msra.mxu0 0.0
    %3933 = vmatprep.subr.mxu0 0.0
    %3934 = vmatpush2.xpose.msra.mxu0 0.0
    %3935 = vmatprep.subr.mxu0 0.0
    %3936 = vmatpush2.xpose.msra.mxu0 0.0
    %3937 = vmatprep.subr.mxu0 0.0
    %3938 = vmatpush2.xpose.msra.mxu0 0.0
    %3939 = vmatprep.subr.mxu0 0.0
    %3940 = vmatpush2.xpose.msra.mxu0 0.0
    %3941 = vmatprep.subr.mxu0 0.0
    %3942 = vmatpush2.xpose.msra.mxu0 0.0
    %3943 = vmatprep.subr.mxu0 0.0
    %3944 = vmatpush2.xpose.msra.mxu0 0.0
    %3945 = vmatprep.mubr.f32.mxu0 0.0
    %3946 = vmatmul.mubr.f32.gmra.mxu0 %v3870
    %v3947 = vpop.f32.mrf.mxu0
    %v3948 = vadd.f32 0.0, %v3947
    %v3949 = vpop.f32.mrf.mxu0
    %3950 = vmatprep.mubr.f32.mxu0 0.0
    %3951 = vmatmul.mubr.f32.gmra.mxu0 %v3873
    %v3952 = vpop.f32.mrf.mxu0
    %v3953 = vadd.f32 0.0, %v3952
    %v3954 = vpop.f32.mrf.mxu0
    %3955 = vdwg.mxu0
    %v3956 = vsel %vm112, %v3687, -inf
    %3957 = vmax.xlane.f32.xlu0 %v3956
    %v3958 = vpop.xlane.xlu0 %3957
    %v3959 = vsel %vm112, %v3692, -inf
    %3960 = vmax.xlane.f32.xlu0 %v3959
    %v3961 = vpop.xlane.xlu0 %3960
    %v3962 = vsel %vm112, %v3774, -inf
    %3963 = vmax.xlane.f32.xlu0 %v3962
    %v3964 = vpop.xlane.xlu0 %3963
    %v3965 = vsel %vm112, %v3779, -inf
    %3966 = vmax.xlane.f32.xlu0 %v3965
    %v3967 = vpop.xlane.xlu0 %3966
    %v3968 = vsel %vm112, %v3861, -inf
    %3969 = vmax.xlane.f32.xlu0 %v3968
    %v3970 = vpop.xlane.xlu0 %3969
    %v3971 = vsel %vm112, %v3866, -inf
    %3972 = vmax.xlane.f32.xlu0 %v3971
    %v3973 = vpop.xlane.xlu0 %3972
    %v3974 = vsel %vm112, %v3948, -inf
    %3975 = vmax.xlane.f32.xlu0 %v3974
    %v3976 = vpop.xlane.xlu0 %3975
    %v3977 = vsel %vm112, %v3953, -inf
    %3978 = vmax.xlane.f32.xlu0 %v3977
    %v3979 = vpop.xlane.xlu0 %3978
    %v3980 = vsub.f32 %v3687, %v3958
    %v3981 = vsub.f32 %v3692, %v3961
    %v3982 = vsub.f32 %v3774, %v3964
    %v3983 = vsub.f32 %v3779, %v3967
    %v3984 = vsub.f32 %v3861, %v3970
    %v3985 = vsub.f32 %v3866, %v3973
    %v3986 = vsub.f32 %v3948, %v3976
    %v3987 = vsub.f32 %v3953, %v3979
    %v3988 = vmul.f32 %v3980, 1.442695
    %v3989 = vpow.pop %v3988
    %v3990 = vmul.f32 %v3981, 1.442695
    %v3991 = vpow.pop %v3990
    %v3992 = vmul.f32 %v3982, 1.442695
    %v3993 = vpow.pop %v3992
    %v3994 = vmul.f32 %v3983, 1.442695
    %v3995 = vpow.pop %v3994
    %v3996 = vmul.f32 %v3984, 1.442695
    %v3997 = vpow.pop %v3996
    %v3998 = vmul.f32 %v3985, 1.442695
    %v3999 = vpow.pop %v3998
    %v4000 = vmul.f32 %v3986, 1.442695
    %v4001 = vpow.pop %v4000
    %v4002 = vmul.f32 %v3987, 1.442695
    %v4003 = vpow.pop %v4002
    %v4004 = vsel %vm112, %v3989, 0.0
    %4005 = vadd.xlane.f32.xlu0 %v4004
    %v4006 = vpop.xlane.xlu0 %4005
    %v4007 = vsel %vm112, %v3991, 0.0
    %4008 = vadd.xlane.f32.xlu0 %v4007
    %v4009 = vpop.xlane.xlu0 %4008
    %v4010 = vsel %vm112, %v3993, 0.0
    %4011 = vadd.xlane.f32.xlu0 %v4010
    %v4012 = vpop.xlane.xlu0 %4011
    %v4013 = vsel %vm112, %v3995, 0.0
    %4014 = vadd.xlane.f32.xlu0 %v4013
    %v4015 = vpop.xlane.xlu0 %4014
    %v4016 = vsel %vm112, %v3997, 0.0
    %4017 = vadd.xlane.f32.xlu0 %v4016
    %v4018 = vpop.xlane.xlu0 %4017
    %v4019 = vsel %vm112, %v3999, 0.0
    %4020 = vadd.xlane.f32.xlu0 %v4019
    %v4021 = vpop.xlane.xlu0 %4020
    %v4022 = vsel %vm112, %v4001, 0.0
    %4023 = vadd.xlane.f32.xlu0 %v4022
    %v4024 = vpop.xlane.xlu0 %4023
    %v4025 = vsel %vm112, %v4003, 0.0
    %4026 = vadd.xlane.f32.xlu0 %v4025
    %v4027 = vpop.xlane.xlu0 %4026
    %v4028 = vrcp.pop %v4006
    %v4029 = vmul.f32 %v3989, %v4028
    %v4030 = vrcp.pop %v4009
    %v4031 = vmul.f32 %v3991, %v4030
    %v4032 = vrcp.pop %v4012
    %v4033 = vmul.f32 %v3993, %v4032
    %v4034 = vrcp.pop %v4015
    %v4035 = vmul.f32 %v3995, %v4034
    %v4036 = vrcp.pop %v4018
    %v4037 = vmul.f32 %v3997, %v4036
    %v4038 = vrcp.pop %v4021
    %v4039 = vmul.f32 %v3999, %v4038
    %v4040 = vrcp.pop %v4024
    %v4041 = vmul.f32 %v4001, %v4040
    %v4042 = vrcp.pop %v4027
    %v4043 = vmul.f32 %v4003, %v4042
    %v4045 = vsel %vm112, %v4029, 0
    %v4048 = vsel %vm112, %v4031, 0
    %4050 = vmatprep.subr.mxu0 0.0
    %4051 = vmatpush1.msra.mxu0 0.0
    %4052 = vmatprep.subr.mxu0 0.0
    %4053 = vmatpush1.msra.mxu0 0.0
    %4054 = vmatprep.subr.mxu0 0.0
    %4055 = vmatpush1.msra.mxu0 0.0
    %4056 = vmatprep.subr.mxu0 0.0
    %4057 = vmatpush1.msra.mxu0 0.0
    %4058 = vmatprep.subr.mxu0 0.0
    %4059 = vmatpush1.msra.mxu0 0.0
    %4060 = vmatprep.subr.mxu0 0.0
    %4061 = vmatpush1.msra.mxu0 0.0
    %4062 = vmatprep.subr.mxu0 0.0
    %4063 = vmatpush1.msra.mxu0 0.0
    %4064 = vmatprep.subr.mxu0 0.0
    %4065 = vmatpush1.msra.mxu0 0.0
    %4066 = vmatprep.subr.mxu0 0.0
    %4067 = vmatpush1.msra.mxu0 0.0
    %4068 = vmatprep.subr.mxu0 0.0
    %4069 = vmatpush1.msra.mxu0 0.0
    %4070 = vmatprep.subr.mxu0 0.0
    %4071 = vmatpush1.msra.mxu0 0.0
    %4072 = vmatprep.subr.mxu0 0.0
    %4073 = vmatpush1.msra.mxu0 0.0
    %4074 = vmatprep.subr.mxu0 0.0
    %4075 = vmatpush1.msra.mxu0 0.0
    %4076 = vmatprep.subr.mxu0 0.0
    %4077 = vmatpush1.msra.mxu0 0.0
    %4078 = vmatprep.subr.mxu0 0.0
    %4079 = vmatpush1.msra.mxu0 %v3604
    %4080 = vmatprep.subr.mxu0 0.0
    %4081 = vmatpush1.msra.mxu0 %v3536
    %4082 = vmatprep.subr.mxu0 0.0
    %4083 = vmatpush2.msra.mxu0 0.0
    %4084 = vmatprep.subr.mxu0 0.0
    %4085 = vmatpush2.msra.mxu0 0.0
    %4086 = vmatprep.subr.mxu0 0.0
    %4087 = vmatpush2.msra.mxu0 0.0
    %4088 = vmatprep.subr.mxu0 0.0
    %4089 = vmatpush2.msra.mxu0 0.0
    %4090 = vmatprep.subr.mxu0 0.0
    %4091 = vmatpush2.msra.mxu0 0.0
    %4092 = vmatprep.subr.mxu0 0.0
    %4093 = vmatpush2.msra.mxu0 0.0
    %4094 = vmatprep.subr.mxu0 0.0
    %4095 = vmatpush2.msra.mxu0 0.0
    %4096 = vmatprep.subr.mxu0 0.0
    %4097 = vmatpush2.msra.mxu0 0.0
    %4098 = vmatprep.subr.mxu0 0.0
    %4099 = vmatpush2.msra.mxu0 0.0
    %4100 = vmatprep.subr.mxu0 0.0
    %4101 = vmatpush2.msra.mxu0 0.0
    %4102 = vmatprep.subr.mxu0 0.0
    %4103 = vmatpush2.msra.mxu0 0.0
    %4104 = vmatprep.subr.mxu0 0.0
    %4105 = vmatpush2.msra.mxu0 0.0
    %4106 = vmatprep.subr.mxu0 0.0
    %4107 = vmatpush2.msra.mxu0 0.0
    %4108 = vmatprep.subr.mxu0 0.0
    %4109 = vmatpush2.msra.mxu0 0.0
    %4110 = vmatprep.subr.mxu0 0.0
    %4111 = vmatpush2.msra.mxu0 0.0
    %4112 = vmatprep.subr.mxu0 0.0
    %4113 = vmatpush2.msra.mxu0 0.0
    %4114 = vmatprep.mubr.f32.mxu0 0.0
    %4115 = vmatmul.mubr.f32.gmra.mxu0 %v4045
    %v4116 = vpop.f32.mrf.mxu0
    %v4117 = vadd.f32 0.0, %v4116
    %v4118 = vpop.f32.mrf.mxu0
    %4119 = vmatprep.mubr.f32.mxu0 0.0
    %4120 = vmatmul.mubr.f32.gmra.mxu0 %v4048
    %v4121 = vpop.f32.mrf.mxu0
    %v4122 = vadd.f32 0.0, %v4121
    %v4123 = vpop.f32.mrf.mxu0
    %4124 = vdwg.mxu0
    %v4126 = vsel %vm112, %v4033, 0
    %v4129 = vsel %vm112, %v4035, 0
    %4131 = vmatprep.subr.mxu0 0.0
    %4132 = vmatpush1.msra.mxu0 0.0
    %4133 = vmatprep.subr.mxu0 0.0
    %4134 = vmatpush1.msra.mxu0 0.0
    %4135 = vmatprep.subr.mxu0 0.0
    %4136 = vmatpush1.msra.mxu0 0.0
    %4137 = vmatprep.subr.mxu0 0.0
    %4138 = vmatpush1.msra.mxu0 0.0
    %4139 = vmatprep.subr.mxu0 0.0
    %4140 = vmatpush1.msra.mxu0 0.0
    %4141 = vmatprep.subr.mxu0 0.0
    %4142 = vmatpush1.msra.mxu0 0.0
    %4143 = vmatprep.subr.mxu0 0.0
    %4144 = vmatpush1.msra.mxu0 0.0
    %4145 = vmatprep.subr.mxu0 0.0
    %4146 = vmatpush1.msra.mxu0 0.0
    %4147 = vmatprep.subr.mxu0 0.0
    %4148 = vmatpush1.msra.mxu0 0.0
    %4149 = vmatprep.subr.mxu0 0.0
    %4150 = vmatpush1.msra.mxu0 0.0
    %4151 = vmatprep.subr.mxu0 0.0
    %4152 = vmatpush1.msra.mxu0 0.0
    %4153 = vmatprep.subr.mxu0 0.0
    %4154 = vmatpush1.msra.mxu0 0.0
    %4155 = vmatprep.subr.mxu0 0.0
    %4156 = vmatpush1.msra.mxu0 0.0
    %4157 = vmatprep.subr.mxu0 0.0
    %4158 = vmatpush1.msra.mxu0 0.0
    %4159 = vmatprep.subr.mxu0 0.0
    %4160 = vmatpush1.msra.mxu0 %v3605
    %4161 = vmatprep.subr.mxu0 0.0
    %4162 = vmatpush1.msra.mxu0 %v3537
    %4163 = vmatprep.subr.mxu0 0.0
    %4164 = vmatpush2.msra.mxu0 0.0
    %4165 = vmatprep.subr.mxu0 0.0
    %4166 = vmatpush2.msra.mxu0 0.0
    %4167 = vmatprep.subr.mxu0 0.0
    %4168 = vmatpush2.msra.mxu0 0.0
    %4169 = vmatprep.subr.mxu0 0.0
    %4170 = vmatpush2.msra.mxu0 0.0
    %4171 = vmatprep.subr.mxu0 0.0
    %4172 = vmatpush2.msra.mxu0 0.0
    %4173 = vmatprep.subr.mxu0 0.0
    %4174 = vmatpush2.msra.mxu0 0.0
    %4175 = vmatprep.subr.mxu0 0.0
    %4176 = vmatpush2.msra.mxu0 0.0
    %4177 = vmatprep.subr.mxu0 0.0
    %4178 = vmatpush2.msra.mxu0 0.0
    %4179 = vmatprep.subr.mxu0 0.0
    %4180 = vmatpush2.msra.mxu0 0.0
    %4181 = vmatprep.subr.mxu0 0.0
    %4182 = vmatpush2.msra.mxu0 0.0
    %4183 = vmatprep.subr.mxu0 0.0
    %4184 = vmatpush2.msra.mxu0 0.0
    %4185 = vmatprep.subr.mxu0 0.0
    %4186 = vmatpush2.msra.mxu0 0.0
    %4187 = vmatprep.subr.mxu0 0.0
    %4188 = vmatpush2.msra.mxu0 0.0
    %4189 = vmatprep.subr.mxu0 0.0
    %4190 = vmatpush2.msra.mxu0 0.0
    %4191 = vmatprep.subr.mxu0 0.0
    %4192 = vmatpush2.msra.mxu0 0.0
    %4193 = vmatprep.subr.mxu0 0.0
    %4194 = vmatpush2.msra.mxu0 0.0
    %4195 = vmatprep.mubr.f32.mxu0 0.0
    %4196 = vmatmul.mubr.f32.gmra.mxu0 %v4126
    %v4197 = vpop.f32.mrf.mxu0
    %v4198 = vadd.f32 0.0, %v4197
    %v4199 = vpop.f32.mrf.mxu0
    %4200 = vmatprep.mubr.f32.mxu0 0.0
    %4201 = vmatmul.mubr.f32.gmra.mxu0 %v4129
    %v4202 = vpop.f32.mrf.mxu0
    %v4203 = vadd.f32 0.0, %v4202
    %v4204 = vpop.f32.mrf.mxu0
    %4205 = vdwg.mxu0
    %v4207 = vsel %vm112, %v4037, 0
    %v4210 = vsel %vm112, %v4039, 0
    %4212 = vmatprep.subr.mxu0 0.0
    %4213 = vmatpush1.msra.mxu0 0.0
    %4214 = vmatprep.subr.mxu0 0.0
    %4215 = vmatpush1.msra.mxu0 0.0
    %4216 = vmatprep.subr.mxu0 0.0
    %4217 = vmatpush1.msra.mxu0 0.0
    %4218 = vmatprep.subr.mxu0 0.0
    %4219 = vmatpush1.msra.mxu0 0.0
    %4220 = vmatprep.subr.mxu0 0.0
    %4221 = vmatpush1.msra.mxu0 0.0
    %4222 = vmatprep.subr.mxu0 0.0
    %4223 = vmatpush1.msra.mxu0 0.0
    %4224 = vmatprep.subr.mxu0 0.0
    %4225 = vmatpush1.msra.mxu0 0.0
    %4226 = vmatprep.subr.mxu0 0.0
    %4227 = vmatpush1.msra.mxu0 0.0
    %4228 = vmatprep.subr.mxu0 0.0
    %4229 = vmatpush1.msra.mxu0 0.0
    %4230 = vmatprep.subr.mxu0 0.0
    %4231 = vmatpush1.msra.mxu0 0.0
    %4232 = vmatprep.subr.mxu0 0.0
    %4233 = vmatpush1.msra.mxu0 0.0
    %4234 = vmatprep.subr.mxu0 0.0
    %4235 = vmatpush1.msra.mxu0 0.0
    %4236 = vmatprep.subr.mxu0 0.0
    %4237 = vmatpush1.msra.mxu0 0.0
    %4238 = vmatprep.subr.mxu0 0.0
    %4239 = vmatpush1.msra.mxu0 0.0
    %4240 = vmatprep.subr.mxu0 0.0
    %4241 = vmatpush1.msra.mxu0 %v3606
    %4242 = vmatprep.subr.mxu0 0.0
    %4243 = vmatpush1.msra.mxu0 %v3538
    %4244 = vmatprep.subr.mxu0 0.0
    %4245 = vmatpush2.msra.mxu0 0.0
    %4246 = vmatprep.subr.mxu0 0.0
    %4247 = vmatpush2.msra.mxu0 0.0
    %4248 = vmatprep.subr.mxu0 0.0
    %4249 = vmatpush2.msra.mxu0 0.0
    %4250 = vmatprep.subr.mxu0 0.0
    %4251 = vmatpush2.msra.mxu0 0.0
    %4252 = vmatprep.subr.mxu0 0.0
    %4253 = vmatpush2.msra.mxu0 0.0
    %4254 = vmatprep.subr.mxu0 0.0
    %4255 = vmatpush2.msra.mxu0 0.0
    %4256 = vmatprep.subr.mxu0 0.0
    %4257 = vmatpush2.msra.mxu0 0.0
    %4258 = vmatprep.subr.mxu0 0.0
    %4259 = vmatpush2.msra.mxu0 0.0
    %4260 = vmatprep.subr.mxu0 0.0
    %4261 = vmatpush2.msra.mxu0 0.0
    %4262 = vmatprep.subr.mxu0 0.0
    %4263 = vmatpush2.msra.mxu0 0.0
    %4264 = vmatprep.subr.mxu0 0.0
    %4265 = vmatpush2.msra.mxu0 0.0
    %4266 = vmatprep.subr.mxu0 0.0
    %4267 = vmatpush2.msra.mxu0 0.0
    %4268 = vmatprep.subr.mxu0 0.0
    %4269 = vmatpush2.msra.mxu0 0.0
    %4270 = vmatprep.subr.mxu0 0.0
    %4271 = vmatpush2.msra.mxu0 0.0
    %4272 = vmatprep.subr.mxu0 0.0
    %4273 = vmatpush2.msra.mxu0 0.0
    %4274 = vmatprep.subr.mxu0 0.0
    %4275 = vmatpush2.msra.mxu0 0.0
    %4276 = vmatprep.mubr.f32.mxu0 0.0
    %4277 = vmatmul.mubr.f32.gmra.mxu0 %v4207
    %v4278 = vpop.f32.mrf.mxu0
    %v4279 = vadd.f32 0.0, %v4278
    %v4280 = vpop.f32.mrf.mxu0
    %4281 = vmatprep.mubr.f32.mxu0 0.0
    %4282 = vmatmul.mubr.f32.gmra.mxu0 %v4210
    %v4283 = vpop.f32.mrf.mxu0
    %v4284 = vadd.f32 0.0, %v4283
    %v4285 = vpop.f32.mrf.mxu0
    %4286 = vdwg.mxu0
    %v4288 = vsel %vm112, %v4041, 0
    %v4291 = vsel %vm112, %v4043, 0
    %4293 = vmatprep.subr.mxu0 0.0
    %4294 = vmatpush1.msra.mxu0 0.0
    %4295 = vmatprep.subr.mxu0 0.0
    %4296 = vmatpush1.msra.mxu0 0.0
    %4297 = vmatprep.subr.mxu0 0.0
    %4298 = vmatpush1.msra.mxu0 0.0
    %4299 = vmatprep.subr.mxu0 0.0
    %4300 = vmatpush1.msra.mxu0 0.0
    %4301 = vmatprep.subr.mxu0 0.0
    %4302 = vmatpush1.msra.mxu0 0.0
    %4303 = vmatprep.subr.mxu0 0.0
    %4304 = vmatpush1.msra.mxu0 0.0
    %4305 = vmatprep.subr.mxu0 0.0
    %4306 = vmatpush1.msra.mxu0 0.0
    %4307 = vmatprep.subr.mxu0 0.0
    %4308 = vmatpush1.msra.mxu0 0.0
    %4309 = vmatprep.subr.mxu0 0.0
    %4310 = vmatpush1.msra.mxu0 0.0
    %4311 = vmatprep.subr.mxu0 0.0
    %4312 = vmatpush1.msra.mxu0 0.0
    %4313 = vmatprep.subr.mxu0 0.0
    %4314 = vmatpush1.msra.mxu0 0.0
    %4315 = vmatprep.subr.mxu0 0.0
    %4316 = vmatpush1.msra.mxu0 0.0
    %4317 = vmatprep.subr.mxu0 0.0
    %4318 = vmatpush1.msra.mxu0 0.0
    %4319 = vmatprep.subr.mxu0 0.0
    %4320 = vmatpush1.msra.mxu0 0.0
    %4321 = vmatprep.subr.mxu0 0.0
    %4322 = vmatpush1.msra.mxu0 %v3607
    %4323 = vmatprep.subr.mxu0 0.0
    %4324 = vmatpush1.msra.mxu0 %v3539
    %4325 = vmatprep.subr.mxu0 0.0
    %4326 = vmatpush2.msra.mxu0 0.0
    %4327 = vmatprep.subr.mxu0 0.0
    %4328 = vmatpush2.msra.mxu0 0.0
    %4329 = vmatprep.subr.mxu0 0.0
    %4330 = vmatpush2.msra.mxu0 0.0
    %4331 = vmatprep.subr.mxu0 0.0
    %4332 = vmatpush2.msra.mxu0 0.0
    %4333 = vmatprep.subr.mxu0 0.0
    %4334 = vmatpush2.msra.mxu0 0.0
    %4335 = vmatprep.subr.mxu0 0.0
    %4336 = vmatpush2.msra.mxu0 0.0
    %4337 = vmatprep.subr.mxu0 0.0
    %4338 = vmatpush2.msra.mxu0 0.0
    %4339 = vmatprep.subr.mxu0 0.0
    %4340 = vmatpush2.msra.mxu0 0.0
    %4341 = vmatprep.subr.mxu0 0.0
    %4342 = vmatpush2.msra.mxu0 0.0
    %4343 = vmatprep.subr.mxu0 0.0
    %4344 = vmatpush2.msra.mxu0 0.0
    %4345 = vmatprep.subr.mxu0 0.0
    %4346 = vmatpush2.msra.mxu0 0.0
    %4347 = vmatprep.subr.mxu0 0.0
    %4348 = vmatpush2.msra.mxu0 0.0
    %4349 = vmatprep.subr.mxu0 0.0
    %4350 = vmatpush2.msra.mxu0 0.0
    %4351 = vmatprep.subr.mxu0 0.0
    %4352 = vmatpush2.msra.mxu0 0.0
    %4353 = vmatprep.subr.mxu0 0.0
    %4354 = vmatpush2.msra.mxu0 0.0
    %4355 = vmatprep.subr.mxu0 0.0
    %4356 = vmatpush2.msra.mxu0 0.0
    %4357 = vmatprep.mubr.f32.mxu0 0.0
    %4358 = vmatmul.mubr.f32.gmra.mxu0 %v4288
    %v4359 = vpop.f32.mrf.mxu0
    %v4360 = vadd.f32 0.0, %v4359
    %v4361 = vpop.f32.mrf.mxu0
    %4362 = vmatprep.mubr.f32.mxu0 0.0
    %4363 = vmatmul.mubr.f32.gmra.mxu0 %v4291
    %v4364 = vpop.f32.mrf.mxu0
    %v4365 = vadd.f32 0.0, %v4364
    %v4366 = vpop.f32.mrf.mxu0
    %4367 = vdwg.mxu0
    %v4368 = vcombine.low %v4117, %v4279
    %v4369 = vcombine.high %v4117, %v4279
    %v4371 = vunpack.c.l.s4 1983009808
    %v4372 = vunpack.c.0.s8 %v4371
    %v4373 = vlaneseq
    %v4374 = vshrl.u32 %v4373, 7
    %v4375 = vsub.s32 %v4372, %v4374
    %v4376 = vrot.slane %v4368, %v4375
    %v4378 = vunpack.c.l.s4 1983009808
    %v4379 = vunpack.c.0.s8 %v4378
    %v4380 = vlaneseq
    %v4381 = vshrl.u32 %v4380, 7
    %v4382 = vsub.s32 %v4379, %v4381
    %v4383 = vrot.slane %v4369, %v4382
    %v4384 = vcombine.low %v4198, %v4360
    %v4385 = vcombine.high %v4198, %v4360
    %v4387 = vunpack.c.l.s4 1983009808
    %v4388 = vunpack.c.0.s8 %v4387
    %v4389 = vlaneseq
    %v4390 = vshrl.u32 %v4389, 7
    %v4391 = vsub.s32 %v4388, %v4390
    %v4392 = vrot.slane %v4384, %v4391
    %v4394 = vunpack.c.l.s4 1983009808
    %v4395 = vunpack.c.0.s8 %v4394
    %v4396 = vlaneseq
    %v4397 = vshrl.u32 %v4396, 7
    %v4398 = vsub.s32 %v4395, %v4397
    %v4399 = vrot.slane %v4385, %v4398
    %v4400 = vcombine.low %v4376, %v4392
    %v4401 = vcombine.high %v4376, %v4392
    %v4403 = vunpack.c.l.s4 1934713408
    %v4404 = vunpack.c.0.s8 %v4403
    %v4405 = vlaneseq
    %v4406 = vshrl.u32 %v4405, 7
    %v4407 = vsub.s32 %v4404, %v4406
    %v4408 = vrot.slane %v4400, %v4407
    %v4410 = vunpack.c.l.s4 1934713408
    %v4411 = vunpack.c.0.s8 %v4410
    %v4412 = vlaneseq
    %v4413 = vshrl.u32 %v4412, 7
    %v4414 = vsub.s32 %v4411, %v4413
    %v4415 = vrot.slane %v4401, %v4414
    %v4416 = vcombine.low %v4383, %v4399
    %v4417 = vcombine.high %v4383, %v4399
    %v4419 = vunpack.c.l.s4 1934713408
    %v4420 = vunpack.c.0.s8 %v4419
    %v4421 = vlaneseq
    %v4422 = vshrl.u32 %v4421, 7
    %v4423 = vsub.s32 %v4420, %v4422
    %v4424 = vrot.slane %v4416, %v4423
    %v4426 = vunpack.c.l.s4 1934713408
    %v4427 = vunpack.c.0.s8 %v4426
    %v4428 = vlaneseq
    %v4429 = vshrl.u32 %v4428, 7
    %v4430 = vsub.s32 %v4427, %v4429
    %v4431 = vrot.slane %v4417, %v4430
    %v4432 = vcombine.high %v4408, 0.0
    %v4433 = vcombine.high %v4415, 0.0
    %v4434 = vcombine.high %v4424, 0.0
    %v4435 = vcombine.high %v4431, 0.0
    %v4436 = vcombine.low %v4122, %v4284
    %v4437 = vcombine.high %v4122, %v4284
    %v4439 = vunpack.c.l.s4 1983009808
    %v4440 = vunpack.c.0.s8 %v4439
    %v4441 = vlaneseq
    %v4442 = vshrl.u32 %v4441, 7
    %v4443 = vsub.s32 %v4440, %v4442
    %v4444 = vrot.slane %v4436, %v4443
    %v4446 = vunpack.c.l.s4 1983009808
    %v4447 = vunpack.c.0.s8 %v4446
    %v4448 = vlaneseq
    %v4449 = vshrl.u32 %v4448, 7
    %v4450 = vsub.s32 %v4447, %v4449
    %v4451 = vrot.slane %v4437, %v4450
    %v4452 = vcombine.low %v4203, %v4365
    %v4453 = vcombine.high %v4203, %v4365
    %v4455 = vunpack.c.l.s4 1983009808
    %v4456 = vunpack.c.0.s8 %v4455
    %v4457 = vlaneseq
    %v4458 = vshrl.u32 %v4457, 7
    %v4459 = vsub.s32 %v4456, %v4458
    %v4460 = vrot.slane %v4452, %v4459
    %v4462 = vunpack.c.l.s4 1983009808
    %v4463 = vunpack.c.0.s8 %v4462
    %v4464 = vlaneseq
    %v4465 = vshrl.u32 %v4464, 7
    %v4466 = vsub.s32 %v4463, %v4465
    %v4467 = vrot.slane %v4453, %v4466
    %v4468 = vcombine.low %v4444, %v4460
    %v4469 = vcombine.high %v4444, %v4460
    %v4471 = vunpack.c.l.s4 1934713408
    %v4472 = vunpack.c.0.s8 %v4471
    %v4473 = vlaneseq
    %v4474 = vshrl.u32 %v4473, 7
    %v4475 = vsub.s32 %v4472, %v4474
    %v4476 = vrot.slane %v4468, %v4475
    %v4478 = vunpack.c.l.s4 1934713408
    %v4479 = vunpack.c.0.s8 %v4478
    %v4480 = vlaneseq
    %v4481 = vshrl.u32 %v4480, 7
    %v4482 = vsub.s32 %v4479, %v4481
    %v4483 = vrot.slane %v4469, %v4482
    %v4484 = vcombine.low %v4451, %v4467
    %v4485 = vcombine.high %v4451, %v4467
    %v4487 = vunpack.c.l.s4 1934713408
    %v4488 = vunpack.c.0.s8 %v4487
    %v4489 = vlaneseq
    %v4490 = vshrl.u32 %v4489, 7
    %v4491 = vsub.s32 %v4488, %v4490
    %v4492 = vrot.slane %v4484, %v4491
    %v4494 = vunpack.c.l.s4 1934713408
    %v4495 = vunpack.c.0.s8 %v4494
    %v4496 = vlaneseq
    %v4497 = vshrl.u32 %v4496, 7
    %v4498 = vsub.s32 %v4495, %v4497
    %v4499 = vrot.slane %v4485, %v4498
    %v4500 = vcombine.high %v4476, 0.0
    %v4501 = vcombine.high %v4483, 0.0
    %v4502 = vcombine.high %v4492, 0.0
    %v4503 = vcombine.high %v4499, 0.0
    %v4504 = vcombine.low %v4408, %v4415
    %v4506 = vunpack.c.l.s4 1983009808
    %v4507 = vunpack.c.0.s8 %v4506
    %v4508 = vlaneseq
    %v4509 = vshrl.u32 %v4508, 7
    %v4510 = vsub.s32 %v4507, %v4509
    %v4511 = vrot.slane %v4504, %v4510
    %v4512 = vcombine.low %v4432, %v4433
    %v4514 = vunpack.c.l.s4 1983009808
    %v4515 = vunpack.c.0.s8 %v4514
    %v4516 = vlaneseq
    %v4517 = vshrl.u32 %v4516, 7
    %v4518 = vsub.s32 %v4515, %v4517
    %v4519 = vrot.slane %v4512, %v4518
    %v4520 = vcombine.low %v4424, %v4431
    %v4522 = vunpack.c.l.s4 1983009808
    %v4523 = vunpack.c.0.s8 %v4522
    %v4524 = vlaneseq
    %v4525 = vshrl.u32 %v4524, 7
    %v4526 = vsub.s32 %v4523, %v4525
    %v4527 = vrot.slane %v4520, %v4526
    %v4528 = vcombine.low %v4434, %v4435
    %v4530 = vunpack.c.l.s4 1983009808
    %v4531 = vunpack.c.0.s8 %v4530
    %v4532 = vlaneseq
    %v4533 = vshrl.u32 %v4532, 7
    %v4534 = vsub.s32 %v4531, %v4533
    %v4535 = vrot.slane %v4528, %v4534
    %v4536 = vcombine.low %v4511, %v4519
    %v4537 = vcombine.high %v4511, %v4519
    %v4539 = vunpack.c.l.s4 1934713408
    %v4540 = vunpack.c.0.s8 %v4539
    %v4541 = vlaneseq
    %v4542 = vshrl.u32 %v4541, 7
    %v4543 = vsub.s32 %v4540, %v4542
    %v4544 = vrot.slane %v4536, %v4543
    %v4546 = vunpack.c.l.s4 1934713408
    %v4547 = vunpack.c.0.s8 %v4546
    %v4548 = vlaneseq
    %v4549 = vshrl.u32 %v4548, 7
    %v4550 = vsub.s32 %v4547, %v4549
    %v4551 = vrot.slane %v4537, %v4550
    %v4552 = vcombine.low %v4527, %v4535
    %v4553 = vcombine.high %v4527, %v4535
    %v4555 = vunpack.c.l.s4 1934713408
    %v4556 = vunpack.c.0.s8 %v4555
    %v4557 = vlaneseq
    %v4558 = vshrl.u32 %v4557, 7
    %v4559 = vsub.s32 %v4556, %v4558
    %v4560 = vrot.slane %v4552, %v4559
    %v4562 = vunpack.c.l.s4 1934713408
    %v4563 = vunpack.c.0.s8 %v4562
    %v4564 = vlaneseq
    %v4565 = vshrl.u32 %v4564, 7
    %v4566 = vsub.s32 %v4563, %v4565
    %v4567 = vrot.slane %v4553, %v4566
    %v4568 = vcombine.low %v4544, %v4560
    %v4569 = vcombine.high %v4544, %v4560
    %v4570 = vcombine.low %v4551, %v4567
    %v4571 = vcombine.high %v4551, %v4567
    %v4572 = vcombine.low %v4476, %v4483
    %v4574 = vunpack.c.l.s4 1983009808
    %v4575 = vunpack.c.0.s8 %v4574
    %v4576 = vlaneseq
    %v4577 = vshrl.u32 %v4576, 7
    %v4578 = vsub.s32 %v4575, %v4577
    %v4579 = vrot.slane %v4572, %v4578
    %v4580 = vcombine.low %v4500, %v4501
    %v4582 = vunpack.c.l.s4 1983009808
    %v4583 = vunpack.c.0.s8 %v4582
    %v4584 = vlaneseq
    %v4585 = vshrl.u32 %v4584, 7
    %v4586 = vsub.s32 %v4583, %v4585
    %v4587 = vrot.slane %v4580, %v4586
    %v4588 = vcombine.low %v4492, %v4499
    %v4590 = vunpack.c.l.s4 1983009808
    %v4591 = vunpack.c.0.s8 %v4590
    %v4592 = vlaneseq
    %v4593 = vshrl.u32 %v4592, 7
    %v4594 = vsub.s32 %v4591, %v4593
    %v4595 = vrot.slane %v4588, %v4594
    %v4596 = vcombine.low %v4502, %v4503
    %v4598 = vunpack.c.l.s4 1983009808
    %v4599 = vunpack.c.0.s8 %v4598
    %v4600 = vlaneseq
    %v4601 = vshrl.u32 %v4600, 7
    %v4602 = vsub.s32 %v4599, %v4601
    %v4603 = vrot.slane %v4596, %v4602
    %v4604 = vcombine.low %v4579, %v4587
    %v4605 = vcombine.high %v4579, %v4587
    %v4607 = vunpack.c.l.s4 1934713408
    %v4608 = vunpack.c.0.s8 %v4607
    %v4609 = vlaneseq
    %v4610 = vshrl.u32 %v4609, 7
    %v4611 = vsub.s32 %v4608, %v4610
    %v4612 = vrot.slane %v4604, %v4611
    %v4614 = vunpack.c.l.s4 1934713408
    %v4615 = vunpack.c.0.s8 %v4614
    %v4616 = vlaneseq
    %v4617 = vshrl.u32 %v4616, 7
    %v4618 = vsub.s32 %v4615, %v4617
    %v4619 = vrot.slane %v4605, %v4618
    %v4620 = vcombine.low %v4595, %v4603
    %v4621 = vcombine.high %v4595, %v4603
    %v4623 = vunpack.c.l.s4 1934713408
    %v4624 = vunpack.c.0.s8 %v4623
    %v4625 = vlaneseq
    %v4626 = vshrl.u32 %v4625, 7
    %v4627 = vsub.s32 %v4624, %v4626
    %v4628 = vrot.slane %v4620, %v4627
    %v4630 = vunpack.c.l.s4 1934713408
    %v4631 = vunpack.c.0.s8 %v4630
    %v4632 = vlaneseq
    %v4633 = vshrl.u32 %v4632, 7
    %v4634 = vsub.s32 %v4631, %v4633
    %v4635 = vrot.slane %v4621, %v4634
    %v4636 = vcombine.low %v4612, %v4628
    %v4637 = vcombine.high %v4612, %v4628
    %v4638 = vcombine.low %v4619, %v4635
    %v4639 = vcombine.high %v4619, %v4635
    %4642 = vrot.lane.b32.xlu0 %v4569, 8
    %v4643 = vpop.permute.xlu0 %4642
    %4644 = vrot.lane.b32.xlu0 %v4637, 8
    %v4645 = vpop.permute.xlu0 %4644
    %4650 = vrot.lane.b32.xlu0 %v4570, 16
    %v4651 = vpop.permute.xlu0 %4650
    %4652 = vrot.lane.b32.xlu0 %v4638, 16
    %v4653 = vpop.permute.xlu0 %4652
    %4658 = vrot.lane.b32.xlu0 %v4571, 24
    %v4659 = vpop.permute.xlu0 %4658
    %4660 = vrot.lane.b32.xlu0 %v4639, 24
    %v4661 = vpop.permute.xlu0 %4660
    %v4664 = vsel %vm1191, %v4568, %v4643
    %v4665 = vsel %vm1191, %v4636, %v4645
    %v4666 = vsel %vm112, %v4664, %v4651
    %v4667 = vsel %vm112, %v4665, %v4653
    %v4668 = vsel %vm2252, %v4666, %v4659
    %v4669 = vsel %vm2252, %v4667, %v4661
    %s4670 = scalar_lea.vmem %s4, 32
    %v4671 = vld [vmem:[%s4670] sm:$0xff]
    %v4672 = vld [vmem:[%s4670 + $0x8] sm:$0xff]
    %v4673 = vld [vmem:[%s4670 + $0x10] sm:$0xff]
    %v4674 = vld [vmem:[%s4670 + $0x18] sm:$0xff]
    %v4675 = vlaneseq
    %v4676 = vshrl.u32 %v4675, 7
    %v4677 = vsub.s32 0, %v4676
    %v4678 = vrot.slane %v2611, %v4677
    %v4680 = vsel %vm209, %v4668, 0
    %v4683 = vsel %vm209, %v4669, 0
    %4685 = vmatprep.subr.mxu0 0.0
    %4686 = vmatpush1.msra.mxu0 0.0
    %4687 = vmatprep.subr.mxu0 0.0
    %4688 = vmatpush1.msra.mxu0 0.0
    %4689 = vmatprep.subr.mxu0 0.0
    %4690 = vmatpush1.msra.mxu0 0.0
    %4691 = vmatprep.subr.mxu0 0.0
    %4692 = vmatpush1.msra.mxu0 0.0
    %4693 = vmatprep.subr.mxu0 0.0
    %4694 = vmatpush1.msra.mxu0 0.0
    %4695 = vmatprep.subr.mxu0 0.0
    %4696 = vmatpush1.msra.mxu0 0.0
    %4697 = vmatprep.subr.mxu0 0.0
    %4698 = vmatpush1.msra.mxu0 0.0
    %4699 = vmatprep.subr.mxu0 0.0
    %4700 = vmatpush1.msra.mxu0 0.0
    %4701 = vmatprep.subr.mxu0 0.0
    %4702 = vmatpush1.msra.mxu0 0.0
    %4703 = vmatprep.subr.mxu0 0.0
    %4704 = vmatpush1.msra.mxu0 0.0
    %4705 = vmatprep.subr.mxu0 0.0
    %4706 = vmatpush1.msra.mxu0 0.0
    %4707 = vmatprep.subr.mxu0 0.0
    %4708 = vmatpush1.msra.mxu0 0.0
    %4709 = vmatprep.subr.mxu0 0.0
    %4710 = vmatpush1.msra.mxu0 %v4674
    %4711 = vmatprep.subr.mxu0 0.0
    %4712 = vmatpush1.msra.mxu0 %v4673
    %4713 = vmatprep.subr.mxu0 0.0
    %4714 = vmatpush1.msra.mxu0 %v4672
    %4715 = vmatprep.subr.mxu0 0.0
    %4716 = vmatpush1.msra.mxu0 %v4671
    %4717 = vmatprep.subr.mxu0 0.0
    %4718 = vmatpush2.msra.mxu0 0.0
    %4719 = vmatprep.subr.mxu0 0.0
    %4720 = vmatpush2.msra.mxu0 0.0
    %4721 = vmatprep.subr.mxu0 0.0
    %4722 = vmatpush2.msra.mxu0 0.0
    %4723 = vmatprep.subr.mxu0 0.0
    %4724 = vmatpush2.msra.mxu0 0.0
    %4725 = vmatprep.subr.mxu0 0.0
    %4726 = vmatpush2.msra.mxu0 0.0
    %4727 = vmatprep.subr.mxu0 0.0
    %4728 = vmatpush2.msra.mxu0 0.0
    %4729 = vmatprep.subr.mxu0 0.0
    %4730 = vmatpush2.msra.mxu0 0.0
    %4731 = vmatprep.subr.mxu0 0.0
    %4732 = vmatpush2.msra.mxu0 0.0
    %4733 = vmatprep.subr.mxu0 0.0
    %4734 = vmatpush2.msra.mxu0 0.0
    %4735 = vmatprep.subr.mxu0 0.0
    %4736 = vmatpush2.msra.mxu0 0.0
    %4737 = vmatprep.subr.mxu0 0.0
    %4738 = vmatpush2.msra.mxu0 0.0
    %4739 = vmatprep.subr.mxu0 0.0
    %4740 = vmatpush2.msra.mxu0 0.0
    %4741 = vmatprep.subr.mxu0 0.0
    %4742 = vmatpush2.msra.mxu0 0.0
    %4743 = vmatprep.subr.mxu0 0.0
    %4744 = vmatpush2.msra.mxu0 0.0
    %4745 = vmatprep.subr.mxu0 0.0
    %4746 = vmatpush2.msra.mxu0 0.0
    %4747 = vmatprep.subr.mxu0 0.0
    %4748 = vmatpush2.msra.mxu0 0.0
    %4749 = vmatprep.mubr.f32.mxu0 0.0
    %4750 = vmatmul.mubr.f32.gmra.mxu0 %v4680
    %v4751 = vpop.f32.mrf.mxu0
    %v4752 = vadd.f32 %v4678, %v4751
    %v4753 = vpop.f32.mrf.mxu0
    %4754 = vmatprep.mubr.f32.mxu0 0.0
    %4755 = vmatmul.mubr.f32.gmra.mxu0 %v4683
    %v4756 = vpop.f32.mrf.mxu0
    %v4757 = vadd.f32 %v4678, %v4756
    %v4758 = vpop.f32.mrf.mxu0
    %4759 = vdwg.mxu0
    %v4760 = vadd.f32 %v2609, %v4752
    %v4761 = vadd.f32 %v2610, %v4757
    %v4762 = vsel %vm209, %v4760, 0.0
    %4763 = vadd.xlane.f32.xlu0 %v4762
    %v4764 = vpop.xlane.xlu0 %4763
    %v4765 = vsel %vm209, %v4761, 0.0
    %4766 = vadd.xlane.f32.xlu0 %v4765
    %v4767 = vpop.xlane.xlu0 %4766
    %v4768 = vmul.f32 %v4764, %v2352
    %v4769 = vmul.f32 %v4767, %v2352
    %v4770 = vsub.f32 %v4760, %v4768
    %v4771 = vsub.f32 %v4761, %v4769
    %v4772 = vmul.f32 %v4770, %v4770
    %v4773 = vmul.f32 %v4771, %v4771
    %v4774 = vsel %vm209, %v4772, 0.0
    %4775 = vadd.xlane.f32.xlu0 %v4774
    %v4776 = vpop.xlane.xlu0 %4775
    %v4777 = vsel %vm209, %v4773, 0.0
    %4778 = vadd.xlane.f32.xlu0 %v4777
    %v4779 = vpop.xlane.xlu0 %4778
    %v4780 = vmul.f32 %v4776, %v2352
    %v4781 = vmul.f32 %v4779, %v2352
    %v4782 = vadd.f32 %v4780, 1e-05
    %v4783 = vadd.f32 %v4781, 1e-05
    %v4784 = vrsqrt.pop %v4782
    %v4785 = vrsqrt.pop %v4783
    %v4786 = vmul.f32 %v4770, %v4784
    %v4787 = vmul.f32 %v4771, %v4785
    %v4788 = vlaneseq
    %v4789 = vshrl.u32 %v4788, 7
    %v4790 = vsub.s32 0, %v4789
    %v4791 = vrot.slane %v2612, %v4790
    %v4792 = vmul.f32 %v4786, %v4791
    %v4793 = vmul.f32 %v4787, %v4791
    %v4794 = vlaneseq
    %v4795 = vshrl.u32 %v4794, 7
    %v4796 = vsub.s32 0, %v4795
    %v4797 = vrot.slane %v2613, %v4796
    %v4798 = vadd.f32 %v4792, %v4797
    %v4799 = vadd.f32 %v4793, %v4797
    %s4800 = scalar_lea.vmem %s5, 32
    %v4801 = vld [vmem:[%s4800] sm:$0xff]
    %v4802 = vld [vmem:[%s4800 + $0x8] sm:$0xff]
    %v4803 = vld [vmem:[%s4800 + $0x10] sm:$0xff]
    %v4804 = vld [vmem:[%s4800 + $0x18] sm:$0xff]
    %v4805 = vld [vmem:[%s6 + $0x1] sm:$0x1]
    %v4806 = vlaneseq
    %v4807 = vshrl.u32 %v4806, 7
    %v4808 = vsub.s32 0, %v4807
    %v4809 = vrot.slane %v4805, %v4808
    %v4811 = vsel %vm209, %v4798, 0
    %v4814 = vsel %vm209, %v4799, 0
    %4816 = vmatprep.subr.mxu0 0.0
    %4817 = vmatpush1.msra.mxu0 0.0
    %4818 = vmatprep.subr.mxu0 0.0
    %4819 = vmatpush1.msra.mxu0 0.0
    %4820 = vmatprep.subr.mxu0 0.0
    %4821 = vmatpush1.msra.mxu0 0.0
    %4822 = vmatprep.subr.mxu0 0.0
    %4823 = vmatpush1.msra.mxu0 0.0
    %4824 = vmatprep.subr.mxu0 0.0
    %4825 = vmatpush1.msra.mxu0 0.0
    %4826 = vmatprep.subr.mxu0 0.0
    %4827 = vmatpush1.msra.mxu0 0.0
    %4828 = vmatprep.subr.mxu0 0.0
    %4829 = vmatpush1.msra.mxu0 0.0
    %4830 = vmatprep.subr.mxu0 0.0
    %4831 = vmatpush1.msra.mxu0 0.0
    %4832 = vmatprep.subr.mxu0 0.0
    %4833 = vmatpush1.msra.mxu0 0.0
    %4834 = vmatprep.subr.mxu0 0.0
    %4835 = vmatpush1.msra.mxu0 0.0
    %4836 = vmatprep.subr.mxu0 0.0
    %4837 = vmatpush1.msra.mxu0 0.0
    %4838 = vmatprep.subr.mxu0 0.0
    %4839 = vmatpush1.msra.mxu0 0.0
    %4840 = vmatprep.subr.mxu0 0.0
    %4841 = vmatpush1.msra.mxu0 %v4804
    %4842 = vmatprep.subr.mxu0 0.0
    %4843 = vmatpush1.msra.mxu0 %v4803
    %4844 = vmatprep.subr.mxu0 0.0
    %4845 = vmatpush1.msra.mxu0 %v4802
    %4846 = vmatprep.subr.mxu0 0.0
    %4847 = vmatpush1.msra.mxu0 %v4801
    %4848 = vmatprep.subr.mxu0 0.0
    %4849 = vmatpush2.msra.mxu0 0.0
    %4850 = vmatprep.subr.mxu0 0.0
    %4851 = vmatpush2.msra.mxu0 0.0
    %4852 = vmatprep.subr.mxu0 0.0
    %4853 = vmatpush2.msra.mxu0 0.0
    %4854 = vmatprep.subr.mxu0 0.0
    %4855 = vmatpush2.msra.mxu0 0.0
    %4856 = vmatprep.subr.mxu0 0.0
    %4857 = vmatpush2.msra.mxu0 0.0
    %4858 = vmatprep.subr.mxu0 0.0
    %4859 = vmatpush2.msra.mxu0 0.0
    %4860 = vmatprep.subr.mxu0 0.0
    %4861 = vmatpush2.msra.mxu0 0.0
    %4862 = vmatprep.subr.mxu0 0.0
    %4863 = vmatpush2.msra.mxu0 0.0
    %4864 = vmatprep.subr.mxu0 0.0
    %4865 = vmatpush2.msra.mxu0 0.0
    %4866 = vmatprep.subr.mxu0 0.0
    %4867 = vmatpush2.msra.mxu0 0.0
    %4868 = vmatprep.subr.mxu0 0.0
    %4869 = vmatpush2.msra.mxu0 0.0
    %4870 = vmatprep.subr.mxu0 0.0
    %4871 = vmatpush2.msra.mxu0 0.0
    %4872 = vmatprep.subr.mxu0 0.0
    %4873 = vmatpush2.msra.mxu0 0.0
    %4874 = vmatprep.subr.mxu0 0.0
    %4875 = vmatpush2.msra.mxu0 0.0
    %4876 = vmatprep.subr.mxu0 0.0
    %4877 = vmatpush2.msra.mxu0 0.0
    %4878 = vmatprep.subr.mxu0 0.0
    %4879 = vmatpush2.msra.mxu0 0.0
    %4880 = vmatprep.mubr.f32.mxu0 0.0
    %4881 = vmatmul.mubr.f32.gmra.mxu0 %v4811
    %v4882 = vpop.f32.mrf.mxu0
    %v4883 = vadd.f32 %v4809, %v4882
    %v4884 = vpop.f32.mrf.mxu0
    %4885 = vmatprep.mubr.f32.mxu0 0.0
    %4886 = vmatmul.mubr.f32.gmra.mxu0 %v4814
    %v4887 = vpop.f32.mrf.mxu0
    %v4888 = vadd.f32 %v4809, %v4887
    %v4889 = vpop.f32.mrf.mxu0
    %4890 = vdwg.mxu0
    %v4891 = vmax.f32 %v4883, 0.0
    %v4892 = vmax.f32 %v4888, 0.0
    %s4893 = scalar_lea.vmem %s7, 64
    %v4894 = vld [vmem:[%s4893] sm:$0xff]
    %v4895 = vld [vmem:[%s4893 + $0x8] sm:$0xff]
    %v4896 = vld [vmem:[%s4893 + $0x10] sm:$0xff]
    %v4897 = vld [vmem:[%s4893 + $0x18] sm:$0xff]
    %v4898 = vld [vmem:[%s4893 + $0x20] sm:$0xff]
    %v4899 = vld [vmem:[%s4893 + $0x28] sm:$0xff]
    %v4900 = vld [vmem:[%s4893 + $0x30] sm:$0xff]
    %v4901 = vld [vmem:[%s4893 + $0x38] sm:$0xff]
    %v4902 = vlaneseq
    %v4903 = vshrl.u32 %v4902, 7
    %v4904 = vsub.s32 0, %v4903
    %v4905 = vrot.slane %v2614, %v4904
    %v4907 = vsel %vm2489, %v4891, 0
    %v4910 = vsel %vm2489, %v4892, 0
    %4912 = vmatprep.subr.mxu0 0.0
    %4913 = vmatpush1.msra.mxu0 0.0
    %4914 = vmatprep.subr.mxu0 0.0
    %4915 = vmatpush1.msra.mxu0 0.0
    %4916 = vmatprep.subr.mxu0 0.0
    %4917 = vmatpush1.msra.mxu0 0.0
    %4918 = vmatprep.subr.mxu0 0.0
    %4919 = vmatpush1.msra.mxu0 0.0
    %4920 = vmatprep.subr.mxu0 0.0
    %4921 = vmatpush1.msra.mxu0 0.0
    %4922 = vmatprep.subr.mxu0 0.0
    %4923 = vmatpush1.msra.mxu0 0.0
    %4924 = vmatprep.subr.mxu0 0.0
    %4925 = vmatpush1.msra.mxu0 0.0
    %4926 = vmatprep.subr.mxu0 0.0
    %4927 = vmatpush1.msra.mxu0 0.0
    %4928 = vmatprep.subr.mxu0 0.0
    %4929 = vmatpush1.msra.mxu0 %v4901
    %4930 = vmatprep.subr.mxu0 0.0
    %4931 = vmatpush1.msra.mxu0 %v4900
    %4932 = vmatprep.subr.mxu0 0.0
    %4933 = vmatpush1.msra.mxu0 %v4899
    %4934 = vmatprep.subr.mxu0 0.0
    %4935 = vmatpush1.msra.mxu0 %v4898
    %4936 = vmatprep.subr.mxu0 0.0
    %4937 = vmatpush1.msra.mxu0 %v4897
    %4938 = vmatprep.subr.mxu0 0.0
    %4939 = vmatpush1.msra.mxu0 %v4896
    %4940 = vmatprep.subr.mxu0 0.0
    %4941 = vmatpush1.msra.mxu0 %v4895
    %4942 = vmatprep.subr.mxu0 0.0
    %4943 = vmatpush1.msra.mxu0 %v4894
    %4944 = vmatprep.subr.mxu0 0.0
    %4945 = vmatpush2.msra.mxu0 0.0
    %4946 = vmatprep.subr.mxu0 0.0
    %4947 = vmatpush2.msra.mxu0 0.0
    %4948 = vmatprep.subr.mxu0 0.0
    %4949 = vmatpush2.msra.mxu0 0.0
    %4950 = vmatprep.subr.mxu0 0.0
    %4951 = vmatpush2.msra.mxu0 0.0
    %4952 = vmatprep.subr.mxu0 0.0
    %4953 = vmatpush2.msra.mxu0 0.0
    %4954 = vmatprep.subr.mxu0 0.0
    %4955 = vmatpush2.msra.mxu0 0.0
    %4956 = vmatprep.subr.mxu0 0.0
    %4957 = vmatpush2.msra.mxu0 0.0
    %4958 = vmatprep.subr.mxu0 0.0
    %4959 = vmatpush2.msra.mxu0 0.0
    %4960 = vmatprep.subr.mxu0 0.0
    %4961 = vmatpush2.msra.mxu0 0.0
    %4962 = vmatprep.subr.mxu0 0.0
    %4963 = vmatpush2.msra.mxu0 0.0
    %4964 = vmatprep.subr.mxu0 0.0
    %4965 = vmatpush2.msra.mxu0 0.0
    %4966 = vmatprep.subr.mxu0 0.0
    %4967 = vmatpush2.msra.mxu0 0.0
    %4968 = vmatprep.subr.mxu0 0.0
    %4969 = vmatpush2.msra.mxu0 0.0
    %4970 = vmatprep.subr.mxu0 0.0
    %4971 = vmatpush2.msra.mxu0 0.0
    %4972 = vmatprep.subr.mxu0 0.0
    %4973 = vmatpush2.msra.mxu0 0.0
    %4974 = vmatprep.subr.mxu0 0.0
    %4975 = vmatpush2.msra.mxu0 0.0
    %4976 = vmatprep.mubr.f32.mxu0 0.0
    %4977 = vmatmul.mubr.f32.gmra.mxu0 %v4907
    %v4978 = vpop.f32.mrf.mxu0
    %v4979 = vadd.f32 %v4905, %v4978
    %v4980 = vpop.f32.mrf.mxu0
    %4981 = vmatprep.mubr.f32.mxu0 0.0
    %4982 = vmatmul.mubr.f32.gmra.mxu0 %v4910
    %v4983 = vpop.f32.mrf.mxu0
    %v4984 = vadd.f32 %v4905, %v4983
    %v4985 = vpop.f32.mrf.mxu0
    %4986 = vdwg.mxu0
    %v4987 = vadd.f32 %v4798, %v4979
    %v4988 = vadd.f32 %v4799, %v4984
    %v4989 = vsel %vm209, %v4987, 0.0
    %4990 = vadd.xlane.f32.xlu0 %v4989
    %v4991 = vpop.xlane.xlu0 %4990
    %v4992 = vsel %vm209, %v4988, 0.0
    %4993 = vadd.xlane.f32.xlu0 %v4992
    %v4994 = vpop.xlane.xlu0 %4993
    %v4995 = vmul.f32 %v4991, %v2352
    %v4996 = vmul.f32 %v4994, %v2352
    %v4997 = vsub.f32 %v4987, %v4995
    %v4998 = vsub.f32 %v4988, %v4996
    %v4999 = vmul.f32 %v4997, %v4997
    %v5000 = vmul.f32 %v4998, %v4998
    %v5001 = vsel %vm209, %v4999, 0.0
    %5002 = vadd.xlane.f32.xlu0 %v5001
    %v5003 = vpop.xlane.xlu0 %5002
    %v5004 = vsel %vm209, %v5000, 0.0
    %5005 = vadd.xlane.f32.xlu0 %v5004
    %v5006 = vpop.xlane.xlu0 %5005
    %v5007 = vmul.f32 %v5003, %v2352
    %v5008 = vmul.f32 %v5006, %v2352
    %v5009 = vadd.f32 %v5007, 1e-05
    %v5010 = vadd.f32 %v5008, 1e-05
    %v5011 = vrsqrt.pop %v5009
    %v5012 = vrsqrt.pop %v5010
    %v5013 = vmul.f32 %v4997, %v5011
    %v5014 = vmul.f32 %v4998, %v5012
    %v5015 = vlaneseq
    %v5016 = vshrl.u32 %v5015, 7
    %v5017 = vsub.s32 0, %v5016
    %v5018 = vrot.slane %v2615, %v5017
    %v5019 = vmul.f32 %v5013, %v5018
    %v5020 = vmul.f32 %v5014, %v5018
    %v5021 = vlaneseq
    %v5022 = vshrl.u32 %v5021, 7
    %v5023 = vsub.s32 0, %v5022
    %v5024 = vrot.slane %v2616, %v5023
    %v5025 = vadd.f32 %v5019, %v5024
    %v5026 = vadd.f32 %v5020, %v5024
    %v5027 = vld [vmem:[#allocation7 + $0xd] sm:$0x1]
    %v5028 = vld [vmem:[%s9] sm:$0xff]
    %v5029 = vld [vmem:[%s9 + $0x8] sm:$0xff]
    %v5030 = vld [vmem:[%s9 + $0x10] sm:$0xff]
    %v5031 = vld [vmem:[%s9 + $0x18] sm:$0xff]
    %v5032 = vld [vmem:[%s10] sm:$0x1]
    %v5034 = vlaneseq
    %v5035 = vshrl.u32 %v5034, 7
    %v5036 = vsub.s32 0, %v5035
    %v5037 = vrot.slane %v5032, %v5036
    %v5040 = vsel %vm209, %v5025, 0
    %v5043 = vsel %vm209, %v5026, 0
    %5045 = vmatprep.subr.mxu0 0.0
    %5046 = vmatpush1.msra.mxu0 0.0
    %5047 = vmatprep.subr.mxu0 0.0
    %5048 = vmatpush1.msra.mxu0 0.0
    %5049 = vmatprep.subr.mxu0 0.0
    %5050 = vmatpush1.msra.mxu0 0.0
    %5051 = vmatprep.subr.mxu0 0.0
    %5052 = vmatpush1.msra.mxu0 0.0
    %5053 = vmatprep.subr.mxu0 0.0
    %5054 = vmatpush1.msra.mxu0 0.0
    %5055 = vmatprep.subr.mxu0 0.0
    %5056 = vmatpush1.msra.mxu0 0.0
    %5057 = vmatprep.subr.mxu0 0.0
    %5058 = vmatpush1.msra.mxu0 0.0
    %5059 = vmatprep.subr.mxu0 0.0
    %5060 = vmatpush1.msra.mxu0 0.0
    %5061 = vmatprep.subr.mxu0 0.0
    %5062 = vmatpush1.msra.mxu0 0.0
    %5063 = vmatprep.subr.mxu0 0.0
    %5064 = vmatpush1.msra.mxu0 0.0
    %5065 = vmatprep.subr.mxu0 0.0
    %5066 = vmatpush1.msra.mxu0 0.0
    %5067 = vmatprep.subr.mxu0 0.0
    %5068 = vmatpush1.msra.mxu0 0.0
    %5069 = vmatprep.subr.mxu0 0.0
    %5070 = vmatpush1.msra.mxu0 %v5031
    %5071 = vmatprep.subr.mxu0 0.0
    %5072 = vmatpush1.msra.mxu0 %v5030
    %5073 = vmatprep.subr.mxu0 0.0
    %5074 = vmatpush1.msra.mxu0 %v5029
    %5075 = vmatprep.subr.mxu0 0.0
    %5076 = vmatpush1.msra.mxu0 %v5028
    %5077 = vmatprep.subr.mxu0 0.0
    %5078 = vmatpush2.msra.mxu0 0.0
    %5079 = vmatprep.subr.mxu0 0.0
    %5080 = vmatpush2.msra.mxu0 0.0
    %5081 = vmatprep.subr.mxu0 0.0
    %5082 = vmatpush2.msra.mxu0 0.0
    %5083 = vmatprep.subr.mxu0 0.0
    %5084 = vmatpush2.msra.mxu0 0.0
    %5085 = vmatprep.subr.mxu0 0.0
    %5086 = vmatpush2.msra.mxu0 0.0
    %5087 = vmatprep.subr.mxu0 0.0
    %5088 = vmatpush2.msra.mxu0 0.0
    %5089 = vmatprep.subr.mxu0 0.0
    %5090 = vmatpush2.msra.mxu0 0.0
    %5091 = vmatprep.subr.mxu0 0.0
    %5092 = vmatpush2.msra.mxu0 0.0
    %5093 = vmatprep.subr.mxu0 0.0
    %5094 = vmatpush2.msra.mxu0 0.0
    %5095 = vmatprep.subr.mxu0 0.0
    %5096 = vmatpush2.msra.mxu0 0.0
    %5097 = vmatprep.subr.mxu0 0.0
    %5098 = vmatpush2.msra.mxu0 0.0
    %5099 = vmatprep.subr.mxu0 0.0
    %5100 = vmatpush2.msra.mxu0 0.0
    %5101 = vmatprep.subr.mxu0 0.0
    %5102 = vmatpush2.msra.mxu0 0.0
    %5103 = vmatprep.subr.mxu0 0.0
    %5104 = vmatpush2.msra.mxu0 0.0
    %5105 = vmatprep.subr.mxu0 0.0
    %5106 = vmatpush2.msra.mxu0 0.0
    %5107 = vmatprep.subr.mxu0 0.0
    %5108 = vmatpush2.msra.mxu0 0.0
    %5109 = vmatprep.mubr.f32.mxu0 0.0
    %5110 = vmatmul.mubr.f32.gmra.mxu0 %v5040
    %v5111 = vpop.f32.mrf.mxu0
    %v5112 = vadd.f32 %v5037, %v5111
    %v5113 = vpop.f32.mrf.mxu0
    %5114 = vmatprep.mubr.f32.mxu0 0.0
    %5115 = vmatmul.mubr.f32.gmra.mxu0 %v5043
    %v5116 = vpop.f32.mrf.mxu0
    %v5117 = vadd.f32 %v5037, %v5116
    %v5118 = vpop.f32.mrf.mxu0
    %5119 = vdwg.mxu0
    %v5120 = vmax.f32 %v5112, 0.0
    %v5121 = vmax.f32 %v5117, 0.0
    %v5122 = vld [vmem:[%s11] sm:$0xff]
    %v5123 = vld [vmem:[%s11 + $0x8] sm:$0xff]
    %v5124 = vld [vmem:[%s11 + $0x10] sm:$0xff]
    %v5125 = vld [vmem:[%s11 + $0x18] sm:$0xff]
    %v5126 = vld [vmem:[%s11 + $0x20] sm:$0xff]
    %v5127 = vld [vmem:[%s11 + $0x28] sm:$0xff]
    %v5128 = vld [vmem:[%s11 + $0x30] sm:$0xff]
    %v5129 = vld [vmem:[%s11 + $0x38] sm:$0xff]
    %v5130 = vlaneseq
    %v5131 = vshrl.u32 %v5130, 7
    %v5132 = vsub.s32 0, %v5131
    %v5133 = vrot.slane %v5027, %v5132
    %v5135 = vsel %vm2489, %v5120, 0
    %v5138 = vsel %vm2489, %v5121, 0
    %5140 = vmatprep.subr.mxu0 0.0
    %5141 = vmatpush1.msra.mxu0 0.0
    %5142 = vmatprep.subr.mxu0 0.0
    %5143 = vmatpush1.msra.mxu0 0.0
    %5144 = vmatprep.subr.mxu0 0.0
    %5145 = vmatpush1.msra.mxu0 0.0
    %5146 = vmatprep.subr.mxu0 0.0
    %5147 = vmatpush1.msra.mxu0 0.0
    %5148 = vmatprep.subr.mxu0 0.0
    %5149 = vmatpush1.msra.mxu0 0.0
    %5150 = vmatprep.subr.mxu0 0.0
    %5151 = vmatpush1.msra.mxu0 0.0
    %5152 = vmatprep.subr.mxu0 0.0
    %5153 = vmatpush1.msra.mxu0 0.0
    %5154 = vmatprep.subr.mxu0 0.0
    %5155 = vmatpush1.msra.mxu0 0.0
    %5156 = vmatprep.subr.mxu0 0.0
    %5157 = vmatpush1.msra.mxu0 %v5129
    %5158 = vmatprep.subr.mxu0 0.0
    %5159 = vmatpush1.msra.mxu0 %v5128
    %5160 = vmatprep.subr.mxu0 0.0
    %5161 = vmatpush1.msra.mxu0 %v5127
    %5162 = vmatprep.subr.mxu0 0.0
    %5163 = vmatpush1.msra.mxu0 %v5126
    %5164 = vmatprep.subr.mxu0 0.0
    %5165 = vmatpush1.msra.mxu0 %v5125
    %5166 = vmatprep.subr.mxu0 0.0
    %5167 = vmatpush1.msra.mxu0 %v5124
    %5168 = vmatprep.subr.mxu0 0.0
    %5169 = vmatpush1.msra.mxu0 %v5123
    %5170 = vmatprep.subr.mxu0 0.0
    %5171 = vmatpush1.msra.mxu0 %v5122
    %5172 = vmatprep.subr.mxu0 0.0
    %5173 = vmatpush2.msra.mxu0 0.0
    %5174 = vmatprep.subr.mxu0 0.0
    %5175 = vmatpush2.msra.mxu0 0.0
    %5176 = vmatprep.subr.mxu0 0.0
    %5177 = vmatpush2.msra.mxu0 0.0
    %5178 = vmatprep.subr.mxu0 0.0
    %5179 = vmatpush2.msra.mxu0 0.0
    %5180 = vmatprep.subr.mxu0 0.0
    %5181 = vmatpush2.msra.mxu0 0.0
    %5182 = vmatprep.subr.mxu0 0.0
    %5183 = vmatpush2.msra.mxu0 0.0
    %5184 = vmatprep.subr.mxu0 0.0
    %5185 = vmatpush2.msra.mxu0 0.0
    %5186 = vmatprep.subr.mxu0 0.0
    %5187 = vmatpush2.msra.mxu0 0.0
    %5188 = vmatprep.subr.mxu0 0.0
    %5189 = vmatpush2.msra.mxu0 0.0
    %5190 = vmatprep.subr.mxu0 0.0
    %5191 = vmatpush2.msra.mxu0 0.0
    %5192 = vmatprep.subr.mxu0 0.0
    %5193 = vmatpush2.msra.mxu0 0.0
    %5194 = vmatprep.subr.mxu0 0.0
    %5195 = vmatpush2.msra.mxu0 0.0
    %5196 = vmatprep.subr.mxu0 0.0
    %5197 = vmatpush2.msra.mxu0 0.0
    %5198 = vmatprep.subr.mxu0 0.0
    %5199 = vmatpush2.msra.mxu0 0.0
    %5200 = vmatprep.subr.mxu0 0.0
    %5201 = vmatpush2.msra.mxu0 0.0
    %5202 = vmatprep.subr.mxu0 0.0
    %5203 = vmatpush2.msra.mxu0 0.0
    %5204 = vmatprep.mubr.f32.mxu0 0.0
    %5205 = vmatmul.mubr.f32.gmra.mxu0 %v5135
    %v5206 = vpop.f32.mrf.mxu0
    %v5207 = vadd.f32 %v5133, %v5206
    %v5208 = vpop.f32.mrf.mxu0
    %5209 = vmatprep.mubr.f32.mxu0 0.0
    %5210 = vmatmul.mubr.f32.gmra.mxu0 %v5138
    %v5211 = vpop.f32.mrf.mxu0
    %v5212 = vadd.f32 %v5133, %v5211
    %v5213 = vpop.f32.mrf.mxu0
    %5214 = vdwg.mxu0
    %v5215 = vmax.f32 %v5207, 0.0
    %v5216 = vmax.f32 %v5212, 0.0
    %v5217 = vld [vmem:[#allocation8] sm:$0xff]
    %v5218 = vld [vmem:[#allocation8 + $0x8] sm:$0xff]
    %v5219 = vld [vmem:[#allocation8 + $0x10] sm:$0xff]
    %v5220 = vld [vmem:[#allocation8 + $0x18] sm:$0xff]
    %v5221 = vld [vmem:[%s13] sm:$0x1]
    %v5223 = vlaneseq
    %v5224 = vshrl.u32 %v5223, 7
    %v5225 = vsub.s32 0, %v5224
    %v5226 = vrot.slane %v5221, %v5225
    %v5229 = vsel %vm209, %v5215, 0
    %v5232 = vsel %vm209, %v5216, 0
    %5234 = vmatprep.subr.mxu0 0.0
    %5235 = vmatpush1.msra.mxu0 0.0
    %5236 = vmatprep.subr.mxu0 0.0
    %5237 = vmatpush1.msra.mxu0 0.0
    %5238 = vmatprep.subr.mxu0 0.0
    %5239 = vmatpush1.msra.mxu0 0.0
    %5240 = vmatprep.subr.mxu0 0.0
    %5241 = vmatpush1.msra.mxu0 0.0
    %5242 = vmatprep.subr.mxu0 0.0
    %5243 = vmatpush1.msra.mxu0 0.0
    %5244 = vmatprep.subr.mxu0 0.0
    %5245 = vmatpush1.msra.mxu0 0.0
    %5246 = vmatprep.subr.mxu0 0.0
    %5247 = vmatpush1.msra.mxu0 0.0
    %5248 = vmatprep.subr.mxu0 0.0
    %5249 = vmatpush1.msra.mxu0 0.0
    %5250 = vmatprep.subr.mxu0 0.0
    %5251 = vmatpush1.msra.mxu0 0.0
    %5252 = vmatprep.subr.mxu0 0.0
    %5253 = vmatpush1.msra.mxu0 0.0
    %5254 = vmatprep.subr.mxu0 0.0
    %5255 = vmatpush1.msra.mxu0 0.0
    %5256 = vmatprep.subr.mxu0 0.0
    %5257 = vmatpush1.msra.mxu0 0.0
    %5258 = vmatprep.subr.mxu0 0.0
    %5259 = vmatpush1.msra.mxu0 %v5220
    %5260 = vmatprep.subr.mxu0 0.0
    %5261 = vmatpush1.msra.mxu0 %v5219
    %5262 = vmatprep.subr.mxu0 0.0
    %5263 = vmatpush1.msra.mxu0 %v5218
    %5264 = vmatprep.subr.mxu0 0.0
    %5265 = vmatpush1.msra.mxu0 %v5217
    %5266 = vmatprep.subr.mxu0 0.0
    %5267 = vmatpush2.msra.mxu0 0.0
    %5268 = vmatprep.subr.mxu0 0.0
    %5269 = vmatpush2.msra.mxu0 0.0
    %5270 = vmatprep.subr.mxu0 0.0
    %5271 = vmatpush2.msra.mxu0 0.0
    %5272 = vmatprep.subr.mxu0 0.0
    %5273 = vmatpush2.msra.mxu0 0.0
    %5274 = vmatprep.subr.mxu0 0.0
    %5275 = vmatpush2.msra.mxu0 0.0
    %5276 = vmatprep.subr.mxu0 0.0
    %5277 = vmatpush2.msra.mxu0 0.0
    %5278 = vmatprep.subr.mxu0 0.0
    %5279 = vmatpush2.msra.mxu0 0.0
    %5280 = vmatprep.subr.mxu0 0.0
    %5281 = vmatpush2.msra.mxu0 0.0
    %5282 = vmatprep.subr.mxu0 0.0
    %5283 = vmatpush2.msra.mxu0 0.0
    %5284 = vmatprep.subr.mxu0 0.0
    %5285 = vmatpush2.msra.mxu0 0.0
    %5286 = vmatprep.subr.mxu0 0.0
    %5287 = vmatpush2.msra.mxu0 0.0
    %5288 = vmatprep.subr.mxu0 0.0
    %5289 = vmatpush2.msra.mxu0 0.0
    %5290 = vmatprep.subr.mxu0 0.0
    %5291 = vmatpush2.msra.mxu0 0.0
    %5292 = vmatprep.subr.mxu0 0.0
    %5293 = vmatpush2.msra.mxu0 0.0
    %5294 = vmatprep.subr.mxu0 0.0
    %5295 = vmatpush2.msra.mxu0 0.0
    %5296 = vmatprep.subr.mxu0 0.0
    %5297 = vmatpush2.msra.mxu0 0.0
    %5298 = vmatprep.mubr.f32.mxu0 0.0
    %5299 = vmatmul.mubr.f32.gmra.mxu0 %v5229
    %v5300 = vpop.f32.mrf.mxu0
    %v5301 = vadd.f32 %v5226, %v5300
    %v5302 = vpop.f32.mrf.mxu0
    %5303 = vmatprep.mubr.f32.mxu0 0.0
    %5304 = vmatmul.mubr.f32.gmra.mxu0 %v5232
    %v5305 = vpop.f32.mrf.mxu0
    %v5306 = vadd.f32 %v5226, %v5305
    %v5307 = vpop.f32.mrf.mxu0
    %5308 = vdwg.mxu0
    %5309 = vst [vmem:[#allocation10] sm:$0xff] %v5301
    %5310 = vst [vmem:[#allocation10 + $0x8] sm:$0xff] %v5306
    // Predicated region
    $region74: #{tpu_custom_call.1} parent=1 // pred_check
      _
    $region75: #{tpu_custom_call.1} parent=1 // pred_check_branch
      %5312 = sbr.rel (0) target = $region77
    $region76: #{tpu_custom_call.1} parent=1 // pred_region
      %s5314 = ssub.s32 256, 256
      %5315 = vsyncadd [#allocation4], %s5314
      %s5316 = sshll.u32 [#allocation10], 4
      %s5317 = int_to_ptr.vmem [resolvable:$true] %s5316
      %5322 = dma.vmem_to_hbm [thread:$0]  %s5317, 256, %s14, [#allocation4], 128, 128, 8
    $region77: #{tpu_custom_call.1} parent=1 // pred_fallthru
      _
    // Predicated region
    $region78: #{tpu_custom_call.1} parent=1 // pred_check
      _
    $region79: #{tpu_custom_call.1} parent=1 // pred_check_branch
      %5324 = sbr.rel (0) target = $region81
    $region80: #{tpu_custom_call.1} parent=1 // pred_region
      %5325 = dma.done [#allocation4], 256
    $region81: #{tpu_custom_call.1} parent=1 // pred_fallthru
      _
    %5326 = vsyncpa [#allocation3], 1
    %5327 = vsyncpa [#allocation6], 1
    %5328 = vsyncpa [#allocation9], 1
    %5329 = vsyncpa [#allocation4], 1

</llo_original>
